<compile_context>
chip_gen: v6e
topology: v6e:2x2x1
jax: 0.10.0
libtpu: 0.0.40
codegen_flags: <defaults>
</compile_context>

<pallas_src>
import functools

import jax
import jax.numpy as jnp
from jax import lax
from jax.experimental import pallas as pl
from jax.experimental.pallas import tpu as pltpu

NEG_SLOPE = 0.2  # LeakyReLU(0.2) used on the down path


def _round_up(x, m):
    return ((x + m - 1) // m) * m


@functools.lru_cache(maxsize=None)
def _tpu_tuning():
    """(vmem_limit_bytes, block_m), generation-gated (conservative fallback)."""
    vmem_cap = None
    try:
        vmem_cap = int(getattr(pltpu.get_tpu_info(), "vmem_capacity_bytes", 0)) or None
    except Exception:
        vmem_cap = None
    if vmem_cap is not None and vmem_cap >= 100 * 1024 * 1024:   # v5e / v6e: 128 MiB
        return 64 * 1024 * 1024, 512
    return 32 * 1024 * 1024, 256                                  # v7x (64 MiB) / unknown


# ---------------------------------------------------------------------------
# Fused GEMM Pallas kernel:  out = act_out( act_in(A) @ B + bias )
#   A, B arrive as bf16 (MXU-native); prologue/epilogue math is f32.
# ---------------------------------------------------------------------------
def _fused_gemm_kernel(a_ref, b_ref, bias_ref, o_ref, *, act_in, act_out):
    if act_in is None:
        a = a_ref[...]
    else:
        a32 = a_ref[...].astype(jnp.float32)
        if act_in == "lrelu":
            a32 = jnp.where(a32 >= 0, a32, a32 * NEG_SLOPE)
        else:  # "relu"
            a32 = jnp.maximum(a32, 0.0)
        a = a32.astype(jnp.bfloat16)
    acc = jnp.dot(a, b_ref[...], preferred_element_type=jnp.float32)
    acc = acc + bias_ref[...].astype(jnp.float32)
    if act_out == "relu":
        acc = jnp.maximum(acc, 0.0)
    elif act_out == "sigmoid":
        acc = pl.reciprocal(1.0 + jnp.exp(-acc), approx=True)
    o_ref[...] = acc.astype(o_ref.dtype)


def fused_gemm(a, b, bias, *, act_in=None, act_out=None, out_dtype=jnp.bfloat16):
    """Batched fused GEMM.

    a: (P, M, K), b: (P, K, C), bias: (C,) -> (P, M, C) in out_dtype.
    Grid = (P, M_tiles), both axes "parallel"; weights/bias stay resident across
    the inner row-tile axis. Cout padded to a 128 multiple for lane-dense stores.
    """
    vmem_limit, block_m = _tpu_tuning()
    p, m, k = a.shape
    c = b.shape[-1]
    c_pad = _round_up(c, 128)                # lane-dense output stores
    tm = min(block_m, _round_up(m, 8))
    m_pad = _round_up(m, tm)                 # predictable tiling, no whole-M fallback

    a = a.astype(jnp.bfloat16)
    b = b.astype(jnp.bfloat16)
    bias = bias.astype(jnp.float32)
    if m_pad != m:
        a = jnp.pad(a, ((0, 0), (0, m_pad - m), (0, 0)))
    if c_pad != c:
        b = jnp.pad(b, ((0, 0), (0, 0), (0, c_pad - c)))
        bias = jnp.pad(bias, (0, c_pad - c))
    bias = bias.reshape(1, c_pad)

    kernel = functools.partial(_fused_gemm_kernel, act_in=act_in, act_out=act_out)
    out = pl.pallas_call(
        kernel,
        out_shape=jax.ShapeDtypeStruct((p, m_pad, c_pad), out_dtype),
        grid_spec=pltpu.PrefetchScalarGridSpec(
            num_scalar_prefetch=0,
            grid=(p, m_pad // tm),
            in_specs=[
                pl.BlockSpec((None, tm, k), lambda pi, i: (pi, i, 0)),      # A row tile
                pl.BlockSpec((None, k, c_pad), lambda pi, i: (pi, 0, 0)),   # weights
                pl.BlockSpec((1, c_pad), lambda pi, i: (0, 0)),             # bias
            ],
            out_specs=pl.BlockSpec((None, tm, c_pad), lambda pi, i: (pi, i, 0)),
        ),
        compiler_params=pltpu.CompilerParams(
            dimension_semantics=("parallel", "parallel"),
            vmem_limit_bytes=vmem_limit,
        ),
    )(a, b, bias)
    return out[:, :m, :c]


# ---------------------------------------------------------------------------
# Conv layers expressed as im2col (XLA) + fused Pallas GEMM
# ---------------------------------------------------------------------------
def _out_dtype_for(act_out):
    return jnp.float32 if act_out == "sigmoid" else jnp.bfloat16


def _conv3x3_s2_pallas(x, w, b, *, act_in=None, act_out=None):
    """ReplicationPad2d(1) + Conv2d(k=3, s=2, p=0). x NHWC, w (Cout,Cin,3,3)."""
    x = x.astype(jnp.bfloat16)
    n, h, wd, cin = x.shape
    cout = w.shape[0]
    xp = jnp.pad(x, ((0, 0), (1, 1), (1, 1), (0, 0)), mode="edge")
    ho = (h + 2 - 3) // 2 + 1
    wo = (wd + 2 - 3) // 2 + 1
    cols = []
    for di in range(3):
        for dj in range(3):
            cols.append(xp[:, di:di + 2 * ho - 1:2, dj:dj + 2 * wo - 1:2, :])
    patches = jnp.concatenate(cols, axis=-1).reshape(1, n * ho * wo, 9 * cin)
    wmat = jnp.transpose(w, (2, 3, 1, 0)).reshape(1, 9 * cin, cout)
    y = fused_gemm(patches, wmat, b, act_in=act_in, act_out=act_out,
                   out_dtype=_out_dtype_for(act_out))
    return y.reshape(n, ho, wo, cout)


def _conv1x1_pallas(x, w, b, *, act_in=None, act_out=None):
    """Conv2d(k=1, s=1). x NHWC, w (Cout,Cin,1,1)."""
    x = x.astype(jnp.bfloat16)
    n, h, wd, cin = x.shape
    cout = w.shape[0]
    a = x.reshape(1, n * h * wd, cin)
    wmat = jnp.transpose(w[:, :, 0, 0], (1, 0)).reshape(1, cin, cout)
    y = fused_gemm(a, wmat, b, act_in=act_in, act_out=act_out,
                   out_dtype=_out_dtype_for(act_out))
    return y.reshape(n, h, wd, cout)


# parity -> ((input offset, kernel tap), ...) for ConvTranspose2d(k=4, s=2, p=1)
_T_OFFS = {0: ((-1, 3), (0, 1)), 1: ((0, 2), (1, 0))}


def _convT4x4_s2_pallas(x, w, b, *, act_in=None, act_out=None):
    """ConvTranspose2d(k=4, s=2, p=1). x NHWC, w torch layout (Cin,Cout,4,4).

    Decomposed into its 4 output parities (each an exact 2x2-tap GEMM, no
    zero-stuffing FLOPs); all 4 parities run in ONE pallas_call over a leading
    size-4 'parallel' grid axis.
    """
    x = x.astype(jnp.bfloat16)
    n, h, wd, cin = x.shape
    cout = w.shape[1]
    xp = jnp.pad(x, ((0, 0), (1, 1), (1, 1), (0, 0)))  # zero pad for boundaries
    a_stack, w_stack = [], []
    for r in range(2):
        for c in range(2):
            cols, wts = [], []
            for dr, kr in _T_OFFS[r]:
                for dc, kc in _T_OFFS[c]:
                    cols.append(xp[:, 1 + dr:1 + dr + h, 1 + dc:1 + dc + wd, :])
                    wts.append(w[:, :, kr, kc])
            a_stack.append(jnp.concatenate(cols, axis=-1).reshape(n * h * wd, 4 * cin))
            w_stack.append(jnp.concatenate(wts, axis=0))          # (4*Cin, Cout)
    a_all = jnp.stack(a_stack, axis=0)                            # (4, M, 4*Cin)
    w_all = jnp.stack(w_stack, axis=0)                            # (4, 4*Cin, Cout)
    y = fused_gemm(a_all, w_all, b, act_in=act_in, act_out=act_out,
                   out_dtype=_out_dtype_for(act_out))             # (4, M, Cout)
    y = y.reshape(2, 2, n, h, wd, cout)                           # (r, c, N, H, W, C)
    y = jnp.transpose(y, (2, 3, 0, 4, 1, 5)).reshape(n, 2 * h, 2 * wd, cout)
    return y


# ---------------------------------------------------------------------------
# Pure-XLA reference layers (lax convolutions, f32) for validation
# ---------------------------------------------------------------------------
def _act_ref(v, kind):
    if kind == "lrelu":
        return jnp.where(v >= 0, v, v * NEG_SLOPE)
    if kind == "relu":
        return jnp.maximum(v, 0.0)
    if kind == "sigmoid":
        return jax.nn.sigmoid(v)
    return v


def _conv3x3_s2_ref(x, w, b, *, act_in=None, act_out=None):
    x = _act_ref(x, act_in)
    xp = jnp.pad(x, ((0, 0), (1, 1), (1, 1), (0, 0)), mode="edge")
    y = lax.conv_general_dilated(
        xp, jnp.transpose(w, (2, 3, 1, 0)), (2, 2), "VALID",
        dimension_numbers=("NHWC", "HWIO", "NHWC"),
        precision=lax.Precision.HIGHEST)
    return _act_ref(y + b, act_out)


def _conv1x1_ref(x, w, b, *, act_in=None, act_out=None):
    x = _act_ref(x, act_in)
    y = lax.conv_general_dilated(
        x, jnp.transpose(w, (2, 3, 1, 0)), (1, 1), "VALID",
        dimension_numbers=("NHWC", "HWIO", "NHWC"),
        precision=lax.Precision.HIGHEST)
    return _act_ref(y + b, act_out)


def _convT4x4_s2_ref(x, w, b, *, act_in=None, act_out=None):
    x = _act_ref(x, act_in)
    w_hwio = jnp.transpose(jnp.flip(w, axis=(2, 3)), (2, 3, 0, 1))
    y = lax.conv_general_dilated(
        x, w_hwio, (1, 1), [(2, 2), (2, 2)], lhs_dilation=(2, 2),
        dimension_numbers=("NHWC", "HWIO", "NHWC"),
        precision=lax.Precision.HIGHEST)
    return _act_ref(y + b, act_out)


# ---------------------------------------------------------------------------
# U-Net wiring (identical for Pallas and reference layer implementations)
# ---------------------------------------------------------------------------
def _crop_like(x, target):
    # `padding` module: drop last row / col if the upsampled map overshoots.
    return x[:, : target.shape[1], : target.shape[2], :]


def unet_forward(x_nchw, params, conv3, conv1, convt):
    x = jnp.transpose(x_nchw, (0, 2, 3, 1)).astype(jnp.float32)       # NHWC
    # ---- down path (outermost -> innermost) ----
    d1 = conv3(x, *params["down1"], act_in=None)                      # g,   H/2
    d2 = conv3(d1, *params["down2"], act_in="lrelu")                  # 2g,  H/4
    d3 = conv3(d2, *params["down3"], act_in="lrelu")                  # 4g,  H/8
    d4 = conv3(d3, *params["down4"], act_in="lrelu")                  # 4g,  H/16
    u5 = conv1(d4, *params["inner"], act_in="lrelu", act_out="relu")  # 8g,  H/16
    # ---- up path with skip concatenations ----
    u4 = _crop_like(convt(u5, *params["up4"], act_in="relu"), d3)     # 4g,  H/8
    c4 = jnp.concatenate([u4, d3], axis=-1)                           # 8g
    u3 = _crop_like(convt(c4, *params["up3"], act_in="relu"), d2)     # 2g,  H/4
    c3 = jnp.concatenate([u3, d2], axis=-1)                           # 4g
    u2 = _crop_like(convt(c3, *params["up2"], act_in="relu"), d1)     # g,   H/2
    c2 = jnp.concatenate([u2, d1], axis=-1)                           # 2g
    y = convt(c2, *params["up1"], act_in="relu", act_out="sigmoid")   # out_nc, H
    return jnp.transpose(y, (0, 3, 1, 2)).astype(jnp.float32)         # NCHW


# ---------------------------------------------------------------------------
# Parameter construction (torch layouts: conv (Cout,Cin,k,k), convT (Cin,Cout,k,k))
# ---------------------------------------------------------------------------
def _conv_param(key, cout, cin, k):
    kw_, kb_ = jax.random.split(key)
    w = 0.05 * jax.random.normal(kw_, (cout, cin, k, k), jnp.float32)
    b = 0.02 * jax.random.normal(kb_, (cout,), jnp.float32)
    return w, b


def _convt_param(key, cin, cout, k=4):
    kw_, kb_ = jax.random.split(key)
    w = 0.05 * jax.random.normal(kw_, (cin, cout, k, k), jnp.float32)
    b = 0.02 * jax.random.normal(kb_, (cout,), jnp.float32)
    return w, b


def init_params(key, input_nc, output_nc, nz, ngf):
    g = ngf
    keys = jax.random.split(key, 9)
    return {
        "down1": _conv_param(keys[0], g, input_nc + nz, 3),
        "down2": _conv_param(keys[1], 2 * g, g, 3),
        "down3": _conv_param(keys[2], 4 * g, 2 * g, 3),
        "down4": _conv_param(keys[3], 4 * g, 4 * g, 3),
        "inner": _conv_param(keys[4], 8 * g, 4 * g, 1),
        "up4": _convt_param(keys[5], 8 * g, 4 * g),
        "up3": _convt_param(keys[6], 8 * g, 2 * g),
        "up2": _convt_param(keys[7], 4 * g, g),
        "up1": _convt_param(keys[8], 2 * g, output_nc),
    }


if __name__ == "__main__":
    # Small but structurally faithful config: 4 stride-2 downs + inner 1x1 + 4 ups.
    N, input_nc, output_nc, nz, ngf = 2, 3, 3, 0, 16
    H = W = 32

    key = jax.random.PRNGKey(0)
    kx, kp = jax.random.split(key)
    x = jax.random.normal(kx, (N, input_nc + nz, H, W), jnp.float32)
    params = init_params(kp, input_nc, output_nc, nz, ngf)

    pallas_fwd = jax.jit(lambda xx, pp: unet_forward(
        xx, pp, _conv3x3_s2_pallas, _conv1x1_pallas, _convT4x4_s2_pallas))
    ref_fwd = jax.jit(lambda xx, pp: unet_forward(
        xx, pp, _conv3x3_s2_ref, _conv1x1_ref, _convT4x4_s2_ref))

    out = jax.block_until_ready(pallas_fwd(x, params))
    ref = jax.block_until_ready(ref_fwd(x, params))

    assert out.shape == (N, output_nc, H, W)
    assert bool(jnp.all(jnp.isfinite(out)))
    # bf16 MXU operands / bf16 intermediates -> looser tolerance than the f32 reference.
    assert jnp.allclose(out, ref, atol=2e-2, rtol=2e-2), float(
        jnp.max(jnp.abs(out - ref)))

    print("KERNEL_OK")
</pallas_src>

<mosaic_0001>
module attributes {stable_mosaic.version = 11 : i64} {
  func.func @_fused_gemm_kernel(%arg0: i32, %arg1: i32, %arg2: memref<1x256x27xbf16, #tpu.memory_space<vmem>>, %arg3: memref<1x27x128xbf16, #tpu.memory_space<vmem>>, %arg4: memref<1x128xf32, #tpu.memory_space<vmem>>, %arg5: memref<1x256x128xbf16, #tpu.memory_space<vmem>>) attributes {dimension_semantics = [#tpu.dimension_semantics<parallel>, #tpu.dimension_semantics<parallel>], iteration_bounds = array<i64: 1, 2>, scalar_prefetch = 0 : i64, scratch_operands = 0 : i64, tpu.core_type = #tpu.core_type<tc>, window_params = [{transform_indices = @transform_0, window_bounds = array<i64: 1, 256, 27>}, {transform_indices = @transform_1, window_bounds = array<i64: 1, 27, 128>}, {pipeline_mode = #tpu.pipeline_mode<synchronous>, transform_indices = @transform_2, window_bounds = array<i64: 1, 128>}, {transform_indices = @transform_3, window_bounds = array<i64: 1, 256, 128>}]} {
    %c0 = arith.constant 0 : index
    %c0_0 = arith.constant 0 : index
    %c0_1 = arith.constant 0 : index
    %0 = vector.load %arg2[%c0, %c0_0, %c0_1] : memref<1x256x27xbf16, #tpu.memory_space<vmem>>, vector<1x256x27xbf16>
    %1 = vector.shape_cast %0 : vector<1x256x27xbf16> to vector<256x27xbf16>
    %c0_2 = arith.constant 0 : index
    %c0_3 = arith.constant 0 : index
    %c0_4 = arith.constant 0 : index
    %2 = vector.load %arg3[%c0_2, %c0_3, %c0_4] : memref<1x27x128xbf16, #tpu.memory_space<vmem>>, vector<1x27x128xbf16>
    %3 = vector.shape_cast %2 : vector<1x27x128xbf16> to vector<27x128xbf16>
    %cst = arith.constant dense<0.000000e+00> : vector<256x128xf32>
    %4 = tpu.matmul %1, %3, %cst {dimension_numbers = #tpu.dot_dimension_numbers<[1], [0], [0], [1], [0, 0, 1, 1], [], []>} : vector<256x27xbf16>, vector<27x128xbf16>, vector<256x128xf32> -> vector<256x128xf32>
    %c0_5 = arith.constant 0 : index
    %c0_6 = arith.constant 0 : index
    %5 = vector.load %arg4[%c0_5, %c0_6] : memref<1x128xf32, #tpu.memory_space<vmem>>, vector<1x128xf32>
    %6 = vector.broadcast %5 : vector<1x128xf32> to vector<256x128xf32>
    %7 = arith.addf %4, %6 : vector<256x128xf32>
    %8 = arith.truncf %7 : vector<256x128xf32> to vector<256x128xbf16>
    %c0_7 = arith.constant 0 : index
    %c0_8 = arith.constant 0 : index
    %c0_9 = arith.constant 0 : index
    %9 = vector.load %arg5[%c0_7, %c0_8, %c0_9] : memref<1x256x128xbf16, #tpu.memory_space<vmem>>, vector<1x256x128xbf16>
    %10 = vector.shape_cast %9 : vector<1x256x128xbf16> to vector<256x128xbf16>
    %11 = vector.shape_cast %8 : vector<256x128xbf16> to vector<1x256x128xbf16>
    tpu.vector_store %arg5[%c0_7, %c0_8, %c0_9], %11 {strides = array<i32>} : memref<1x256x128xbf16, #tpu.memory_space<vmem>>, vector<1x256x128xbf16>,
    return
  }
  func.func @transform_0(%arg0: i32, %arg1: i32) -> (i32, i32, i32) {
    %c0_i32 = arith.constant 0 : i32
    %c0_i32_0 = arith.constant 0 : i32
    return %arg0, %arg1, %c0_i32 : i32, i32, i32
  }
  func.func @transform_1(%arg0: i32, %arg1: i32) -> (i32, i32, i32) {
    %c0_i32 = arith.constant 0 : i32
    %c0_i32_0 = arith.constant 0 : i32
    %c0_i32_1 = arith.constant 0 : i32
    return %arg0, %c0_i32, %c0_i32_0 : i32, i32, i32
  }
  func.func @transform_2(%arg0: i32, %arg1: i32) -> (i32, i32) {
    %c0_i32 = arith.constant 0 : i32
    %c0_i32_0 = arith.constant 0 : i32
    %c0_i32_1 = arith.constant 0 : i32
    return %c0_i32, %c0_i32_0 : i32, i32
  }
  func.func @transform_3(%arg0: i32, %arg1: i32) -> (i32, i32, i32) {
    %c0_i32 = arith.constant 0 : i32
    %c0_i32_0 = arith.constant 0 : i32
    return %arg0, %arg1, %c0_i32 : i32, i32, i32
  }
}

module attributes {stable_mosaic.version = 11 : i64} {
  func.func @_fused_gemm_kernel(%arg0: i32, %arg1: i32, %arg2: memref<1x128x144xbf16, #tpu.memory_space<vmem>>, %arg3: memref<1x144x128xbf16, #tpu.memory_space<vmem>>, %arg4: memref<1x128xf32, #tpu.memory_space<vmem>>, %arg5: memref<1x128x128xbf16, #tpu.memory_space<vmem>>) attributes {dimension_semantics = [#tpu.dimension_semantics<parallel>, #tpu.dimension_semantics<parallel>], iteration_bounds = array<i64: 1, 1>, scalar_prefetch = 0 : i64, scratch_operands = 0 : i64, tpu.core_type = #tpu.core_type<tc>, window_params = [{transform_indices = @transform_0, window_bounds = array<i64: 1, 128, 144>}, {transform_indices = @transform_1, window_bounds = array<i64: 1, 144, 128>}, {pipeline_mode = #tpu.pipeline_mode<synchronous>, transform_indices = @transform_2, window_bounds = array<i64: 1, 128>}, {transform_indices = @transform_3, window_bounds = array<i64: 1, 128, 128>}]} {
    %c0 = arith.constant 0 : index
    %c0_0 = arith.constant 0 : index
    %c0_1 = arith.constant 0 : index
    %0 = vector.load %arg2[%c0, %c0_0, %c0_1] : memref<1x128x144xbf16, #tpu.memory_space<vmem>>, vector<1x128x144xbf16>
    %1 = vector.shape_cast %0 : vector<1x128x144xbf16> to vector<128x144xbf16>
    %2 = arith.extf %1 : vector<128x144xbf16> to vector<128x144xf32>
    %cst = arith.constant 0.000000e+00 : f32
    %3 = vector.broadcast %cst : f32 to vector<128x144xf32>
    %4 = arith.cmpf oge, %2, %3 : vector<128x144xf32>
    %cst_2 = arith.constant 2.000000e-01 : f32
    %5 = vector.broadcast %cst_2 : f32 to vector<128x144xf32>
    %6 = arith.mulf %2, %5 : vector<128x144xf32>
    %7 = arith.select %4, %2, %6 : vector<128x144xi1>, vector<128x144xf32>
    %8 = arith.truncf %7 : vector<128x144xf32> to vector<128x144xbf16>
    %c0_3 = arith.constant 0 : index
    %c0_4 = arith.constant 0 : index
    %c0_5 = arith.constant 0 : index
    %9 = vector.load %arg3[%c0_3, %c0_4, %c0_5] : memref<1x144x128xbf16, #tpu.memory_space<vmem>>, vector<1x144x128xbf16>
    %10 = vector.shape_cast %9 : vector<1x144x128xbf16> to vector<144x128xbf16>
    %cst_6 = arith.constant dense<0.000000e+00> : vector<128x128xf32>
    %11 = tpu.matmul %8, %10, %cst_6 {dimension_numbers = #tpu.dot_dimension_numbers<[1], [0], [0], [1], [0, 0, 1, 1], [], []>} : vector<128x144xbf16>, vector<144x128xbf16>, vector<128x128xf32> -> vector<128x128xf32>
    %c0_7 = arith.constant 0 : index
    %c0_8 = arith.constant 0 : index
    %12 = vector.load %arg4[%c0_7, %c0_8] : memref<1x128xf32, #tpu.memory_space<vmem>>, vector<1x128xf32>
    %13 = vector.broadcast %12 : vector<1x128xf32> to vector<128x128xf32>
    %14 = arith.addf %11, %13 : vector<128x128xf32>
    %15 = arith.truncf %14 : vector<128x128xf32> to vector<128x128xbf16>
    %c0_9 = arith.constant 0 : index
    %c0_10 = arith.constant 0 : index
    %c0_11 = arith.constant 0 : index
    %16 = vector.load %arg5[%c0_9, %c0_10, %c0_11] : memref<1x128x128xbf16, #tpu.memory_space<vmem>>, vector<1x128x128xbf16>
    %17 = vector.shape_cast %16 : vector<1x128x128xbf16> to vector<128x128xbf16>
    %18 = vector.shape_cast %15 : vector<128x128xbf16> to vector<1x128x128xbf16>
    tpu.vector_store %arg5[%c0_9, %c0_10, %c0_11], %18 {strides = array<i32>} : memref<1x128x128xbf16, #tpu.memory_space<vmem>>, vector<1x128x128xbf16>,
    return
  }
  func.func @transform_0(%arg0: i32, %arg1: i32) -> (i32, i32, i32) {
    %c0_i32 = arith.constant 0 : i32
    %c0_i32_0 = arith.constant 0 : i32
    return %arg0, %arg1, %c0_i32 : i32, i32, i32
  }
  func.func @transform_1(%arg0: i32, %arg1: i32) -> (i32, i32, i32) {
    %c0_i32 = arith.constant 0 : i32
    %c0_i32_0 = arith.constant 0 : i32
    %c0_i32_1 = arith.constant 0 : i32
    return %arg0, %c0_i32, %c0_i32_0 : i32, i32, i32
  }
  func.func @transform_2(%arg0: i32, %arg1: i32) -> (i32, i32) {
    %c0_i32 = arith.constant 0 : i32
    %c0_i32_0 = arith.constant 0 : i32
    %c0_i32_1 = arith.constant 0 : i32
    return %c0_i32, %c0_i32_0 : i32, i32
  }
  func.func @transform_3(%arg0: i32, %arg1: i32) -> (i32, i32, i32) {
    %c0_i32 = arith.constant 0 : i32
    %c0_i32_0 = arith.constant 0 : i32
    return %arg0, %arg1, %c0_i32 : i32, i32, i32
  }
}

module attributes {stable_mosaic.version = 11 : i64} {
  func.func @_fused_gemm_kernel(%arg0: i32, %arg1: i32, %arg2: memref<1x32x288xbf16, #tpu.memory_space<vmem>>, %arg3: memref<1x288x128xbf16, #tpu.memory_space<vmem>>, %arg4: memref<1x128xf32, #tpu.memory_space<vmem>>, %arg5: memref<1x32x128xbf16, #tpu.memory_space<vmem>>) attributes {dimension_semantics = [#tpu.dimension_semantics<parallel>, #tpu.dimension_semantics<parallel>], iteration_bounds = array<i64: 1, 1>, scalar_prefetch = 0 : i64, scratch_operands = 0 : i64, tpu.core_type = #tpu.core_type<tc>, window_params = [{transform_indices = @transform_0, window_bounds = array<i64: 1, 32, 288>}, {transform_indices = @transform_1, window_bounds = array<i64: 1, 288, 128>}, {pipeline_mode = #tpu.pipeline_mode<synchronous>, transform_indices = @transform_2, window_bounds = array<i64: 1, 128>}, {transform_indices = @transform_3, window_bounds = array<i64: 1, 32, 128>}]} {
    %c0 = arith.constant 0 : index
    %c0_0 = arith.constant 0 : index
    %c0_1 = arith.constant 0 : index
    %0 = vector.load %arg2[%c0, %c0_0, %c0_1] : memref<1x32x288xbf16, #tpu.memory_space<vmem>>, vector<1x32x288xbf16>
    %1 = vector.shape_cast %0 : vector<1x32x288xbf16> to vector<32x288xbf16>
    %2 = arith.extf %1 : vector<32x288xbf16> to vector<32x288xf32>
    %cst = arith.constant 0.000000e+00 : f32
    %3 = vector.broadcast %cst : f32 to vector<32x288xf32>
    %4 = arith.cmpf oge, %2, %3 : vector<32x288xf32>
    %cst_2 = arith.constant 2.000000e-01 : f32
    %5 = vector.broadcast %cst_2 : f32 to vector<32x288xf32>
    %6 = arith.mulf %2, %5 : vector<32x288xf32>
    %7 = arith.select %4, %2, %6 : vector<32x288xi1>, vector<32x288xf32>
    %8 = arith.truncf %7 : vector<32x288xf32> to vector<32x288xbf16>
    %c0_3 = arith.constant 0 : index
    %c0_4 = arith.constant 0 : index
    %c0_5 = arith.constant 0 : index
    %9 = vector.load %arg3[%c0_3, %c0_4, %c0_5] : memref<1x288x128xbf16, #tpu.memory_space<vmem>>, vector<1x288x128xbf16>
    %10 = vector.shape_cast %9 : vector<1x288x128xbf16> to vector<288x128xbf16>
    %cst_6 = arith.constant dense<0.000000e+00> : vector<32x128xf32>
    %11 = tpu.matmul %8, %10, %cst_6 {dimension_numbers = #tpu.dot_dimension_numbers<[1], [0], [0], [1], [0, 0, 1, 1], [], []>} : vector<32x288xbf16>, vector<288x128xbf16>, vector<32x128xf32> -> vector<32x128xf32>
    %c0_7 = arith.constant 0 : index
    %c0_8 = arith.constant 0 : index
    %12 = vector.load %arg4[%c0_7, %c0_8] : memref<1x128xf32, #tpu.memory_space<vmem>>, vector<1x128xf32>
    %13 = vector.broadcast %12 : vector<1x128xf32> to vector<32x128xf32>
    %14 = arith.addf %11, %13 : vector<32x128xf32>
    %15 = arith.truncf %14 : vector<32x128xf32> to vector<32x128xbf16>
    %c0_9 = arith.constant 0 : index
    %c0_10 = arith.constant 0 : index
    %c0_11 = arith.constant 0 : index
    %16 = vector.load %arg5[%c0_9, %c0_10, %c0_11] : memref<1x32x128xbf16, #tpu.memory_space<vmem>>, vector<1x32x128xbf16>
    %17 = vector.shape_cast %16 : vector<1x32x128xbf16> to vector<32x128xbf16>
    %18 = vector.shape_cast %15 : vector<32x128xbf16> to vector<1x32x128xbf16>
    tpu.vector_store %arg5[%c0_9, %c0_10, %c0_11], %18 {strides = array<i32>} : memref<1x32x128xbf16, #tpu.memory_space<vmem>>, vector<1x32x128xbf16>,
    return
  }
  func.func @transform_0(%arg0: i32, %arg1: i32) -> (i32, i32, i32) {
    %c0_i32 = arith.constant 0 : i32
    %c0_i32_0 = arith.constant 0 : i32
    return %arg0, %arg1, %c0_i32 : i32, i32, i32
  }
  func.func @transform_1(%arg0: i32, %arg1: i32) -> (i32, i32, i32) {
    %c0_i32 = arith.constant 0 : i32
    %c0_i32_0 = arith.constant 0 : i32
    %c0_i32_1 = arith.constant 0 : i32
    return %arg0, %c0_i32, %c0_i32_0 : i32, i32, i32
  }
  func.func @transform_2(%arg0: i32, %arg1: i32) -> (i32, i32) {
    %c0_i32 = arith.constant 0 : i32
    %c0_i32_0 = arith.constant 0 : i32
    %c0_i32_1 = arith.constant 0 : i32
    return %c0_i32, %c0_i32_0 : i32, i32
  }
  func.func @transform_3(%arg0: i32, %arg1: i32) -> (i32, i32, i32) {
    %c0_i32 = arith.constant 0 : i32
    %c0_i32_0 = arith.constant 0 : i32
    return %arg0, %arg1, %c0_i32 : i32, i32, i32
  }
}

module attributes {stable_mosaic.version = 11 : i64} {
  func.func @_fused_gemm_kernel(%arg0: i32, %arg1: i32, %arg2: memref<1x8x64xbf16, #tpu.memory_space<vmem>>, %arg3: memref<1x64x128xbf16, #tpu.memory_space<vmem>>, %arg4: memref<1x128xf32, #tpu.memory_space<vmem>>, %arg5: memref<1x8x128xbf16, #tpu.memory_space<vmem>>) attributes {dimension_semantics = [#tpu.dimension_semantics<parallel>, #tpu.dimension_semantics<parallel>], iteration_bounds = array<i64: 1, 1>, scalar_prefetch = 0 : i64, scratch_operands = 0 : i64, tpu.core_type = #tpu.core_type<tc>, window_params = [{transform_indices = @transform_0, window_bounds = array<i64: 1, 8, 64>}, {transform_indices = @transform_1, window_bounds = array<i64: 1, 64, 128>}, {pipeline_mode = #tpu.pipeline_mode<synchronous>, transform_indices = @transform_2, window_bounds = array<i64: 1, 128>}, {transform_indices = @transform_3, window_bounds = array<i64: 1, 8, 128>}]} {
    %c0 = arith.constant 0 : index
    %c0_0 = arith.constant 0 : index
    %c0_1 = arith.constant 0 : index
    %0 = vector.load %arg2[%c0, %c0_0, %c0_1] : memref<1x8x64xbf16, #tpu.memory_space<vmem>>, vector<1x8x64xbf16>
    %1 = vector.shape_cast %0 : vector<1x8x64xbf16> to vector<8x64xbf16>
    %2 = arith.extf %1 : vector<8x64xbf16> to vector<8x64xf32>
    %cst = arith.constant 0.000000e+00 : f32
    %3 = vector.broadcast %cst : f32 to vector<8x64xf32>
    %4 = arith.cmpf oge, %2, %3 : vector<8x64xf32>
    %cst_2 = arith.constant 2.000000e-01 : f32
    %5 = vector.broadcast %cst_2 : f32 to vector<8x64xf32>
    %6 = arith.mulf %2, %5 : vector<8x64xf32>
    %7 = arith.select %4, %2, %6 : vector<8x64xi1>, vector<8x64xf32>
    %8 = arith.truncf %7 : vector<8x64xf32> to vector<8x64xbf16>
    %c0_3 = arith.constant 0 : index
    %c0_4 = arith.constant 0 : index
    %c0_5 = arith.constant 0 : index
    %9 = vector.load %arg3[%c0_3, %c0_4, %c0_5] : memref<1x64x128xbf16, #tpu.memory_space<vmem>>, vector<1x64x128xbf16>
    %10 = vector.shape_cast %9 : vector<1x64x128xbf16> to vector<64x128xbf16>
    %cst_6 = arith.constant dense<0.000000e+00> : vector<8x128xf32>
    %11 = tpu.matmul %8, %10, %cst_6 {dimension_numbers = #tpu.dot_dimension_numbers<[1], [0], [0], [1], [0, 0, 1, 1], [], []>} : vector<8x64xbf16>, vector<64x128xbf16>, vector<8x128xf32> -> vector<8x128xf32>
    %c0_7 = arith.constant 0 : index
    %c0_8 = arith.constant 0 : index
    %12 = vector.load %arg4[%c0_7, %c0_8] : memref<1x128xf32, #tpu.memory_space<vmem>>, vector<1x128xf32>
    %13 = vector.broadcast %12 : vector<1x128xf32> to vector<8x128xf32>
    %14 = arith.addf %11, %13 : vector<8x128xf32>
    %cst_9 = arith.constant 0.000000e+00 : f32
    %15 = vector.broadcast %cst_9 : f32 to vector<8x128xf32>
    %16 = arith.maximumf %14, %15 : vector<8x128xf32>
    %17 = arith.truncf %16 : vector<8x128xf32> to vector<8x128xbf16>
    %c0_10 = arith.constant 0 : index
    %c0_11 = arith.constant 0 : index
    %c0_12 = arith.constant 0 : index
    %18 = vector.load %arg5[%c0_10, %c0_11, %c0_12] : memref<1x8x128xbf16, #tpu.memory_space<vmem>>, vector<1x8x128xbf16>
    %19 = vector.shape_cast %18 : vector<1x8x128xbf16> to vector<8x128xbf16>
    %20 = vector.shape_cast %17 : vector<8x128xbf16> to vector<1x8x128xbf16>
    tpu.vector_store %arg5[%c0_10, %c0_11, %c0_12], %20 {strides = array<i32>} : memref<1x8x128xbf16, #tpu.memory_space<vmem>>, vector<1x8x128xbf16>,
    return
  }
  func.func @transform_0(%arg0: i32, %arg1: i32) -> (i32, i32, i32) {
    %c0_i32 = arith.constant 0 : i32
    %c0_i32_0 = arith.constant 0 : i32
    return %arg0, %arg1, %c0_i32 : i32, i32, i32
  }
  func.func @transform_1(%arg0: i32, %arg1: i32) -> (i32, i32, i32) {
    %c0_i32 = arith.constant 0 : i32
    %c0_i32_0 = arith.constant 0 : i32
    %c0_i32_1 = arith.constant 0 : i32
    return %arg0, %c0_i32, %c0_i32_0 : i32, i32, i32
  }
  func.func @transform_2(%arg0: i32, %arg1: i32) -> (i32, i32) {
    %c0_i32 = arith.constant 0 : i32
    %c0_i32_0 = arith.constant 0 : i32
    %c0_i32_1 = arith.constant 0 : i32
    return %c0_i32, %c0_i32_0 : i32, i32
  }
  func.func @transform_3(%arg0: i32, %arg1: i32) -> (i32, i32, i32) {
    %c0_i32 = arith.constant 0 : i32
    %c0_i32_0 = arith.constant 0 : i32
    return %arg0, %arg1, %c0_i32 : i32, i32, i32
  }
}

module attributes {stable_mosaic.version = 11 : i64} {
  func.func @_fused_gemm_kernel(%arg0: i32, %arg1: i32, %arg2: memref<1x8x576xbf16, #tpu.memory_space<vmem>>, %arg3: memref<1x576x128xbf16, #tpu.memory_space<vmem>>, %arg4: memref<1x128xf32, #tpu.memory_space<vmem>>, %arg5: memref<1x8x128xbf16, #tpu.memory_space<vmem>>) attributes {dimension_semantics = [#tpu.dimension_semantics<parallel>, #tpu.dimension_semantics<parallel>], iteration_bounds = array<i64: 1, 1>, scalar_prefetch = 0 : i64, scratch_operands = 0 : i64, tpu.core_type = #tpu.core_type<tc>, window_params = [{transform_indices = @transform_0, window_bounds = array<i64: 1, 8, 576>}, {transform_indices = @transform_1, window_bounds = array<i64: 1, 576, 128>}, {pipeline_mode = #tpu.pipeline_mode<synchronous>, transform_indices = @transform_2, window_bounds = array<i64: 1, 128>}, {transform_indices = @transform_3, window_bounds = array<i64: 1, 8, 128>}]} {
    %c0 = arith.constant 0 : index
    %c0_0 = arith.constant 0 : index
    %c0_1 = arith.constant 0 : index
    %0 = vector.load %arg2[%c0, %c0_0, %c0_1] : memref<1x8x576xbf16, #tpu.memory_space<vmem>>, vector<1x8x576xbf16>
    %1 = vector.shape_cast %0 : vector<1x8x576xbf16> to vector<8x576xbf16>
    %2 = arith.extf %1 : vector<8x576xbf16> to vector<8x576xf32>
    %cst = arith.constant 0.000000e+00 : f32
    %3 = vector.broadcast %cst : f32 to vector<8x576xf32>
    %4 = arith.cmpf oge, %2, %3 : vector<8x576xf32>
    %cst_2 = arith.constant 2.000000e-01 : f32
    %5 = vector.broadcast %cst_2 : f32 to vector<8x576xf32>
    %6 = arith.mulf %2, %5 : vector<8x576xf32>
    %7 = arith.select %4, %2, %6 : vector<8x576xi1>, vector<8x576xf32>
    %8 = arith.truncf %7 : vector<8x576xf32> to vector<8x576xbf16>
    %c0_3 = arith.constant 0 : index
    %c0_4 = arith.constant 0 : index
    %c0_5 = arith.constant 0 : index
    %9 = vector.load %arg3[%c0_3, %c0_4, %c0_5] : memref<1x576x128xbf16, #tpu.memory_space<vmem>>, vector<1x576x128xbf16>
    %10 = vector.shape_cast %9 : vector<1x576x128xbf16> to vector<576x128xbf16>
    %cst_6 = arith.constant dense<0.000000e+00> : vector<8x128xf32>
    %11 = tpu.matmul %8, %10, %cst_6 {dimension_numbers = #tpu.dot_dimension_numbers<[1], [0], [0], [1], [0, 0, 1, 1], [], []>} : vector<8x576xbf16>, vector<576x128xbf16>, vector<8x128xf32> -> vector<8x128xf32>
    %c0_7 = arith.constant 0 : index
    %c0_8 = arith.constant 0 : index
    %12 = vector.load %arg4[%c0_7, %c0_8] : memref<1x128xf32, #tpu.memory_space<vmem>>, vector<1x128xf32>
    %13 = vector.broadcast %12 : vector<1x128xf32> to vector<8x128xf32>
    %14 = arith.addf %11, %13 : vector<8x128xf32>
    %15 = arith.truncf %14 : vector<8x128xf32> to vector<8x128xbf16>
    %c0_9 = arith.constant 0 : index
    %c0_10 = arith.constant 0 : index
    %c0_11 = arith.constant 0 : index
    %16 = vector.load %arg5[%c0_9, %c0_10, %c0_11] : memref<1x8x128xbf16, #tpu.memory_space<vmem>>, vector<1x8x128xbf16>
    %17 = vector.shape_cast %16 : vector<1x8x128xbf16> to vector<8x128xbf16>
    %18 = vector.shape_cast %15 : vector<8x128xbf16> to vector<1x8x128xbf16>
    tpu.vector_store %arg5[%c0_9, %c0_10, %c0_11], %18 {strides = array<i32>} : memref<1x8x128xbf16, #tpu.memory_space<vmem>>, vector<1x8x128xbf16>,
    return
  }
  func.func @transform_0(%arg0: i32, %arg1: i32) -> (i32, i32, i32) {
    %c0_i32 = arith.constant 0 : i32
    %c0_i32_0 = arith.constant 0 : i32
    return %arg0, %arg1, %c0_i32 : i32, i32, i32
  }
  func.func @transform_1(%arg0: i32, %arg1: i32) -> (i32, i32, i32) {
    %c0_i32 = arith.constant 0 : i32
    %c0_i32_0 = arith.constant 0 : i32
    %c0_i32_1 = arith.constant 0 : i32
    return %arg0, %c0_i32, %c0_i32_0 : i32, i32, i32
  }
  func.func @transform_2(%arg0: i32, %arg1: i32) -> (i32, i32) {
    %c0_i32 = arith.constant 0 : i32
    %c0_i32_0 = arith.constant 0 : i32
    %c0_i32_1 = arith.constant 0 : i32
    return %c0_i32, %c0_i32_0 : i32, i32
  }
  func.func @transform_3(%arg0: i32, %arg1: i32) -> (i32, i32, i32) {
    %c0_i32 = arith.constant 0 : i32
    %c0_i32_0 = arith.constant 0 : i32
    return %arg0, %arg1, %c0_i32 : i32, i32, i32
  }
}

module attributes {stable_mosaic.version = 11 : i64} {
  func.func @_fused_gemm_kernel(%arg0: i32, %arg1: i32, %arg2: memref<1x8x512xbf16, #tpu.memory_space<vmem>>, %arg3: memref<1x512x128xbf16, #tpu.memory_space<vmem>>, %arg4: memref<1x128xf32, #tpu.memory_space<vmem>>, %arg5: memref<1x8x128xbf16, #tpu.memory_space<vmem>>) attributes {dimension_semantics = [#tpu.dimension_semantics<parallel>, #tpu.dimension_semantics<parallel>], iteration_bounds = array<i64: 4, 1>, scalar_prefetch = 0 : i64, scratch_operands = 0 : i64, tpu.core_type = #tpu.core_type<tc>, window_params = [{transform_indices = @transform_0, window_bounds = array<i64: 1, 8, 512>}, {transform_indices = @transform_1, window_bounds = array<i64: 1, 512, 128>}, {pipeline_mode = #tpu.pipeline_mode<synchronous>, transform_indices = @transform_2, window_bounds = array<i64: 1, 128>}, {transform_indices = @transform_3, window_bounds = array<i64: 1, 8, 128>}]} {
    %c0 = arith.constant 0 : index
    %c0_0 = arith.constant 0 : index
    %c0_1 = arith.constant 0 : index
    %0 = vector.load %arg2[%c0, %c0_0, %c0_1] : memref<1x8x512xbf16, #tpu.memory_space<vmem>>, vector<1x8x512xbf16>
    %1 = vector.shape_cast %0 : vector<1x8x512xbf16> to vector<8x512xbf16>
    %2 = arith.extf %1 : vector<8x512xbf16> to vector<8x512xf32>
    %cst = arith.constant 0.000000e+00 : f32
    %3 = vector.broadcast %cst : f32 to vector<8x512xf32>
    %4 = arith.maximumf %2, %3 : vector<8x512xf32>
    %5 = arith.truncf %4 : vector<8x512xf32> to vector<8x512xbf16>
    %c0_2 = arith.constant 0 : index
    %c0_3 = arith.constant 0 : index
    %c0_4 = arith.constant 0 : index
    %6 = vector.load %arg3[%c0_2, %c0_3, %c0_4] : memref<1x512x128xbf16, #tpu.memory_space<vmem>>, vector<1x512x128xbf16>
    %7 = vector.shape_cast %6 : vector<1x512x128xbf16> to vector<512x128xbf16>
    %cst_5 = arith.constant dense<0.000000e+00> : vector<8x128xf32>
    %8 = tpu.matmul %5, %7, %cst_5 {dimension_numbers = #tpu.dot_dimension_numbers<[1], [0], [0], [1], [0, 0, 1, 1], [], []>} : vector<8x512xbf16>, vector<512x128xbf16>, vector<8x128xf32> -> vector<8x128xf32>
    %c0_6 = arith.constant 0 : index
    %c0_7 = arith.constant 0 : index
    %9 = vector.load %arg4[%c0_6, %c0_7] : memref<1x128xf32, #tpu.memory_space<vmem>>, vector<1x128xf32>
    %10 = vector.broadcast %9 : vector<1x128xf32> to vector<8x128xf32>
    %11 = arith.addf %8, %10 : vector<8x128xf32>
    %12 = arith.truncf %11 : vector<8x128xf32> to vector<8x128xbf16>
    %c0_8 = arith.constant 0 : index
    %c0_9 = arith.constant 0 : index
    %c0_10 = arith.constant 0 : index
    %13 = vector.load %arg5[%c0_8, %c0_9, %c0_10] : memref<1x8x128xbf16, #tpu.memory_space<vmem>>, vector<1x8x128xbf16>
    %14 = vector.shape_cast %13 : vector<1x8x128xbf16> to vector<8x128xbf16>
    %15 = vector.shape_cast %12 : vector<8x128xbf16> to vector<1x8x128xbf16>
    tpu.vector_store %arg5[%c0_8, %c0_9, %c0_10], %15 {strides = array<i32>} : memref<1x8x128xbf16, #tpu.memory_space<vmem>>, vector<1x8x128xbf16>,
    return
  }
  func.func @transform_0(%arg0: i32, %arg1: i32) -> (i32, i32, i32) {
    %c0_i32 = arith.constant 0 : i32
    %c0_i32_0 = arith.constant 0 : i32
    return %arg0, %arg1, %c0_i32 : i32, i32, i32
  }
  func.func @transform_1(%arg0: i32, %arg1: i32) -> (i32, i32, i32) {
    %c0_i32 = arith.constant 0 : i32
    %c0_i32_0 = arith.constant 0 : i32
    %c0_i32_1 = arith.constant 0 : i32
    return %arg0, %c0_i32, %c0_i32_0 : i32, i32, i32
  }
  func.func @transform_2(%arg0: i32, %arg1: i32) -> (i32, i32) {
    %c0_i32 = arith.constant 0 : i32
    %c0_i32_0 = arith.constant 0 : i32
    %c0_i32_1 = arith.constant 0 : i32
    return %c0_i32, %c0_i32_0 : i32, i32
  }
  func.func @transform_3(%arg0: i32, %arg1: i32) -> (i32, i32, i32) {
    %c0_i32 = arith.constant 0 : i32
    %c0_i32_0 = arith.constant 0 : i32
    return %arg0, %arg1, %c0_i32 : i32, i32, i32
  }
}

module attributes {stable_mosaic.version = 11 : i64} {
  func.func @_fused_gemm_kernel(%arg0: i32, %arg1: i32, %arg2: memref<1x32x512xbf16, #tpu.memory_space<vmem>>, %arg3: memref<1x512x128xbf16, #tpu.memory_space<vmem>>, %arg4: memref<1x128xf32, #tpu.memory_space<vmem>>, %arg5: memref<1x32x128xbf16, #tpu.memory_space<vmem>>) attributes {dimension_semantics = [#tpu.dimension_semantics<parallel>, #tpu.dimension_semantics<parallel>], iteration_bounds = array<i64: 4, 1>, scalar_prefetch = 0 : i64, scratch_operands = 0 : i64, tpu.core_type = #tpu.core_type<tc>, window_params = [{transform_indices = @transform_0, window_bounds = array<i64: 1, 32, 512>}, {transform_indices = @transform_1, window_bounds = array<i64: 1, 512, 128>}, {pipeline_mode = #tpu.pipeline_mode<synchronous>, transform_indices = @transform_2, window_bounds = array<i64: 1, 128>}, {transform_indices = @transform_3, window_bounds = array<i64: 1, 32, 128>}]} {
    %c0 = arith.constant 0 : index
    %c0_0 = arith.constant 0 : index
    %c0_1 = arith.constant 0 : index
    %0 = vector.load %arg2[%c0, %c0_0, %c0_1] : memref<1x32x512xbf16, #tpu.memory_space<vmem>>, vector<1x32x512xbf16>
    %1 = vector.shape_cast %0 : vector<1x32x512xbf16> to vector<32x512xbf16>
    %2 = arith.extf %1 : vector<32x512xbf16> to vector<32x512xf32>
    %cst = arith.constant 0.000000e+00 : f32
    %3 = vector.broadcast %cst : f32 to vector<32x512xf32>
    %4 = arith.maximumf %2, %3 : vector<32x512xf32>
    %5 = arith.truncf %4 : vector<32x512xf32> to vector<32x512xbf16>
    %c0_2 = arith.constant 0 : index
    %c0_3 = arith.constant 0 : index
    %c0_4 = arith.constant 0 : index
    %6 = vector.load %arg3[%c0_2, %c0_3, %c0_4] : memref<1x512x128xbf16, #tpu.memory_space<vmem>>, vector<1x512x128xbf16>
    %7 = vector.shape_cast %6 : vector<1x512x128xbf16> to vector<512x128xbf16>
    %cst_5 = arith.constant dense<0.000000e+00> : vector<32x128xf32>
    %8 = tpu.matmul %5, %7, %cst_5 {dimension_numbers = #tpu.dot_dimension_numbers<[1], [0], [0], [1], [0, 0, 1, 1], [], []>} : vector<32x512xbf16>, vector<512x128xbf16>, vector<32x128xf32> -> vector<32x128xf32>
    %c0_6 = arith.constant 0 : index
    %c0_7 = arith.constant 0 : index
    %9 = vector.load %arg4[%c0_6, %c0_7] : memref<1x128xf32, #tpu.memory_space<vmem>>, vector<1x128xf32>
    %10 = vector.broadcast %9 : vector<1x128xf32> to vector<32x128xf32>
    %11 = arith.addf %8, %10 : vector<32x128xf32>
    %12 = arith.truncf %11 : vector<32x128xf32> to vector<32x128xbf16>
    %c0_8 = arith.constant 0 : index
    %c0_9 = arith.constant 0 : index
    %c0_10 = arith.constant 0 : index
    %13 = vector.load %arg5[%c0_8, %c0_9, %c0_10] : memref<1x32x128xbf16, #tpu.memory_space<vmem>>, vector<1x32x128xbf16>
    %14 = vector.shape_cast %13 : vector<1x32x128xbf16> to vector<32x128xbf16>
    %15 = vector.shape_cast %12 : vector<32x128xbf16> to vector<1x32x128xbf16>
    tpu.vector_store %arg5[%c0_8, %c0_9, %c0_10], %15 {strides = array<i32>} : memref<1x32x128xbf16, #tpu.memory_space<vmem>>, vector<1x32x128xbf16>,
    return
  }
  func.func @transform_0(%arg0: i32, %arg1: i32) -> (i32, i32, i32) {
    %c0_i32 = arith.constant 0 : i32
    %c0_i32_0 = arith.constant 0 : i32
    return %arg0, %arg1, %c0_i32 : i32, i32, i32
  }
  func.func @transform_1(%arg0: i32, %arg1: i32) -> (i32, i32, i32) {
    %c0_i32 = arith.constant 0 : i32
    %c0_i32_0 = arith.constant 0 : i32
    %c0_i32_1 = arith.constant 0 : i32
    return %arg0, %c0_i32, %c0_i32_0 : i32, i32, i32
  }
  func.func @transform_2(%arg0: i32, %arg1: i32) -> (i32, i32) {
    %c0_i32 = arith.constant 0 : i32
    %c0_i32_0 = arith.constant 0 : i32
    %c0_i32_1 = arith.constant 0 : i32
    return %c0_i32, %c0_i32_0 : i32, i32
  }
  func.func @transform_3(%arg0: i32, %arg1: i32) -> (i32, i32, i32) {
    %c0_i32 = arith.constant 0 : i32
    %c0_i32_0 = arith.constant 0 : i32
    return %arg0, %arg1, %c0_i32 : i32, i32, i32
  }
}

module attributes {stable_mosaic.version = 11 : i64} {
  func.func @_fused_gemm_kernel(%arg0: i32, %arg1: i32, %arg2: memref<1x128x256xbf16, #tpu.memory_space<vmem>>, %arg3: memref<1x256x128xbf16, #tpu.memory_space<vmem>>, %arg4: memref<1x128xf32, #tpu.memory_space<vmem>>, %arg5: memref<1x128x128xbf16, #tpu.memory_space<vmem>>) attributes {dimension_semantics = [#tpu.dimension_semantics<parallel>, #tpu.dimension_semantics<parallel>], iteration_bounds = array<i64: 4, 1>, scalar_prefetch = 0 : i64, scratch_operands = 0 : i64, tpu.core_type = #tpu.core_type<tc>, window_params = [{transform_indices = @transform_0, window_bounds = array<i64: 1, 128, 256>}, {transform_indices = @transform_1, window_bounds = array<i64: 1, 256, 128>}, {pipeline_mode = #tpu.pipeline_mode<synchronous>, transform_indices = @transform_2, window_bounds = array<i64: 1, 128>}, {transform_indices = @transform_3, window_bounds = array<i64: 1, 128, 128>}]} {
    %c0 = arith.constant 0 : index
    %c0_0 = arith.constant 0 : index
    %c0_1 = arith.constant 0 : index
    %0 = vector.load %arg2[%c0, %c0_0, %c0_1] : memref<1x128x256xbf16, #tpu.memory_space<vmem>>, vector<1x128x256xbf16>
    %1 = vector.shape_cast %0 : vector<1x128x256xbf16> to vector<128x256xbf16>
    %2 = arith.extf %1 : vector<128x256xbf16> to vector<128x256xf32>
    %cst = arith.constant 0.000000e+00 : f32
    %3 = vector.broadcast %cst : f32 to vector<128x256xf32>
    %4 = arith.maximumf %2, %3 : vector<128x256xf32>
    %5 = arith.truncf %4 : vector<128x256xf32> to vector<128x256xbf16>
    %c0_2 = arith.constant 0 : index
    %c0_3 = arith.constant 0 : index
    %c0_4 = arith.constant 0 : index
    %6 = vector.load %arg3[%c0_2, %c0_3, %c0_4] : memref<1x256x128xbf16, #tpu.memory_space<vmem>>, vector<1x256x128xbf16>
    %7 = vector.shape_cast %6 : vector<1x256x128xbf16> to vector<256x128xbf16>
    %cst_5 = arith.constant dense<0.000000e+00> : vector<128x128xf32>
    %8 = tpu.matmul %5, %7, %cst_5 {dimension_numbers = #tpu.dot_dimension_numbers<[1], [0], [0], [1], [0, 0, 1, 1], [], []>} : vector<128x256xbf16>, vector<256x128xbf16>, vector<128x128xf32> -> vector<128x128xf32>
    %c0_6 = arith.constant 0 : index
    %c0_7 = arith.constant 0 : index
    %9 = vector.load %arg4[%c0_6, %c0_7] : memref<1x128xf32, #tpu.memory_space<vmem>>, vector<1x128xf32>
    %10 = vector.broadcast %9 : vector<1x128xf32> to vector<128x128xf32>
    %11 = arith.addf %8, %10 : vector<128x128xf32>
    %12 = arith.truncf %11 : vector<128x128xf32> to vector<128x128xbf16>
    %c0_8 = arith.constant 0 : index
    %c0_9 = arith.constant 0 : index
    %c0_10 = arith.constant 0 : index
    %13 = vector.load %arg5[%c0_8, %c0_9, %c0_10] : memref<1x128x128xbf16, #tpu.memory_space<vmem>>, vector<1x128x128xbf16>
    %14 = vector.shape_cast %13 : vector<1x128x128xbf16> to vector<128x128xbf16>
    %15 = vector.shape_cast %12 : vector<128x128xbf16> to vector<1x128x128xbf16>
    tpu.vector_store %arg5[%c0_8, %c0_9, %c0_10], %15 {strides = array<i32>} : memref<1x128x128xbf16, #tpu.memory_space<vmem>>, vector<1x128x128xbf16>,
    return
  }
  func.func @transform_0(%arg0: i32, %arg1: i32) -> (i32, i32, i32) {
    %c0_i32 = arith.constant 0 : i32
    %c0_i32_0 = arith.constant 0 : i32
    return %arg0, %arg1, %c0_i32 : i32, i32, i32
  }
  func.func @transform_1(%arg0: i32, %arg1: i32) -> (i32, i32, i32) {
    %c0_i32 = arith.constant 0 : i32
    %c0_i32_0 = arith.constant 0 : i32
    %c0_i32_1 = arith.constant 0 : i32
    return %arg0, %c0_i32, %c0_i32_0 : i32, i32, i32
  }
  func.func @transform_2(%arg0: i32, %arg1: i32) -> (i32, i32) {
    %c0_i32 = arith.constant 0 : i32
    %c0_i32_0 = arith.constant 0 : i32
    %c0_i32_1 = arith.constant 0 : i32
    return %c0_i32, %c0_i32_0 : i32, i32
  }
  func.func @transform_3(%arg0: i32, %arg1: i32) -> (i32, i32, i32) {
    %c0_i32 = arith.constant 0 : i32
    %c0_i32_0 = arith.constant 0 : i32
    return %arg0, %arg1, %c0_i32 : i32, i32, i32
  }
}

module attributes {stable_mosaic.version = 11 : i64} {
  func.func @_fused_gemm_kernel(%arg0: i32, %arg1: i32, %arg2: memref<1x256x128xbf16, #tpu.memory_space<vmem>>, %arg3: memref<1x128x128xbf16, #tpu.memory_space<vmem>>, %arg4: memref<1x128xf32, #tpu.memory_space<vmem>>, %arg5: memref<1x256x128xf32, #tpu.memory_space<vmem>>) attributes {dimension_semantics = [#tpu.dimension_semantics<parallel>, #tpu.dimension_semantics<parallel>], iteration_bounds = array<i64: 4, 2>, scalar_prefetch = 0 : i64, scratch_operands = 0 : i64, tpu.core_type = #tpu.core_type<tc>, window_params = [{transform_indices = @transform_0, window_bounds = array<i64: 1, 256, 128>}, {transform_indices = @transform_1, window_bounds = array<i64: 1, 128, 128>}, {pipeline_mode = #tpu.pipeline_mode<synchronous>, transform_indices = @transform_2, window_bounds = array<i64: 1, 128>}, {transform_indices = @transform_3, window_bounds = array<i64: 1, 256, 128>}]} {
    %c0 = arith.constant 0 : index
    %c0_0 = arith.constant 0 : index
    %c0_1 = arith.constant 0 : index
    %0 = vector.load %arg2[%c0, %c0_0, %c0_1] : memref<1x256x128xbf16, #tpu.memory_space<vmem>>, vector<1x256x128xbf16>
    %1 = vector.shape_cast %0 : vector<1x256x128xbf16> to vector<256x128xbf16>
    %2 = arith.extf %1 : vector<256x128xbf16> to vector<256x128xf32>
    %cst = arith.constant 0.000000e+00 : f32
    %3 = vector.broadcast %cst : f32 to vector<256x128xf32>
    %4 = arith.maximumf %2, %3 : vector<256x128xf32>
    %5 = arith.truncf %4 : vector<256x128xf32> to vector<256x128xbf16>
    %c0_2 = arith.constant 0 : index
    %c0_3 = arith.constant 0 : index
    %c0_4 = arith.constant 0 : index
    %6 = vector.load %arg3[%c0_2, %c0_3, %c0_4] : memref<1x128x128xbf16, #tpu.memory_space<vmem>>, vector<1x128x128xbf16>
    %7 = vector.shape_cast %6 : vector<1x128x128xbf16> to vector<128x128xbf16>
    %cst_5 = arith.constant dense<0.000000e+00> : vector<256x128xf32>
    %8 = tpu.matmul %5, %7, %cst_5 {dimension_numbers = #tpu.dot_dimension_numbers<[1], [0], [0], [1], [0, 0, 1, 1], [], []>} : vector<256x128xbf16>, vector<128x128xbf16>, vector<256x128xf32> -> vector<256x128xf32>
    %c0_6 = arith.constant 0 : index
    %c0_7 = arith.constant 0 : index
    %9 = vector.load %arg4[%c0_6, %c0_7] : memref<1x128xf32, #tpu.memory_space<vmem>>, vector<1x128xf32>
    %10 = vector.broadcast %9 : vector<1x128xf32> to vector<256x128xf32>
    %11 = arith.addf %8, %10 : vector<256x128xf32>
    %cst_8 = arith.constant 0.000000e+00 : f32
    %12 = vector.broadcast %cst_8 : f32 to vector<256x128xf32>
    %13 = arith.subf %12, %11 : vector<256x128xf32>
    %14 = math.exp %13 : vector<256x128xf32>
    %cst_9 = arith.constant 1.000000e+00 : f32
    %15 = vector.broadcast %cst_9 : f32 to vector<256x128xf32>
    %16 = arith.addf %15, %14 : vector<256x128xf32>
    %17 = tpu.reciprocal %16 {approx = true} : vector<256x128xf32> -> vector<256x128xf32>
    %c0_10 = arith.constant 0 : index
    %c0_11 = arith.constant 0 : index
    %c0_12 = arith.constant 0 : index
    %18 = vector.load %arg5[%c0_10, %c0_11, %c0_12] : memref<1x256x128xf32, #tpu.memory_space<vmem>>, vector<1x256x128xf32>
    %19 = vector.shape_cast %18 : vector<1x256x128xf32> to vector<256x128xf32>
    %20 = vector.shape_cast %17 : vector<256x128xf32> to vector<1x256x128xf32>
    tpu.vector_store %arg5[%c0_10, %c0_11, %c0_12], %20 {strides = array<i32>} : memref<1x256x128xf32, #tpu.memory_space<vmem>>, vector<1x256x128xf32>,
    return
  }
  func.func @transform_0(%arg0: i32, %arg1: i32) -> (i32, i32, i32) {
    %c0_i32 = arith.constant 0 : i32
    %c0_i32_0 = arith.constant 0 : i32
    return %arg0, %arg1, %c0_i32 : i32, i32, i32
  }
  func.func @transform_1(%arg0: i32, %arg1: i32) -> (i32, i32, i32) {
    %c0_i32 = arith.constant 0 : i32
    %c0_i32_0 = arith.constant 0 : i32
    %c0_i32_1 = arith.constant 0 : i32
    return %arg0, %c0_i32, %c0_i32_0 : i32, i32, i32
  }
  func.func @transform_2(%arg0: i32, %arg1: i32) -> (i32, i32) {
    %c0_i32 = arith.constant 0 : i32
    %c0_i32_0 = arith.constant 0 : i32
    %c0_i32_1 = arith.constant 0 : i32
    return %c0_i32, %c0_i32_0 : i32, i32
  }
  func.func @transform_3(%arg0: i32, %arg1: i32) -> (i32, i32, i32) {
    %c0_i32 = arith.constant 0 : i32
    %c0_i32_0 = arith.constant 0 : i32
    return %arg0, %arg1, %c0_i32 : i32, i32, i32
  }
}

</mosaic_0001>

<llo_original>
// kernel: _lambda_.9
$region0: #{_lambda_.9}
  #allocation0 [shape = 'u32[]', space=smem, size = 0x4, offset = 0x4, fixed_abs, tag = 'smem constant byte address 0x4 - core index']
  #allocation1 [shape = 'u32[144,128]{1,0:T(1,128)}', space=vmem, size = 0x12000, scoped, tag = 'internal scratch']
  %s0 = inlined_call_operand.vmem [shape: bf16[1,512,27], index: 0, kind: input, shape index: {}]
  %s1 = inlined_call_operand.vmem [shape: bf16[1,27,128], index: 1, kind: input, shape index: {}]
  %s2 = inlined_call_operand.vmem [shape: f32[1,128], index: 2, kind: input, shape index: {}]
  %s3 = inlined_call_operand.vmem [shape: bf16[1,512,128], index: 3, kind: output, shape index: {}]
  %s4 = sld [smem:[#allocation0]]
  $region45: #{_lambda_.9} parent=0
    _
  %s6 = ssub.s32 1, %s4
  %s7 = scalar_select 0, %s6, %s4
  loop: start=0, step=1, limit=4
  $region2: #{_lambda_.9} parent=0 // loop_pre_header
    _
  $region3: #{_lambda_.9} parent=0 // loop_header
    %s9 = sphi 0, %s13
    %p10 = scmp.ge.s32.totalorder %s9, 4
    %s16 = sphi 0, %s28
    %s17 = sphi 0, %s24
    %s18 = sphi 0, %s16
    %s19 = sphi 0, %s17
    %s20 = sphi 0, %s18
    %s21 = sphi 0, %s19
    %s33 = sphi 0, %s35
    %s36 = sphi 0, %s33
    %s37 = sphi 0, %s36
    %s53 = sphi 0, %s37
    %s59 = sphi 0, %s61
    %s62 = sphi 0, %s59
    %s63 = sphi 0, %s62
    %s79 = sphi 0, %s63
    %s83 = sphi 0, %s83
    %s85 = sphi 0, %s83
    %s86 = sphi 0, %s85
    %s100 = sphi 0, %s86
    %s108 = sphi 0, %s110
    %s111 = sphi 0, %s108
    %s112 = sphi 0, %s111
    %s128 = sphi 0, %s112
  $region4: #{_lambda_.9} parent=0 // loop_header_branch
    %12 = sbr.rel (%p10) target = $region8
  $region5: #{_lambda_.9} parent=0 // loop_body
    %s14 = ssub.s32 %s9, 1
    %s15 = ssub.s32 %s9, 2
    %s22 = sadd.s32 1, %s17
    %p23 = scmp.ge.s32.totalorder %s22, 2
    %s24 = scalar_select %p23, 0, %s22
    %s25 = sadd.s32 1, %s16
    %s26 = scalar_select %p23, %s25, %s16
    %p27 = scmp.ge.s32.totalorder %s26, 1
    %s28 = scalar_select %p27, 0, %s26
    %s29 = ssub.s32 %s16, %s28
    %s30 = ssub.s32 %s17, %s24
    %s31 = sor.u32 %s29, %s30
    %p32 = scmp.eq.s32.totalorder %s31, 0
    %s34 = sadd.s32 %s33, 1
    %s35 = scalar_select %p32, %s33, %s34
    %p38 = pneg %p32
    %p39 = scmp.eq.s32.totalorder %s9, 1
    %p40 = por %p38, %p39
    %p41 = scmp.ne.s32.totalorder %s33, %s36
    %p42 = scmp.eq.s32.totalorder %s9, 0
    %p43 = por %p41, %p42
    %p44 = scmp.ne.s32.totalorder %s33, %s36
    %p45 = scmp.eq.s32.totalorder %s14, 1
    %p46 = por %p44, %p45
    %p47 = scmp.ne.s32.totalorder %s36, %s37
    %p48 = scmp.eq.s32.totalorder %s14, 0
    %p49 = por %p47, %p48
    %p50 = scmp.ne.s32.totalorder %s36, %s37
    %p51 = scmp.eq.s32.totalorder %s15, 1
    %p52 = por %p50, %p51
    %p54 = scmp.ne.s32.totalorder %s37, %s53
    %p55 = scmp.eq.s32.totalorder %s15, 0
    %p56 = por %p54, %p55
    %s57 = ssub.s32 %s16, %s28
    %p58 = scmp.eq.s32.totalorder %s57, 0
    %s60 = sadd.s32 %s59, 1
    %s61 = scalar_select %p58, %s59, %s60
    %p64 = pneg %p58
    %p65 = scmp.eq.s32.totalorder %s9, 1
    %p66 = por %p64, %p65
    %p67 = scmp.ne.s32.totalorder %s59, %s62
    %p68 = scmp.eq.s32.totalorder %s9, 0
    %p69 = por %p67, %p68
    %p70 = scmp.ne.s32.totalorder %s59, %s62
    %p71 = scmp.eq.s32.totalorder %s14, 1
    %p72 = por %p70, %p71
    %p73 = scmp.ne.s32.totalorder %s62, %s63
    %p74 = scmp.eq.s32.totalorder %s14, 0
    %p75 = por %p73, %p74
    %p76 = scmp.ne.s32.totalorder %s62, %s63
    %p77 = scmp.eq.s32.totalorder %s15, 1
    %p78 = por %p76, %p77
    %p80 = scmp.ne.s32.totalorder %s63, %s79
    %p81 = scmp.eq.s32.totalorder %s15, 0
    %p82 = por %p80, %p81
    %s84 = sadd.s32 %s83, 1
    %p87 = scmp.eq.s32.totalorder %s9, 1
    %p88 = scmp.ne.s32.totalorder %s83, %s85
    %p89 = scmp.eq.s32.totalorder %s9, 0
    %p90 = por %p88, %p89
    %p91 = scmp.ne.s32.totalorder %s83, %s85
    %p92 = scmp.eq.s32.totalorder %s14, 1
    %p93 = por %p91, %p92
    %p94 = scmp.ne.s32.totalorder %s85, %s86
    %p95 = scmp.eq.s32.totalorder %s14, 0
    %p96 = por %p94, %p95
    %p97 = scmp.ne.s32.totalorder %s85, %s86
    %p98 = scmp.eq.s32.totalorder %s15, 1
    %p99 = por %p97, %p98
    %p101 = scmp.ne.s32.totalorder %s86, %s100
    %p102 = scmp.eq.s32.totalorder %s15, 0
    %p103 = por %p101, %p102
    %s104 = ssub.s32 %s16, %s28
    %s105 = ssub.s32 %s17, %s24
    %s106 = sor.u32 %s104, %s105
    %p107 = scmp.eq.s32.totalorder %s106, 0
    %s109 = sadd.s32 %s108, 1
    %s110 = scalar_select %p107, %s108, %s109
    %p113 = pneg %p107
    %p114 = scmp.eq.s32.totalorder %s9, 1
    %p115 = por %p113, %p114
    %p116 = scmp.ne.s32.totalorder %s108, %s111
    %p117 = scmp.eq.s32.totalorder %s9, 0
    %p118 = por %p116, %p117
    %p119 = scmp.ne.s32.totalorder %s108, %s111
    %p120 = scmp.eq.s32.totalorder %s14, 1
    %p121 = por %p119, %p120
    %p122 = scmp.ne.s32.totalorder %s111, %s112
    %p123 = scmp.eq.s32.totalorder %s14, 0
    %p124 = por %p122, %p123
    %p125 = scmp.ne.s32.totalorder %s111, %s112
    %p126 = scmp.eq.s32.totalorder %s15, 1
    %p127 = por %p125, %p126
    %p129 = scmp.ne.s32.totalorder %s112, %s128
    %p130 = scmp.eq.s32.totalorder %s15, 0
    %p131 = por %p129, %p130
    %p132 = scmp.le.s32.totalorder 1, %s9
    %p133 = scmp.lt.s32.totalorder %s9, 3
    %p134 = pnand %p132, %p133
    %p135 = pneg %p134
    // Predicated region
    $region9: #{_lambda_.9} parent=5 // pred_check
      _
    $region10: #{_lambda_.9} parent=5 // pred_check_branch
      %137 = sbr.rel (%p134) target = $region12
    $region11: #{_lambda_.9} parent=5 // pred_region
      %s138 = ssub.s32 %s9, 1
      // Predicated region
      $region13: #{_lambda_.9} parent=11 // pred_check
        %p139 = pneg %p75
      $region14: #{_lambda_.9} parent=11 // pred_check_branch
        %141 = sbr.rel (%p139) target = $region16
      $region15: #{_lambda_.9} parent=11 // pred_region
        %p142 = scmp.lt.s32.totalorder %s18, 0
        %s143 = scalar_select %p142, %s18, 0
        %s144 = smul.addr %s143, 4
        %s145 = smul.addr %s144, 4
        %s146 = scalar_lea.vmem %s1, %s145
      $region16: #{_lambda_.9} parent=11 // pred_fallthru
        _
      // Predicated region
      $region17: #{_lambda_.9} parent=11 // pred_check
        %p147 = pneg %p96
      $region18: #{_lambda_.9} parent=11 // pred_check_branch
        %149 = sbr.rel (%p147) target = $region20
      $region19: #{_lambda_.9} parent=11 // pred_region
        _
      $region20: #{_lambda_.9} parent=11 // pred_fallthru
        _
    $region12: #{_lambda_.9} parent=5 // pred_fallthru
      _
    %p150 = scmp.lt.s32.totalorder %s9, 2
    // Predicated region
    $region21: #{_lambda_.9} parent=5 // pred_check
      %p151 = pneg %p150
    $region22: #{_lambda_.9} parent=5 // pred_check_branch
      %153 = sbr.rel (%p151) target = $region24
    $region23: #{_lambda_.9} parent=5 // pred_region
      // Predicated region
      $region25: #{_lambda_.9} parent=23 // pred_check
        %p154 = pneg %p43
      $region26: #{_lambda_.9} parent=23 // pred_check_branch
        %156 = sbr.rel (%p154) target = $region28
      $region27: #{_lambda_.9} parent=23 // pred_region
        %s157 = smul.u32 32, %s17
        %p158 = scmp.lt.s32.totalorder %s16, 0
        %s159 = scalar_select %p158, %s16, 0
        %p160 = scmp.lt.s32.totalorder %s157, 63
        %s161 = scalar_select %p160, %s157, 63
        %s162 = smul.addr %s159, 64
        %s163 = sadd.s32 %s161, %s162
        %s164 = smul.addr %s163, 4
        %s165 = scalar_lea.vmem %s0, %s164
        %s166 = smul.u32 32, %s17
      $region28: #{_lambda_.9} parent=23 // pred_fallthru
        _
    $region24: #{_lambda_.9} parent=5 // pred_fallthru
      _
    %p167 = scmp.le.s32.totalorder 1, %s9
    %p168 = scmp.lt.s32.totalorder %s9, 3
    %p169 = pnand %p167, %p168
    %p170 = pneg %p169
    // Predicated region
    $region29: #{_lambda_.9} parent=5 // pred_check
      _
    $region30: #{_lambda_.9} parent=5 // pred_check_branch
      %172 = sbr.rel (%p169) target = $region32
    $region31: #{_lambda_.9} parent=5 // pred_region
      %s173 = ssub.s32 %s9, 1
      %s174 = smul.u32 32, %s19
      %p175 = scmp.lt.s32.totalorder %s18, 0
      %s176 = scalar_select %p175, %s18, 0
      %p177 = scmp.lt.s32.totalorder %s174, 63
      %s178 = scalar_select %p177, %s174, 63
      %s179 = smul.addr %s176, 64
      %s180 = sadd.s32 %s178, %s179
      %s181 = smul.addr %s180, 4
      %s182 = scalar_lea.vmem %s0, %s181
      %p183 = pneg %p49
      %p184 = pneg %p46
      %p185 = scmp.lt.s32.totalorder %s18, 0
      %s186 = scalar_select %p185, %s18, 0
      %s187 = smul.addr %s186, 4
      %s188 = smul.addr %s187, 4
      %s189 = scalar_lea.vmem %s1, %s188
      %p190 = pneg %p75
      %p191 = pneg %p72
      %p192 = pneg %p96
      %p193 = pneg %p93
      %p194 = pneg %p124
      %p195 = pneg %p121
      %s196 = smul.u32 32, %s19
      %p197 = scmp.lt.s32.totalorder %s18, 0
      %s198 = scalar_select %p197, %s18, 0
      %p199 = scmp.lt.s32.totalorder %s196, 63
      %s200 = scalar_select %p199, %s196, 63
      %s201 = smul.addr %s198, 64
      %s202 = sadd.s32 %s200, %s201
      %s203 = smul.addr %s202, 4
      %s204 = scalar_lea.vmem %s3, %s203
      %s205 = smul.u32 32, %s19
      %p206 = scmp.lt.s32.totalorder %s18, 0
      %s207 = scalar_select %p206, %s18, 0
      %p208 = scmp.lt.s32.totalorder %s205, 63
      %s209 = scalar_select %p208, %s205, 63
      %s210 = smul.addr %s207, 64
      %s211 = sadd.s32 %s209, %s210
      %s212 = smul.addr %s211, 4
      %s213 = scalar_lea.vmem %s0, %s212
      %s214 = smul.u32 32, %s19
      %p215 = scmp.lt.s32.totalorder %s18, 0
      %s216 = scalar_select %p215, %s18, 0
      %s217 = smul.addr %s216, 4
      %s218 = smul.addr %s217, 4
      %s219 = scalar_lea.vmem %s1, %s218
      %s220 = smul.u32 32, %s19
      %p221 = scmp.lt.s32.totalorder %s18, 0
      %s222 = scalar_select %p221, %s18, 0
      %p223 = scmp.lt.s32.totalorder %s220, 63
      %s224 = scalar_select %p223, %s220, 63
      %s225 = smul.addr %s222, 64
      %s226 = sadd.s32 %s224, %s225
      %s227 = smul.addr %s226, 4
      %s228 = scalar_lea.vmem %s3, %s227
      %s229 = smul.u32 32, %s19
      %v231 = vld [vmem:[%s213] sm:$0xf]
      %v232 = vld [vmem:[%s213 + $0x4] sm:$0xf]
      %v233 = vld [vmem:[%s213 + $0x8] sm:$0xf]
      %v234 = vld [vmem:[%s213 + $0xc] sm:$0xf]
      %v235 = vld [vmem:[%s213 + $0x10] sm:$0xf]
      %v236 = vld [vmem:[%s213 + $0x14] sm:$0xf]
      %v237 = vld [vmem:[%s213 + $0x18] sm:$0xf]
      %v238 = vld [vmem:[%s213 + $0x1c] sm:$0xf]
      %v239 = vld [vmem:[%s213 + $0x20] sm:$0xf]
      %v240 = vld [vmem:[%s213 + $0x24] sm:$0xf]
      %v241 = vld [vmem:[%s213 + $0x28] sm:$0xf]
      %v242 = vld [vmem:[%s213 + $0x2c] sm:$0xf]
      %v243 = vld [vmem:[%s213 + $0x30] sm:$0xf]
      %v244 = vld [vmem:[%s213 + $0x34] sm:$0xf]
      %v245 = vld [vmem:[%s213 + $0x38] sm:$0xf]
      %v246 = vld [vmem:[%s213 + $0x3c] sm:$0xf]
      %v247 = vld [vmem:[%s213 + $0x40] sm:$0xf]
      %v248 = vld [vmem:[%s213 + $0x44] sm:$0xf]
      %v249 = vld [vmem:[%s213 + $0x48] sm:$0xf]
      %v250 = vld [vmem:[%s213 + $0x4c] sm:$0xf]
      %v251 = vld [vmem:[%s213 + $0x50] sm:$0xf]
      %v252 = vld [vmem:[%s213 + $0x54] sm:$0xf]
      %v253 = vld [vmem:[%s213 + $0x58] sm:$0xf]
      %v254 = vld [vmem:[%s213 + $0x5c] sm:$0xf]
      %v255 = vld [vmem:[%s213 + $0x60] sm:$0xf]
      %v256 = vld [vmem:[%s213 + $0x64] sm:$0xf]
      %v257 = vld [vmem:[%s213 + $0x68] sm:$0xf]
      %v258 = vld [vmem:[%s213 + $0x6c] sm:$0xf]
      %v259 = vld [vmem:[%s213 + $0x70] sm:$0xf]
      %v260 = vld [vmem:[%s213 + $0x74] sm:$0xf]
      %v261 = vld [vmem:[%s213 + $0x78] sm:$0xf]
      %v262 = vld [vmem:[%s213 + $0x7c] sm:$0xf]
      %v263 = vld [vmem:[%s219] sm:$0xf]
      %v264 = vld [vmem:[%s219 + $0x4] sm:$0xf]
      %v265 = vld [vmem:[%s219 + $0x8] sm:$0xf]
      %v266 = vld [vmem:[%s219 + $0xc] sm:$0x3]
      %v267 = vld [vmem:[%s2] sm:$0x1]
      %v269 = vlaneseq
      %v270 = vshrl.u32 %v269, 7
      %v271 = vsub.s32 0, %v270
      %v272 = vrot.slane %v267, %v271
      %v306 = vunpack.c.l.b16 %v231
      %v307 = vunpack.c.l.b16 %v232
      %v308 = vunpack.c.l.b16 %v233
      %v309 = vunpack.c.l.b16 %v234
      %v310 = vunpack.c.l.b16 %v235
      %v311 = vunpack.c.l.b16 %v236
      %v312 = vunpack.c.l.b16 %v237
      %v313 = vunpack.c.l.b16 %v238
      %v314 = vunpack.c.l.b16 %v239
      %v315 = vunpack.c.l.b16 %v240
      %v316 = vunpack.c.l.b16 %v241
      %v317 = vunpack.c.l.b16 %v242
      %v318 = vunpack.c.l.b16 %v243
      %v319 = vunpack.c.l.b16 %v244
      %v320 = vunpack.c.l.b16 %v245
      %v321 = vunpack.c.l.b16 %v246
      %v322 = vunpack.c.l.b16 %v247
      %v323 = vunpack.c.l.b16 %v248
      %v324 = vunpack.c.l.b16 %v249
      %v325 = vunpack.c.l.b16 %v250
      %v326 = vunpack.c.l.b16 %v251
      %v327 = vunpack.c.l.b16 %v252
      %v328 = vunpack.c.l.b16 %v253
      %v329 = vunpack.c.l.b16 %v254
      %v330 = vunpack.c.l.b16 %v255
      %v331 = vunpack.c.l.b16 %v256
      %v332 = vunpack.c.l.b16 %v257
      %v333 = vunpack.c.l.b16 %v258
      %v334 = vunpack.c.l.b16 %v259
      %v335 = vunpack.c.l.b16 %v260
      %v336 = vunpack.c.l.b16 %v261
      %v337 = vunpack.c.l.b16 %v262
      %v338 = vpack.c.b16 %v307, %v306
      %v339 = vpack.c.b16 %v309, %v308
      %v340 = vpack.c.b16 %v311, %v310
      %v341 = vpack.c.b16 %v313, %v312
      %v342 = vpack.c.b16 %v315, %v314
      %v343 = vpack.c.b16 %v317, %v316
      %v344 = vpack.c.b16 %v319, %v318
      %v345 = vpack.c.b16 %v321, %v320
      %v346 = vpack.c.b16 %v323, %v322
      %v347 = vpack.c.b16 %v325, %v324
      %v348 = vpack.c.b16 %v327, %v326
      %v349 = vpack.c.b16 %v329, %v328
      %v350 = vpack.c.b16 %v331, %v330
      %v351 = vpack.c.b16 %v333, %v332
      %v352 = vpack.c.b16 %v335, %v334
      %v353 = vpack.c.b16 %v337, %v336
      %v358 = vunpack.c.l.b16 %v263
      %v359 = vunpack.c.l.b16 %v264
      %v360 = vunpack.c.l.b16 %v265
      %v361 = vunpack.c.l.b16 %v266
      %v362 = vpack.c.b16 %v359, %v358
      %v363 = vpack.c.b16 %v361, %v360
      %vm365 = vcmask 220160
      %v367 = vsel %vm365, %v338, 0
      %v370 = vsel %vm365, %v339, 0
      %v373 = vsel %vm365, %v340, 0
      %v376 = vsel %vm365, %v341, 0
      %v379 = vsel %vm365, %v342, 0
      %v382 = vsel %vm365, %v343, 0
      %v385 = vsel %vm365, %v344, 0
      %v388 = vsel %vm365, %v345, 0
      %v391 = vsel %vm365, %v346, 0
      %v394 = vsel %vm365, %v347, 0
      %v397 = vsel %vm365, %v348, 0
      %v400 = vsel %vm365, %v349, 0
      %v403 = vsel %vm365, %v350, 0
      %v406 = vsel %vm365, %v351, 0
      %v409 = vsel %vm365, %v352, 0
      %v412 = vsel %vm365, %v353, 0
      %vm414 = vcmask 1044480
      %vm415 = vcmask 1045504
      %v416 = vsel %vm414, 4294967295, 65535
      %v417 = vsel %vm415, %v416, 0
      %v419 = vand.u32 %v363, %v417
      %421 = vmatprep.subr.bf16.mxu0 0
      %422 = vmatpush1.bf16.msra.mxu0 0
      %423 = vmatprep.subr.bf16.mxu0 0
      %424 = vmatpush1.bf16.msra.mxu0 0
      %425 = vmatprep.subr.bf16.mxu0 0
      %426 = vmatpush1.bf16.msra.mxu0 0
      %427 = vmatprep.subr.bf16.mxu0 0
      %428 = vmatpush1.bf16.msra.mxu0 0
      %429 = vmatprep.subr.bf16.mxu0 0
      %430 = vmatpush1.bf16.msra.mxu0 0
      %431 = vmatprep.subr.bf16.mxu0 0
      %432 = vmatpush1.bf16.msra.mxu0 0
      %433 = vmatprep.subr.bf16.mxu0 0
      %434 = vmatpush1.bf16.msra.mxu0 %v419
      %435 = vmatprep.subr.bf16.mxu0 0
      %436 = vmatpush1.bf16.msra.mxu0 %v362
      %437 = vmatprep.subr.bf16.mxu0 0
      %438 = vmatpush2.bf16.msra.mxu0 0
      %439 = vmatprep.subr.bf16.mxu0 0
      %440 = vmatpush2.bf16.msra.mxu0 0
      %441 = vmatprep.subr.bf16.mxu0 0
      %442 = vmatpush2.bf16.msra.mxu0 0
      %443 = vmatprep.subr.bf16.mxu0 0
      %444 = vmatpush2.bf16.msra.mxu0 0
      %445 = vmatprep.subr.bf16.mxu0 0
      %446 = vmatpush2.bf16.msra.mxu0 0
      %447 = vmatprep.subr.bf16.mxu0 0
      %448 = vmatpush2.bf16.msra.mxu0 0
      %449 = vmatprep.subr.bf16.mxu0 0
      %450 = vmatpush2.bf16.msra.mxu0 0
      %451 = vmatprep.subr.bf16.mxu0 0
      %452 = vmatpush2.bf16.msra.mxu0 0
      %453 = vmatprep.mubr.bf16.mxu0 0
      %454 = vmatmul.mubr.bf16.gmra.mxu0 %v367
      %v455 = vpop.f32.mrf.mxu0
      %v456 = vadd.f32 %v272, %v455
      %v457 = vpop.f32.mrf.mxu0
      %v458 = vpop.f32.mrf.mxu0
      %v459 = vadd.f32 %v272, %v458
      %v460 = vpop.f32.mrf.mxu0
      %461 = vmatprep.mubr.bf16.mxu0 0
      %462 = vmatmul.mubr.bf16.gmra.mxu0 %v370
      %v463 = vpop.f32.mrf.mxu0
      %v464 = vadd.f32 %v272, %v463
      %v465 = vpop.f32.mrf.mxu0
      %v466 = vpop.f32.mrf.mxu0
      %v467 = vadd.f32 %v272, %v466
      %v468 = vpop.f32.mrf.mxu0
      %469 = vmatprep.mubr.bf16.mxu0 0
      %470 = vmatmul.mubr.bf16.gmra.mxu0 %v373
      %v471 = vpop.f32.mrf.mxu0
      %v472 = vadd.f32 %v272, %v471
      %v473 = vpop.f32.mrf.mxu0
      %v474 = vpop.f32.mrf.mxu0
      %v475 = vadd.f32 %v272, %v474
      %v476 = vpop.f32.mrf.mxu0
      %477 = vmatprep.mubr.bf16.mxu0 0
      %478 = vmatmul.mubr.bf16.gmra.mxu0 %v376
      %v479 = vpop.f32.mrf.mxu0
      %v480 = vadd.f32 %v272, %v479
      %v481 = vpop.f32.mrf.mxu0
      %v482 = vpop.f32.mrf.mxu0
      %v483 = vadd.f32 %v272, %v482
      %v484 = vpop.f32.mrf.mxu0
      %485 = vmatprep.mubr.bf16.mxu0 0
      %486 = vmatmul.mubr.bf16.gmra.mxu0 %v379
      %v487 = vpop.f32.mrf.mxu0
      %v488 = vadd.f32 %v272, %v487
      %v489 = vpop.f32.mrf.mxu0
      %v490 = vpop.f32.mrf.mxu0
      %v491 = vadd.f32 %v272, %v490
      %v492 = vpop.f32.mrf.mxu0
      %493 = vmatprep.mubr.bf16.mxu0 0
      %494 = vmatmul.mubr.bf16.gmra.mxu0 %v382
      %v495 = vpop.f32.mrf.mxu0
      %v496 = vadd.f32 %v272, %v495
      %v497 = vpop.f32.mrf.mxu0
      %v498 = vpop.f32.mrf.mxu0
      %v499 = vadd.f32 %v272, %v498
      %v500 = vpop.f32.mrf.mxu0
      %501 = vmatprep.mubr.bf16.mxu0 0
      %502 = vmatmul.mubr.bf16.gmra.mxu0 %v385
      %v503 = vpop.f32.mrf.mxu0
      %v504 = vadd.f32 %v272, %v503
      %v505 = vpop.f32.mrf.mxu0
      %v506 = vpop.f32.mrf.mxu0
      %v507 = vadd.f32 %v272, %v506
      %v508 = vpop.f32.mrf.mxu0
      %509 = vmatprep.mubr.bf16.mxu0 0
      %510 = vmatmul.mubr.bf16.gmra.mxu0 %v388
      %v511 = vpop.f32.mrf.mxu0
      %v512 = vadd.f32 %v272, %v511
      %v513 = vpop.f32.mrf.mxu0
      %v514 = vpop.f32.mrf.mxu0
      %v515 = vadd.f32 %v272, %v514
      %v516 = vpop.f32.mrf.mxu0
      %517 = vmatprep.mubr.bf16.mxu0 0
      %518 = vmatmul.mubr.bf16.gmra.mxu0 %v391
      %v519 = vpop.f32.mrf.mxu0
      %v520 = vadd.f32 %v272, %v519
      %v521 = vpop.f32.mrf.mxu0
      %v522 = vpop.f32.mrf.mxu0
      %v523 = vadd.f32 %v272, %v522
      %v524 = vpop.f32.mrf.mxu0
      %525 = vmatprep.mubr.bf16.mxu0 0
      %526 = vmatmul.mubr.bf16.gmra.mxu0 %v394
      %v527 = vpop.f32.mrf.mxu0
      %v528 = vadd.f32 %v272, %v527
      %v529 = vpop.f32.mrf.mxu0
      %v530 = vpop.f32.mrf.mxu0
      %v531 = vadd.f32 %v272, %v530
      %v532 = vpop.f32.mrf.mxu0
      %533 = vmatprep.mubr.bf16.mxu0 0
      %534 = vmatmul.mubr.bf16.gmra.mxu0 %v397
      %v535 = vpop.f32.mrf.mxu0
      %v536 = vadd.f32 %v272, %v535
      %v537 = vpop.f32.mrf.mxu0
      %v538 = vpop.f32.mrf.mxu0
      %v539 = vadd.f32 %v272, %v538
      %v540 = vpop.f32.mrf.mxu0
      %541 = vmatprep.mubr.bf16.mxu0 0
      %542 = vmatmul.mubr.bf16.gmra.mxu0 %v400
      %v543 = vpop.f32.mrf.mxu0
      %v544 = vadd.f32 %v272, %v543
      %v545 = vpop.f32.mrf.mxu0
      %v546 = vpop.f32.mrf.mxu0
      %v547 = vadd.f32 %v272, %v546
      %v548 = vpop.f32.mrf.mxu0
      %549 = vmatprep.mubr.bf16.mxu0 0
      %550 = vmatmul.mubr.bf16.gmra.mxu0 %v403
      %v551 = vpop.f32.mrf.mxu0
      %v552 = vadd.f32 %v272, %v551
      %v553 = vpop.f32.mrf.mxu0
      %v554 = vpop.f32.mrf.mxu0
      %v555 = vadd.f32 %v272, %v554
      %v556 = vpop.f32.mrf.mxu0
      %557 = vmatprep.mubr.bf16.mxu0 0
      %558 = vmatmul.mubr.bf16.gmra.mxu0 %v406
      %v559 = vpop.f32.mrf.mxu0
      %v560 = vadd.f32 %v272, %v559
      %v561 = vpop.f32.mrf.mxu0
      %v562 = vpop.f32.mrf.mxu0
      %v563 = vadd.f32 %v272, %v562
      %v564 = vpop.f32.mrf.mxu0
      %565 = vmatprep.mubr.bf16.mxu0 0
      %566 = vmatmul.mubr.bf16.gmra.mxu0 %v409
      %v567 = vpop.f32.mrf.mxu0
      %v568 = vadd.f32 %v272, %v567
      %v569 = vpop.f32.mrf.mxu0
      %v570 = vpop.f32.mrf.mxu0
      %v571 = vadd.f32 %v272, %v570
      %v572 = vpop.f32.mrf.mxu0
      %573 = vmatprep.mubr.bf16.mxu0 0
      %574 = vmatmul.mubr.bf16.gmra.mxu0 %v412
      %v575 = vpop.f32.mrf.mxu0
      %v576 = vadd.f32 %v272, %v575
      %v577 = vpop.f32.mrf.mxu0
      %v578 = vpop.f32.mrf.mxu0
      %v579 = vadd.f32 %v272, %v578
      %v580 = vpop.f32.mrf.mxu0
      %581 = vdwg.mxu0
      %v582 = vpack.c.bf16 %v459, %v456
      %v583 = vpack.c.bf16 %v467, %v464
      %v584 = vpack.c.bf16 %v475, %v472
      %v585 = vpack.c.bf16 %v483, %v480
      %v586 = vpack.c.bf16 %v491, %v488
      %v587 = vpack.c.bf16 %v499, %v496
      %v588 = vpack.c.bf16 %v507, %v504
      %v589 = vpack.c.bf16 %v515, %v512
      %v590 = vpack.c.bf16 %v523, %v520
      %v591 = vpack.c.bf16 %v531, %v528
      %v592 = vpack.c.bf16 %v539, %v536
      %v593 = vpack.c.bf16 %v547, %v544
      %v594 = vpack.c.bf16 %v555, %v552
      %v595 = vpack.c.bf16 %v563, %v560
      %v596 = vpack.c.bf16 %v571, %v568
      %v597 = vpack.c.bf16 %v579, %v576
      %v614 = vunpack.c.l.b16 %v582
      %v615 = vunpack.c.h.b16 %v582
      %v616 = vunpack.c.l.b16 %v583
      %v617 = vunpack.c.h.b16 %v583
      %v618 = vunpack.c.l.b16 %v584
      %v619 = vunpack.c.h.b16 %v584
      %v620 = vunpack.c.l.b16 %v585
      %v621 = vunpack.c.h.b16 %v585
      %v622 = vunpack.c.l.b16 %v586
      %v623 = vunpack.c.h.b16 %v586
      %v624 = vunpack.c.l.b16 %v587
      %v625 = vunpack.c.h.b16 %v587
      %v626 = vunpack.c.l.b16 %v588
      %v627 = vunpack.c.h.b16 %v588
      %v628 = vunpack.c.l.b16 %v589
      %v629 = vunpack.c.h.b16 %v589
      %v630 = vunpack.c.l.b16 %v590
      %v631 = vunpack.c.h.b16 %v590
      %v632 = vunpack.c.l.b16 %v591
      %v633 = vunpack.c.h.b16 %v591
      %v634 = vunpack.c.l.b16 %v592
      %v635 = vunpack.c.h.b16 %v592
      %v636 = vunpack.c.l.b16 %v593
      %v637 = vunpack.c.h.b16 %v593
      %v638 = vunpack.c.l.b16 %v594
      %v639 = vunpack.c.h.b16 %v594
      %v640 = vunpack.c.l.b16 %v595
      %v641 = vunpack.c.h.b16 %v595
      %v642 = vunpack.c.l.b16 %v596
      %v643 = vunpack.c.h.b16 %v596
      %v644 = vunpack.c.l.b16 %v597
      %v645 = vunpack.c.h.b16 %v597
      %v646 = vpack.c.b16 %v614, %v614
      %v647 = vpack.c.b16 %v615, %v615
      %v648 = vpack.c.b16 %v616, %v616
      %v649 = vpack.c.b16 %v617, %v617
      %v650 = vpack.c.b16 %v618, %v618
      %v651 = vpack.c.b16 %v619, %v619
      %v652 = vpack.c.b16 %v620, %v620
      %v653 = vpack.c.b16 %v621, %v621
      %v654 = vpack.c.b16 %v622, %v622
      %v655 = vpack.c.b16 %v623, %v623
      %v656 = vpack.c.b16 %v624, %v624
      %v657 = vpack.c.b16 %v625, %v625
      %v658 = vpack.c.b16 %v626, %v626
      %v659 = vpack.c.b16 %v627, %v627
      %v660 = vpack.c.b16 %v628, %v628
      %v661 = vpack.c.b16 %v629, %v629
      %v662 = vpack.c.b16 %v630, %v630
      %v663 = vpack.c.b16 %v631, %v631
      %v664 = vpack.c.b16 %v632, %v632
      %v665 = vpack.c.b16 %v633, %v633
      %v666 = vpack.c.b16 %v634, %v634
      %v667 = vpack.c.b16 %v635, %v635
      %v668 = vpack.c.b16 %v636, %v636
      %v669 = vpack.c.b16 %v637, %v637
      %v670 = vpack.c.b16 %v638, %v638
      %v671 = vpack.c.b16 %v639, %v639
      %v672 = vpack.c.b16 %v640, %v640
      %v673 = vpack.c.b16 %v641, %v641
      %v674 = vpack.c.b16 %v642, %v642
      %v675 = vpack.c.b16 %v643, %v643
      %v676 = vpack.c.b16 %v644, %v644
      %v677 = vpack.c.b16 %v645, %v645
      %710 = vst [vmem:[%s228] sm:$0xf] %v646
      %711 = vst [vmem:[%s228 + $0x4] sm:$0xf] %v647
      %712 = vst [vmem:[%s228 + $0x8] sm:$0xf] %v648
      %713 = vst [vmem:[%s228 + $0xc] sm:$0xf] %v649
      %714 = vst [vmem:[%s228 + $0x10] sm:$0xf] %v650
      %715 = vst [vmem:[%s228 + $0x14] sm:$0xf] %v651
      %716 = vst [vmem:[%s228 + $0x18] sm:$0xf] %v652
      %717 = vst [vmem:[%s228 + $0x1c] sm:$0xf] %v653
      %718 = vst [vmem:[%s228 + $0x20] sm:$0xf] %v654
      %719 = vst [vmem:[%s228 + $0x24] sm:$0xf] %v655
      %720 = vst [vmem:[%s228 + $0x28] sm:$0xf] %v656
      %721 = vst [vmem:[%s228 + $0x2c] sm:$0xf] %v657
      %722 = vst [vmem:[%s228 + $0x30] sm:$0xf] %v658
      %723 = vst [vmem:[%s228 + $0x34] sm:$0xf] %v659
      %724 = vst [vmem:[%s228 + $0x38] sm:$0xf] %v660
      %725 = vst [vmem:[%s228 + $0x3c] sm:$0xf] %v661
      %726 = vst [vmem:[%s228 + $0x40] sm:$0xf] %v662
      %727 = vst [vmem:[%s228 + $0x44] sm:$0xf] %v663
      %728 = vst [vmem:[%s228 + $0x48] sm:$0xf] %v664
      %729 = vst [vmem:[%s228 + $0x4c] sm:$0xf] %v665
      %730 = vst [vmem:[%s228 + $0x50] sm:$0xf] %v666
      %731 = vst [vmem:[%s228 + $0x54] sm:$0xf] %v667
      %732 = vst [vmem:[%s228 + $0x58] sm:$0xf] %v668
      %733 = vst [vmem:[%s228 + $0x5c] sm:$0xf] %v669
      %734 = vst [vmem:[%s228 + $0x60] sm:$0xf] %v670
      %735 = vst [vmem:[%s228 + $0x64] sm:$0xf] %v671
      %736 = vst [vmem:[%s228 + $0x68] sm:$0xf] %v672
      %737 = vst [vmem:[%s228 + $0x6c] sm:$0xf] %v673
      %738 = vst [vmem:[%s228 + $0x70] sm:$0xf] %v674
      %739 = vst [vmem:[%s228 + $0x74] sm:$0xf] %v675
      %740 = vst [vmem:[%s228 + $0x78] sm:$0xf] %v676
      %741 = vst [vmem:[%s228 + $0x7c] sm:$0xf] %v677
      %s742 = smul.u32 32, %s19
      %p743 = scmp.lt.s32.totalorder %s18, 0
      %s744 = scalar_select %p743, %s18, 0
      %p745 = scmp.lt.s32.totalorder %s742, 63
      %s746 = scalar_select %p745, %s742, 63
      %s747 = smul.addr %s744, 64
      %s748 = sadd.s32 %s746, %s747
      %s749 = smul.addr %s748, 4
      %s750 = scalar_lea.vmem %s3, %s749
      // Predicated region
      $region33: #{_lambda_.9} parent=31 // pred_check
        %p751 = pneg %p121
      $region34: #{_lambda_.9} parent=31 // pred_check_branch
        %753 = sbr.rel (%p751) target = $region36
      $region35: #{_lambda_.9} parent=31 // pred_region
        %s754 = smul.u32 32, %s19
      $region36: #{_lambda_.9} parent=31 // pred_fallthru
        _
    $region32: #{_lambda_.9} parent=5 // pred_fallthru
      _
    %p755 = scmp.le.s32.totalorder 2, %s9
    // Predicated region
    $region37: #{_lambda_.9} parent=5 // pred_check
      %p756 = pneg %p755
    $region38: #{_lambda_.9} parent=5 // pred_check_branch
      %758 = sbr.rel (%p756) target = $region40
    $region39: #{_lambda_.9} parent=5 // pred_region
      %s759 = ssub.s32 %s9, 2
      // Predicated region
      $region41: #{_lambda_.9} parent=39 // pred_check
        %p760 = pneg %p127
      $region42: #{_lambda_.9} parent=39 // pred_check_branch
        %762 = sbr.rel (%p760) target = $region44
      $region43: #{_lambda_.9} parent=39 // pred_region
        %s763 = smul.u32 32, %s21
        %p764 = scmp.lt.s32.totalorder %s20, 0
        %s765 = scalar_select %p764, %s20, 0
        %p766 = scmp.lt.s32.totalorder %s763, 63
        %s767 = scalar_select %p766, %s763, 63
        %s768 = smul.addr %s765, 64
        %s769 = sadd.s32 %s767, %s768
        %s770 = smul.addr %s769, 4
        %s771 = scalar_lea.vmem %s3, %s770
      $region44: #{_lambda_.9} parent=39 // pred_fallthru
        _
    $region40: #{_lambda_.9} parent=5 // pred_fallthru
      _
  $region6: #{_lambda_.9} parent=0 // loop_footer
    %s13 = sadd.s32 1, %s9
  $region7: #{_lambda_.9} parent=0 // loop_footer_branch
    %8 = sbr.rel target = $region3
  $region8: #{_lambda_.9} parent=0 // loop_exit
    _

// kernel: _lambda_.10
$region0: #{_lambda_.10}
  #allocation0 [shape = 'u32[]', space=smem, size = 0x4, offset = 0x4, fixed_abs, tag = 'smem constant byte address 0x4 - core index']
  #allocation1 [shape = 'u32[144,128]{1,0:T(1,128)}', space=vmem, size = 0x12000, scoped, tag = 'internal scratch']
  %s0 = inlined_call_operand.vmem [shape: bf16[1,128,144], index: 0, kind: input, shape index: {}]
  %s1 = inlined_call_operand.vmem [shape: bf16[1,144,128], index: 1, kind: input, shape index: {}]
  %s2 = inlined_call_operand.vmem [shape: f32[1,128], index: 2, kind: input, shape index: {}]
  %s3 = inlined_call_operand.vmem [shape: bf16[1,128,128], index: 3, kind: output, shape index: {}]
  %s4 = sld [smem:[#allocation0]]
  $region22: #{_lambda_.10} parent=0
    _
  %s6 = ssub.s32 1, %s4
  %s7 = scalar_select 0, %s6, %s4
  // Predicated region
  $region2: #{_lambda_.10} parent=0 // pred_check
    _
  $region3: #{_lambda_.10} parent=0 // pred_check_branch
    %9 = sbr.rel (0) target = $region5
  $region4: #{_lambda_.10} parent=0 // pred_region
    _
  $region5: #{_lambda_.10} parent=0 // pred_fallthru
    _
  // Predicated region
  $region6: #{_lambda_.10} parent=0 // pred_check
    _
  $region7: #{_lambda_.10} parent=0 // pred_check_branch
    %11 = sbr.rel (0) target = $region9
  $region8: #{_lambda_.10} parent=0 // pred_region
    _
  $region9: #{_lambda_.10} parent=0 // pred_fallthru
    _
  // Predicated region
  $region10: #{_lambda_.10} parent=0 // pred_check
    _
  $region11: #{_lambda_.10} parent=0 // pred_check_branch
    %13 = sbr.rel (0) target = $region13
  $region12: #{_lambda_.10} parent=0 // pred_region
    _
  $region13: #{_lambda_.10} parent=0 // pred_fallthru
    _
  %v15 = vld [vmem:[%s0] sm:$0xff]
  %v16 = vld [vmem:[%s0 + $0x8] sm:$0xff]
  %v17 = vld [vmem:[%s0 + $0x10] sm:$0xff]
  %v18 = vld [vmem:[%s0 + $0x18] sm:$0xff]
  %v19 = vld [vmem:[%s0 + $0x20] sm:$0xff]
  %v20 = vld [vmem:[%s0 + $0x28] sm:$0xff]
  %v21 = vld [vmem:[%s0 + $0x30] sm:$0xff]
  %v22 = vld [vmem:[%s0 + $0x38] sm:$0xff]
  %v23 = vld [vmem:[%s0 + $0x40] sm:$0xff]
  %v24 = vld [vmem:[%s0 + $0x48] sm:$0xff]
  %v25 = vld [vmem:[%s0 + $0x50] sm:$0xff]
  %v26 = vld [vmem:[%s0 + $0x58] sm:$0xff]
  %v27 = vld [vmem:[%s0 + $0x60] sm:$0xff]
  %v28 = vld [vmem:[%s0 + $0x68] sm:$0xff]
  %v29 = vld [vmem:[%s0 + $0x70] sm:$0xff]
  %v30 = vld [vmem:[%s0 + $0x78] sm:$0xff]
  %v31 = vunpack.c.l.bf16 %v15
  %v32 = vunpack.c.h.bf16 %v15
  %v33 = vunpack.c.l.bf16 %v16
  %v34 = vunpack.c.h.bf16 %v16
  %v35 = vunpack.c.l.bf16 %v17
  %v36 = vunpack.c.h.bf16 %v17
  %v37 = vunpack.c.l.bf16 %v18
  %v38 = vunpack.c.h.bf16 %v18
  %v39 = vunpack.c.l.bf16 %v19
  %v40 = vunpack.c.h.bf16 %v19
  %v41 = vunpack.c.l.bf16 %v20
  %v42 = vunpack.c.h.bf16 %v20
  %v43 = vunpack.c.l.bf16 %v21
  %v44 = vunpack.c.h.bf16 %v21
  %v45 = vunpack.c.l.bf16 %v22
  %v46 = vunpack.c.h.bf16 %v22
  %v47 = vunpack.c.l.bf16 %v23
  %v48 = vunpack.c.h.bf16 %v23
  %v49 = vunpack.c.l.bf16 %v24
  %v50 = vunpack.c.h.bf16 %v24
  %v51 = vunpack.c.l.bf16 %v25
  %v52 = vunpack.c.h.bf16 %v25
  %v53 = vunpack.c.l.bf16 %v26
  %v54 = vunpack.c.h.bf16 %v26
  %v55 = vunpack.c.l.bf16 %v27
  %v56 = vunpack.c.h.bf16 %v27
  %v57 = vunpack.c.l.bf16 %v28
  %v58 = vunpack.c.h.bf16 %v28
  %v59 = vunpack.c.l.bf16 %v29
  %v60 = vunpack.c.h.bf16 %v29
  %v61 = vunpack.c.l.bf16 %v30
  %v62 = vunpack.c.h.bf16 %v30
  %vm63 = vcmp.ge.f32.partialorder %v31, 0.0
  %vm64 = vcmp.ge.f32.partialorder %v32, 0.0
  %vm65 = vcmp.ge.f32.partialorder %v33, 0.0
  %vm66 = vcmp.ge.f32.partialorder %v34, 0.0
  %vm67 = vcmp.ge.f32.partialorder %v35, 0.0
  %vm68 = vcmp.ge.f32.partialorder %v36, 0.0
  %vm69 = vcmp.ge.f32.partialorder %v37, 0.0
  %vm70 = vcmp.ge.f32.partialorder %v38, 0.0
  %vm71 = vcmp.ge.f32.partialorder %v39, 0.0
  %vm72 = vcmp.ge.f32.partialorder %v40, 0.0
  %vm73 = vcmp.ge.f32.partialorder %v41, 0.0
  %vm74 = vcmp.ge.f32.partialorder %v42, 0.0
  %vm75 = vcmp.ge.f32.partialorder %v43, 0.0
  %vm76 = vcmp.ge.f32.partialorder %v44, 0.0
  %vm77 = vcmp.ge.f32.partialorder %v45, 0.0
  %vm78 = vcmp.ge.f32.partialorder %v46, 0.0
  %vm79 = vcmp.ge.f32.partialorder %v47, 0.0
  %vm80 = vcmp.ge.f32.partialorder %v48, 0.0
  %vm81 = vcmp.ge.f32.partialorder %v49, 0.0
  %vm82 = vcmp.ge.f32.partialorder %v50, 0.0
  %vm83 = vcmp.ge.f32.partialorder %v51, 0.0
  %vm84 = vcmp.ge.f32.partialorder %v52, 0.0
  %vm85 = vcmp.ge.f32.partialorder %v53, 0.0
  %vm86 = vcmp.ge.f32.partialorder %v54, 0.0
  %vm87 = vcmp.ge.f32.partialorder %v55, 0.0
  %vm88 = vcmp.ge.f32.partialorder %v56, 0.0
  %vm89 = vcmp.ge.f32.partialorder %v57, 0.0
  %vm90 = vcmp.ge.f32.partialorder %v58, 0.0
  %vm91 = vcmp.ge.f32.partialorder %v59, 0.0
  %vm92 = vcmp.ge.f32.partialorder %v60, 0.0
  %vm93 = vcmp.ge.f32.partialorder %v61, 0.0
  %vm94 = vcmp.ge.f32.partialorder %v62, 0.0
  %v95 = vmul.f32 %v31, 0.2
  %v96 = vmul.f32 %v32, 0.2
  %v97 = vmul.f32 %v33, 0.2
  %v98 = vmul.f32 %v34, 0.2
  %v99 = vmul.f32 %v35, 0.2
  %v100 = vmul.f32 %v36, 0.2
  %v101 = vmul.f32 %v37, 0.2
  %v102 = vmul.f32 %v38, 0.2
  %v103 = vmul.f32 %v39, 0.2
  %v104 = vmul.f32 %v40, 0.2
  %v105 = vmul.f32 %v41, 0.2
  %v106 = vmul.f32 %v42, 0.2
  %v107 = vmul.f32 %v43, 0.2
  %v108 = vmul.f32 %v44, 0.2
  %v109 = vmul.f32 %v45, 0.2
  %v110 = vmul.f32 %v46, 0.2
  %v111 = vmul.f32 %v47, 0.2
  %v112 = vmul.f32 %v48, 0.2
  %v113 = vmul.f32 %v49, 0.2
  %v114 = vmul.f32 %v50, 0.2
  %v115 = vmul.f32 %v51, 0.2
  %v116 = vmul.f32 %v52, 0.2
  %v117 = vmul.f32 %v53, 0.2
  %v118 = vmul.f32 %v54, 0.2
  %v119 = vmul.f32 %v55, 0.2
  %v120 = vmul.f32 %v56, 0.2
  %v121 = vmul.f32 %v57, 0.2
  %v122 = vmul.f32 %v58, 0.2
  %v123 = vmul.f32 %v59, 0.2
  %v124 = vmul.f32 %v60, 0.2
  %v125 = vmul.f32 %v61, 0.2
  %v126 = vmul.f32 %v62, 0.2
  %v127 = vsel %vm63, %v31, %v95
  %v128 = vsel %vm64, %v32, %v96
  %v129 = vsel %vm65, %v33, %v97
  %v130 = vsel %vm66, %v34, %v98
  %v131 = vsel %vm67, %v35, %v99
  %v132 = vsel %vm68, %v36, %v100
  %v133 = vsel %vm69, %v37, %v101
  %v134 = vsel %vm70, %v38, %v102
  %v135 = vsel %vm71, %v39, %v103
  %v136 = vsel %vm72, %v40, %v104
  %v137 = vsel %vm73, %v41, %v105
  %v138 = vsel %vm74, %v42, %v106
  %v139 = vsel %vm75, %v43, %v107
  %v140 = vsel %vm76, %v44, %v108
  %v141 = vsel %vm77, %v45, %v109
  %v142 = vsel %vm78, %v46, %v110
  %v143 = vsel %vm79, %v47, %v111
  %v144 = vsel %vm80, %v48, %v112
  %v145 = vsel %vm81, %v49, %v113
  %v146 = vsel %vm82, %v50, %v114
  %v147 = vsel %vm83, %v51, %v115
  %v148 = vsel %vm84, %v52, %v116
  %v149 = vsel %vm85, %v53, %v117
  %v150 = vsel %vm86, %v54, %v118
  %v151 = vsel %vm87, %v55, %v119
  %v152 = vsel %vm88, %v56, %v120
  %v153 = vsel %vm89, %v57, %v121
  %v154 = vsel %vm90, %v58, %v122
  %v155 = vsel %vm91, %v59, %v123
  %v156 = vsel %vm92, %v60, %v124
  %v157 = vsel %vm93, %v61, %v125
  %v158 = vsel %vm94, %v62, %v126
  %v159 = vpack.c.bf16 %v129, %v127
  %v160 = vpack.c.bf16 %v130, %v128
  %v161 = vpack.c.bf16 %v133, %v131
  %v162 = vpack.c.bf16 %v134, %v132
  %v163 = vpack.c.bf16 %v137, %v135
  %v164 = vpack.c.bf16 %v138, %v136
  %v165 = vpack.c.bf16 %v141, %v139
  %v166 = vpack.c.bf16 %v142, %v140
  %v167 = vpack.c.bf16 %v145, %v143
  %v168 = vpack.c.bf16 %v146, %v144
  %v169 = vpack.c.bf16 %v149, %v147
  %v170 = vpack.c.bf16 %v150, %v148
  %v171 = vpack.c.bf16 %v153, %v151
  %v172 = vpack.c.bf16 %v154, %v152
  %v173 = vpack.c.bf16 %v157, %v155
  %v174 = vpack.c.bf16 %v158, %v156
  %v175 = vld [vmem:[%s1] sm:$0xf]
  %v176 = vld [vmem:[%s1 + $0x4] sm:$0xf]
  %v177 = vld [vmem:[%s1 + $0x8] sm:$0xf]
  %v178 = vld [vmem:[%s1 + $0xc] sm:$0xf]
  %v179 = vld [vmem:[%s1 + $0x10] sm:$0xf]
  %v180 = vld [vmem:[%s1 + $0x14] sm:$0xf]
  %v181 = vld [vmem:[%s1 + $0x18] sm:$0xf]
  %v182 = vld [vmem:[%s1 + $0x1c] sm:$0xf]
  %v183 = vld [vmem:[%s1 + $0x20] sm:$0xf]
  %v184 = vld [vmem:[%s1 + $0x24] sm:$0xf]
  %v185 = vld [vmem:[%s1 + $0x28] sm:$0xf]
  %v186 = vld [vmem:[%s1 + $0x2c] sm:$0xf]
  %v187 = vld [vmem:[%s1 + $0x30] sm:$0xf]
  %v188 = vld [vmem:[%s1 + $0x34] sm:$0xf]
  %v189 = vld [vmem:[%s1 + $0x38] sm:$0xf]
  %v190 = vld [vmem:[%s1 + $0x3c] sm:$0xf]
  %v191 = vld [vmem:[%s1 + $0x40] sm:$0xf]
  %v192 = vld [vmem:[%s1 + $0x44] sm:$0xf]
  %v193 = vld [vmem:[%s2] sm:$0x1]
  %v195 = vlaneseq
  %v196 = vshrl.u32 %v195, 7
  %v197 = vsub.s32 0, %v196
  %v198 = vrot.slane %v193, %v197
  %v218 = vunpack.c.l.b16 %v175
  %v219 = vunpack.c.l.b16 %v176
  %v220 = vunpack.c.l.b16 %v177
  %v221 = vunpack.c.l.b16 %v178
  %v222 = vunpack.c.l.b16 %v179
  %v223 = vunpack.c.l.b16 %v180
  %v224 = vunpack.c.l.b16 %v181
  %v225 = vunpack.c.l.b16 %v182
  %v226 = vunpack.c.l.b16 %v183
  %v227 = vunpack.c.l.b16 %v184
  %v228 = vunpack.c.l.b16 %v185
  %v229 = vunpack.c.l.b16 %v186
  %v230 = vunpack.c.l.b16 %v187
  %v231 = vunpack.c.l.b16 %v188
  %v232 = vunpack.c.l.b16 %v189
  %v233 = vunpack.c.l.b16 %v190
  %v234 = vunpack.c.l.b16 %v191
  %v235 = vunpack.c.l.b16 %v192
  %v236 = vpack.c.b16 %v219, %v218
  %v237 = vpack.c.b16 %v221, %v220
  %v238 = vpack.c.b16 %v223, %v222
  %v239 = vpack.c.b16 %v225, %v224
  %v240 = vpack.c.b16 %v227, %v226
  %v241 = vpack.c.b16 %v229, %v228
  %v242 = vpack.c.b16 %v231, %v230
  %v243 = vpack.c.b16 %v233, %v232
  %v244 = vpack.c.b16 %v235, %v234
  %vm254 = vcmask 130048
  %v256 = vsel %vm254, %v160, 0
  %v259 = vsel %vm254, %v162, 0
  %v262 = vsel %vm254, %v164, 0
  %v265 = vsel %vm254, %v166, 0
  %v268 = vsel %vm254, %v168, 0
  %v271 = vsel %vm254, %v170, 0
  %v274 = vsel %vm254, %v172, 0
  %v277 = vsel %vm254, %v174, 0
  %279 = vmatprep.subr.bf16.mxu0 0
  %280 = vmatpush1.bf16.msra.mxu0 %v243
  %281 = vmatprep.subr.bf16.mxu0 0
  %282 = vmatpush1.bf16.msra.mxu0 %v242
  %283 = vmatprep.subr.bf16.mxu0 0
  %284 = vmatpush1.bf16.msra.mxu0 %v241
  %285 = vmatprep.subr.bf16.mxu0 0
  %286 = vmatpush1.bf16.msra.mxu0 %v240
  %287 = vmatprep.subr.bf16.mxu0 0
  %288 = vmatpush1.bf16.msra.mxu0 %v239
  %289 = vmatprep.subr.bf16.mxu0 0
  %290 = vmatpush1.bf16.msra.mxu0 %v238
  %291 = vmatprep.subr.bf16.mxu0 0
  %292 = vmatpush1.bf16.msra.mxu0 %v237
  %293 = vmatprep.subr.bf16.mxu0 0
  %294 = vmatpush1.bf16.msra.mxu0 %v236
  %295 = vmatprep.subr.bf16.mxu0 0
  %296 = vmatpush2.bf16.msra.mxu0 0
  %297 = vmatprep.subr.bf16.mxu0 0
  %298 = vmatpush2.bf16.msra.mxu0 0
  %299 = vmatprep.subr.bf16.mxu0 0
  %300 = vmatpush2.bf16.msra.mxu0 0
  %301 = vmatprep.subr.bf16.mxu0 0
  %302 = vmatpush2.bf16.msra.mxu0 0
  %303 = vmatprep.subr.bf16.mxu0 0
  %304 = vmatpush2.bf16.msra.mxu0 0
  %305 = vmatprep.subr.bf16.mxu0 0
  %306 = vmatpush2.bf16.msra.mxu0 0
  %307 = vmatprep.subr.bf16.mxu0 0
  %308 = vmatpush2.bf16.msra.mxu0 0
  %309 = vmatprep.subr.bf16.mxu0 0
  %310 = vmatpush2.bf16.msra.mxu0 %v244
  %311 = vmatprep.mubr.bf16.mxu0 %v256
  %312 = vmatmul.mubr.bf16.gmra.mxu0 %v159
  %v313 = vpop.f32.mrf.mxu0
  %v314 = vadd.f32 %v198, %v313
  %v315 = vpop.f32.mrf.mxu0
  %v316 = vpop.f32.mrf.mxu0
  %v317 = vadd.f32 %v198, %v316
  %v318 = vpop.f32.mrf.mxu0
  %319 = vmatprep.mubr.bf16.mxu0 %v259
  %320 = vmatmul.mubr.bf16.gmra.mxu0 %v161
  %v321 = vpop.f32.mrf.mxu0
  %v322 = vadd.f32 %v198, %v321
  %v323 = vpop.f32.mrf.mxu0
  %v324 = vpop.f32.mrf.mxu0
  %v325 = vadd.f32 %v198, %v324
  %v326 = vpop.f32.mrf.mxu0
  %327 = vmatprep.mubr.bf16.mxu0 %v262
  %328 = vmatmul.mubr.bf16.gmra.mxu0 %v163
  %v329 = vpop.f32.mrf.mxu0
  %v330 = vadd.f32 %v198, %v329
  %v331 = vpop.f32.mrf.mxu0
  %v332 = vpop.f32.mrf.mxu0
  %v333 = vadd.f32 %v198, %v332
  %v334 = vpop.f32.mrf.mxu0
  %335 = vmatprep.mubr.bf16.mxu0 %v265
  %336 = vmatmul.mubr.bf16.gmra.mxu0 %v165
  %v337 = vpop.f32.mrf.mxu0
  %v338 = vadd.f32 %v198, %v337
  %v339 = vpop.f32.mrf.mxu0
  %v340 = vpop.f32.mrf.mxu0
  %v341 = vadd.f32 %v198, %v340
  %v342 = vpop.f32.mrf.mxu0
  %343 = vmatprep.mubr.bf16.mxu0 %v268
  %344 = vmatmul.mubr.bf16.gmra.mxu0 %v167
  %v345 = vpop.f32.mrf.mxu0
  %v346 = vadd.f32 %v198, %v345
  %v347 = vpop.f32.mrf.mxu0
  %v348 = vpop.f32.mrf.mxu0
  %v349 = vadd.f32 %v198, %v348
  %v350 = vpop.f32.mrf.mxu0
  %351 = vmatprep.mubr.bf16.mxu0 %v271
  %352 = vmatmul.mubr.bf16.gmra.mxu0 %v169
  %v353 = vpop.f32.mrf.mxu0
  %v354 = vadd.f32 %v198, %v353
  %v355 = vpop.f32.mrf.mxu0
  %v356 = vpop.f32.mrf.mxu0
  %v357 = vadd.f32 %v198, %v356
  %v358 = vpop.f32.mrf.mxu0
  %359 = vmatprep.mubr.bf16.mxu0 %v274
  %360 = vmatmul.mubr.bf16.gmra.mxu0 %v171
  %v361 = vpop.f32.mrf.mxu0
  %v362 = vadd.f32 %v198, %v361
  %v363 = vpop.f32.mrf.mxu0
  %v364 = vpop.f32.mrf.mxu0
  %v365 = vadd.f32 %v198, %v364
  %v366 = vpop.f32.mrf.mxu0
  %367 = vmatprep.mubr.bf16.mxu0 %v277
  %368 = vmatmul.mubr.bf16.gmra.mxu0 %v173
  %v369 = vpop.f32.mrf.mxu0
  %v370 = vadd.f32 %v198, %v369
  %v371 = vpop.f32.mrf.mxu0
  %v372 = vpop.f32.mrf.mxu0
  %v373 = vadd.f32 %v198, %v372
  %v374 = vpop.f32.mrf.mxu0
  %375 = vdwg.mxu0
  %v376 = vpack.c.bf16 %v317, %v314
  %v377 = vpack.c.bf16 %v325, %v322
  %v378 = vpack.c.bf16 %v333, %v330
  %v379 = vpack.c.bf16 %v341, %v338
  %v380 = vpack.c.bf16 %v349, %v346
  %v381 = vpack.c.bf16 %v357, %v354
  %v382 = vpack.c.bf16 %v365, %v362
  %v383 = vpack.c.bf16 %v373, %v370
  %v392 = vunpack.c.l.b16 %v376
  %v393 = vunpack.c.h.b16 %v376
  %v394 = vunpack.c.l.b16 %v377
  %v395 = vunpack.c.h.b16 %v377
  %v396 = vunpack.c.l.b16 %v378
  %v397 = vunpack.c.h.b16 %v378
  %v398 = vunpack.c.l.b16 %v379
  %v399 = vunpack.c.h.b16 %v379
  %v400 = vunpack.c.l.b16 %v380
  %v401 = vunpack.c.h.b16 %v380
  %v402 = vunpack.c.l.b16 %v381
  %v403 = vunpack.c.h.b16 %v381
  %v404 = vunpack.c.l.b16 %v382
  %v405 = vunpack.c.h.b16 %v382
  %v406 = vunpack.c.l.b16 %v383
  %v407 = vunpack.c.h.b16 %v383
  %v408 = vpack.c.b16 %v392, %v392
  %v409 = vpack.c.b16 %v393, %v393
  %v410 = vpack.c.b16 %v394, %v394
  %v411 = vpack.c.b16 %v395, %v395
  %v412 = vpack.c.b16 %v396, %v396
  %v413 = vpack.c.b16 %v397, %v397
  %v414 = vpack.c.b16 %v398, %v398
  %v415 = vpack.c.b16 %v399, %v399
  %v416 = vpack.c.b16 %v400, %v400
  %v417 = vpack.c.b16 %v401, %v401
  %v418 = vpack.c.b16 %v402, %v402
  %v419 = vpack.c.b16 %v403, %v403
  %v420 = vpack.c.b16 %v404, %v404
  %v421 = vpack.c.b16 %v405, %v405
  %v422 = vpack.c.b16 %v406, %v406
  %v423 = vpack.c.b16 %v407, %v407
  %440 = vst [vmem:[%s3] sm:$0xf] %v408
  %441 = vst [vmem:[%s3 + $0x4] sm:$0xf] %v409
  %442 = vst [vmem:[%s3 + $0x8] sm:$0xf] %v410
  %443 = vst [vmem:[%s3 + $0xc] sm:$0xf] %v411
  %444 = vst [vmem:[%s3 + $0x10] sm:$0xf] %v412
  %445 = vst [vmem:[%s3 + $0x14] sm:$0xf] %v413
  %446 = vst [vmem:[%s3 + $0x18] sm:$0xf] %v414
  %447 = vst [vmem:[%s3 + $0x1c] sm:$0xf] %v415
  %448 = vst [vmem:[%s3 + $0x20] sm:$0xf] %v416
  %449 = vst [vmem:[%s3 + $0x24] sm:$0xf] %v417
  %450 = vst [vmem:[%s3 + $0x28] sm:$0xf] %v418
  %451 = vst [vmem:[%s3 + $0x2c] sm:$0xf] %v419
  %452 = vst [vmem:[%s3 + $0x30] sm:$0xf] %v420
  %453 = vst [vmem:[%s3 + $0x34] sm:$0xf] %v421
  %454 = vst [vmem:[%s3 + $0x38] sm:$0xf] %v422
  %455 = vst [vmem:[%s3 + $0x3c] sm:$0xf] %v423
  // Predicated region
  $region14: #{_lambda_.10} parent=0 // pred_check
    _
  $region15: #{_lambda_.10} parent=0 // pred_check_branch
    %457 = sbr.rel (0) target = $region17
  $region16: #{_lambda_.10} parent=0 // pred_region
    _
  $region17: #{_lambda_.10} parent=0 // pred_fallthru
    _
  // Predicated region
  $region18: #{_lambda_.10} parent=0 // pred_check
    _
  $region19: #{_lambda_.10} parent=0 // pred_check_branch
    %459 = sbr.rel (0) target = $region21
  $region20: #{_lambda_.10} parent=0 // pred_region
    _
  $region21: #{_lambda_.10} parent=0 // pred_fallthru
    _

// kernel: _lambda_.11
$region0: #{_lambda_.11}
  #allocation0 [shape = 'u32[]', space=smem, size = 0x4, offset = 0x4, fixed_abs, tag = 'smem constant byte address 0x4 - core index']
  #allocation1 [shape = 'u32[144,128]{1,0:T(1,128)}', space=vmem, size = 0x12000, scoped, tag = 'internal scratch']
  %s0 = inlined_call_operand.vmem [shape: bf16[1,32,288], index: 0, kind: input, shape index: {}]
  %s1 = inlined_call_operand.vmem [shape: bf16[1,288,128], index: 1, kind: input, shape index: {}]
  %s2 = inlined_call_operand.vmem [shape: f32[1,128], index: 2, kind: input, shape index: {}]
  %s3 = inlined_call_operand.vmem [shape: bf16[1,32,128], index: 3, kind: output, shape index: {}]
  %s4 = sld [smem:[#allocation0]]
  $region22: #{_lambda_.11} parent=0
    _
  %s6 = ssub.s32 1, %s4
  %s7 = scalar_select 0, %s6, %s4
  // Predicated region
  $region2: #{_lambda_.11} parent=0 // pred_check
    _
  $region3: #{_lambda_.11} parent=0 // pred_check_branch
    %9 = sbr.rel (0) target = $region5
  $region4: #{_lambda_.11} parent=0 // pred_region
    _
  $region5: #{_lambda_.11} parent=0 // pred_fallthru
    _
  // Predicated region
  $region6: #{_lambda_.11} parent=0 // pred_check
    _
  $region7: #{_lambda_.11} parent=0 // pred_check_branch
    %11 = sbr.rel (0) target = $region9
  $region8: #{_lambda_.11} parent=0 // pred_region
    _
  $region9: #{_lambda_.11} parent=0 // pred_fallthru
    _
  // Predicated region
  $region10: #{_lambda_.11} parent=0 // pred_check
    _
  $region11: #{_lambda_.11} parent=0 // pred_check_branch
    %13 = sbr.rel (0) target = $region13
  $region12: #{_lambda_.11} parent=0 // pred_region
    _
  $region13: #{_lambda_.11} parent=0 // pred_fallthru
    _
  %v15 = vld [vmem:[%s0] sm:$0xff]
  %v16 = vld [vmem:[%s0 + $0x8] sm:$0xf]
  %v17 = vld [vmem:[%s0 + $0xc] sm:$0xff]
  %v18 = vld [vmem:[%s0 + $0x14] sm:$0xf]
  %v19 = vld [vmem:[%s0 + $0x18] sm:$0xff]
  %v20 = vld [vmem:[%s0 + $0x20] sm:$0xf]
  %v21 = vld [vmem:[%s0 + $0x24] sm:$0xff]
  %v22 = vld [vmem:[%s0 + $0x2c] sm:$0xf]
  %v23 = vunpack.c.l.bf16 %v15
  %v24 = vunpack.c.h.bf16 %v15
  %v25 = vunpack.c.l.bf16 %v16
  %v26 = vunpack.c.l.bf16 %v17
  %v27 = vunpack.c.h.bf16 %v17
  %v28 = vunpack.c.l.bf16 %v18
  %v29 = vunpack.c.l.bf16 %v19
  %v30 = vunpack.c.h.bf16 %v19
  %v31 = vunpack.c.l.bf16 %v20
  %v32 = vunpack.c.l.bf16 %v21
  %v33 = vunpack.c.h.bf16 %v21
  %v34 = vunpack.c.l.bf16 %v22
  %vm35 = vcmp.ge.f32.partialorder %v23, 0.0
  %vm36 = vcmp.ge.f32.partialorder %v24, 0.0
  %vm37 = vcmp.ge.f32.partialorder %v25, 0.0
  %vm38 = vcmp.ge.f32.partialorder %v26, 0.0
  %vm39 = vcmp.ge.f32.partialorder %v27, 0.0
  %vm40 = vcmp.ge.f32.partialorder %v28, 0.0
  %vm41 = vcmp.ge.f32.partialorder %v29, 0.0
  %vm42 = vcmp.ge.f32.partialorder %v30, 0.0
  %vm43 = vcmp.ge.f32.partialorder %v31, 0.0
  %vm44 = vcmp.ge.f32.partialorder %v32, 0.0
  %vm45 = vcmp.ge.f32.partialorder %v33, 0.0
  %vm46 = vcmp.ge.f32.partialorder %v34, 0.0
  %v47 = vmul.f32 %v23, 0.2
  %v48 = vmul.f32 %v24, 0.2
  %v49 = vmul.f32 %v25, 0.2
  %v50 = vmul.f32 %v26, 0.2
  %v51 = vmul.f32 %v27, 0.2
  %v52 = vmul.f32 %v28, 0.2
  %v53 = vmul.f32 %v29, 0.2
  %v54 = vmul.f32 %v30, 0.2
  %v55 = vmul.f32 %v31, 0.2
  %v56 = vmul.f32 %v32, 0.2
  %v57 = vmul.f32 %v33, 0.2
  %v58 = vmul.f32 %v34, 0.2
  %v59 = vsel %vm35, %v23, %v47
  %v60 = vsel %vm36, %v24, %v48
  %v61 = vsel %vm37, %v25, %v49
  %v62 = vsel %vm38, %v26, %v50
  %v63 = vsel %vm39, %v27, %v51
  %v64 = vsel %vm40, %v28, %v52
  %v65 = vsel %vm41, %v29, %v53
  %v66 = vsel %vm42, %v30, %v54
  %v67 = vsel %vm43, %v31, %v55
  %v68 = vsel %vm44, %v32, %v56
  %v69 = vsel %vm45, %v33, %v57
  %v70 = vsel %vm46, %v34, %v58
  %v71 = vpack.c.bf16 %v62, %v59
  %v72 = vpack.c.bf16 %v63, %v60
  %v73 = vpack.c.bf16 %v64, %v61
  %v74 = vpack.c.bf16 %v68, %v65
  %v75 = vpack.c.bf16 %v69, %v66
  %v76 = vpack.c.bf16 %v70, %v67
  %v77 = vld [vmem:[%s1] sm:$0xf]
  %v78 = vld [vmem:[%s1 + $0x4] sm:$0xf]
  %v79 = vld [vmem:[%s1 + $0x8] sm:$0xf]
  %v80 = vld [vmem:[%s1 + $0xc] sm:$0xf]
  %v81 = vld [vmem:[%s1 + $0x10] sm:$0xf]
  %v82 = vld [vmem:[%s1 + $0x14] sm:$0xf]
  %v83 = vld [vmem:[%s1 + $0x18] sm:$0xf]
  %v84 = vld [vmem:[%s1 + $0x1c] sm:$0xf]
  %v85 = vld [vmem:[%s1 + $0x20] sm:$0xf]
  %v86 = vld [vmem:[%s1 + $0x24] sm:$0xf]
  %v87 = vld [vmem:[%s1 + $0x28] sm:$0xf]
  %v88 = vld [vmem:[%s1 + $0x2c] sm:$0xf]
  %v89 = vld [vmem:[%s1 + $0x30] sm:$0xf]
  %v90 = vld [vmem:[%s1 + $0x34] sm:$0xf]
  %v91 = vld [vmem:[%s1 + $0x38] sm:$0xf]
  %v92 = vld [vmem:[%s1 + $0x3c] sm:$0xf]
  %v93 = vld [vmem:[%s1 + $0x40] sm:$0xf]
  %v94 = vld [vmem:[%s1 + $0x44] sm:$0xf]
  %v95 = vld [vmem:[%s1 + $0x48] sm:$0xf]
  %v96 = vld [vmem:[%s1 + $0x4c] sm:$0xf]
  %v97 = vld [vmem:[%s1 + $0x50] sm:$0xf]
  %v98 = vld [vmem:[%s1 + $0x54] sm:$0xf]
  %v99 = vld [vmem:[%s1 + $0x58] sm:$0xf]
  %v100 = vld [vmem:[%s1 + $0x5c] sm:$0xf]
  %v101 = vld [vmem:[%s1 + $0x60] sm:$0xf]
  %v102 = vld [vmem:[%s1 + $0x64] sm:$0xf]
  %v103 = vld [vmem:[%s1 + $0x68] sm:$0xf]
  %v104 = vld [vmem:[%s1 + $0x6c] sm:$0xf]
  %v105 = vld [vmem:[%s1 + $0x70] sm:$0xf]
  %v106 = vld [vmem:[%s1 + $0x74] sm:$0xf]
  %v107 = vld [vmem:[%s1 + $0x78] sm:$0xf]
  %v108 = vld [vmem:[%s1 + $0x7c] sm:$0xf]
  %v109 = vld [vmem:[%s1 + $0x80] sm:$0xf]
  %v110 = vld [vmem:[%s1 + $0x84] sm:$0xf]
  %v111 = vld [vmem:[%s1 + $0x88] sm:$0xf]
  %v112 = vld [vmem:[%s1 + $0x8c] sm:$0xf]
  %v113 = vld [vmem:[%s2] sm:$0x1]
  %v115 = vlaneseq
  %v116 = vshrl.u32 %v115, 7
  %v117 = vsub.s32 0, %v116
  %v118 = vrot.slane %v113, %v117
  %v156 = vunpack.c.l.b16 %v77
  %v157 = vunpack.c.l.b16 %v78
  %v158 = vunpack.c.l.b16 %v79
  %v159 = vunpack.c.l.b16 %v80
  %v160 = vunpack.c.l.b16 %v81
  %v161 = vunpack.c.l.b16 %v82
  %v162 = vunpack.c.l.b16 %v83
  %v163 = vunpack.c.l.b16 %v84
  %v164 = vunpack.c.l.b16 %v85
  %v165 = vunpack.c.l.b16 %v86
  %v166 = vunpack.c.l.b16 %v87
  %v167 = vunpack.c.l.b16 %v88
  %v168 = vunpack.c.l.b16 %v89
  %v169 = vunpack.c.l.b16 %v90
  %v170 = vunpack.c.l.b16 %v91
  %v171 = vunpack.c.l.b16 %v92
  %v172 = vunpack.c.l.b16 %v93
  %v173 = vunpack.c.l.b16 %v94
  %v174 = vunpack.c.l.b16 %v95
  %v175 = vunpack.c.l.b16 %v96
  %v176 = vunpack.c.l.b16 %v97
  %v177 = vunpack.c.l.b16 %v98
  %v178 = vunpack.c.l.b16 %v99
  %v179 = vunpack.c.l.b16 %v100
  %v180 = vunpack.c.l.b16 %v101
  %v181 = vunpack.c.l.b16 %v102
  %v182 = vunpack.c.l.b16 %v103
  %v183 = vunpack.c.l.b16 %v104
  %v184 = vunpack.c.l.b16 %v105
  %v185 = vunpack.c.l.b16 %v106
  %v186 = vunpack.c.l.b16 %v107
  %v187 = vunpack.c.l.b16 %v108
  %v188 = vunpack.c.l.b16 %v109
  %v189 = vunpack.c.l.b16 %v110
  %v190 = vunpack.c.l.b16 %v111
  %v191 = vunpack.c.l.b16 %v112
  %v192 = vpack.c.b16 %v157, %v156
  %v193 = vpack.c.b16 %v159, %v158
  %v194 = vpack.c.b16 %v161, %v160
  %v195 = vpack.c.b16 %v163, %v162
  %v196 = vpack.c.b16 %v165, %v164
  %v197 = vpack.c.b16 %v167, %v166
  %v198 = vpack.c.b16 %v169, %v168
  %v199 = vpack.c.b16 %v171, %v170
  %v200 = vpack.c.b16 %v173, %v172
  %v201 = vpack.c.b16 %v175, %v174
  %v202 = vpack.c.b16 %v177, %v176
  %v203 = vpack.c.b16 %v179, %v178
  %v204 = vpack.c.b16 %v181, %v180
  %v205 = vpack.c.b16 %v183, %v182
  %v206 = vpack.c.b16 %v185, %v184
  %v207 = vpack.c.b16 %v187, %v186
  %v208 = vpack.c.b16 %v189, %v188
  %v209 = vpack.c.b16 %v191, %v190
  %vm228 = vcmask 261120
  %v230 = vsel %vm228, %v73, 0
  %v233 = vsel %vm228, %v76, 0
  %235 = vmatprep.subr.bf16.mxu0 0
  %236 = vmatpush1.bf16.msra.mxu0 %v199
  %237 = vmatprep.subr.bf16.mxu0 0
  %238 = vmatpush1.bf16.msra.mxu0 %v198
  %239 = vmatprep.subr.bf16.mxu0 0
  %240 = vmatpush1.bf16.msra.mxu0 %v197
  %241 = vmatprep.subr.bf16.mxu0 0
  %242 = vmatpush1.bf16.msra.mxu0 %v196
  %243 = vmatprep.subr.bf16.mxu0 0
  %244 = vmatpush1.bf16.msra.mxu0 %v195
  %245 = vmatprep.subr.bf16.mxu0 0
  %246 = vmatpush1.bf16.msra.mxu0 %v194
  %247 = vmatprep.subr.bf16.mxu0 0
  %248 = vmatpush1.bf16.msra.mxu0 %v193
  %249 = vmatprep.subr.bf16.mxu0 0
  %250 = vmatpush1.bf16.msra.mxu0 %v192
  %251 = vmatprep.subr.bf16.mxu0 0
  %252 = vmatpush2.bf16.msra.mxu0 %v207
  %253 = vmatprep.subr.bf16.mxu0 0
  %254 = vmatpush2.bf16.msra.mxu0 %v206
  %255 = vmatprep.subr.bf16.mxu0 0
  %256 = vmatpush2.bf16.msra.mxu0 %v205
  %257 = vmatprep.subr.bf16.mxu0 0
  %258 = vmatpush2.bf16.msra.mxu0 %v204
  %259 = vmatprep.subr.bf16.mxu0 0
  %260 = vmatpush2.bf16.msra.mxu0 %v203
  %261 = vmatprep.subr.bf16.mxu0 0
  %262 = vmatpush2.bf16.msra.mxu0 %v202
  %263 = vmatprep.subr.bf16.mxu0 0
  %264 = vmatpush2.bf16.msra.mxu0 %v201
  %265 = vmatprep.subr.bf16.mxu0 0
  %266 = vmatpush2.bf16.msra.mxu0 %v200
  %267 = vmatprep.mubr.bf16.mxu0 %v72
  %268 = vmatmul.mubr.bf16.gmra.mxu0 %v71
  %v269 = vpop.f32.mrf.mxu0
  %v270 = vadd.f32 %v118, %v269
  %v271 = vpop.f32.mrf.mxu0
  %v272 = vpop.f32.mrf.mxu0
  %v273 = vadd.f32 %v118, %v272
  %v274 = vpop.f32.mrf.mxu0
  %275 = vmatprep.mubr.bf16.mxu0 %v75
  %276 = vmatmul.mubr.bf16.gmra.mxu0 %v74
  %v277 = vpop.f32.mrf.mxu0
  %v278 = vadd.f32 %v118, %v277
  %v279 = vpop.f32.mrf.mxu0
  %v280 = vpop.f32.mrf.mxu0
  %v281 = vadd.f32 %v118, %v280
  %v282 = vpop.f32.mrf.mxu0
  %283 = vdwg.mxu0
  %284 = vmatprep.subr.bf16.mxu0 0
  %285 = vmatpush1.bf16.msra.mxu0 0
  %286 = vmatprep.subr.bf16.mxu0 0
  %287 = vmatpush1.bf16.msra.mxu0 0
  %288 = vmatprep.subr.bf16.mxu0 0
  %289 = vmatpush1.bf16.msra.mxu0 0
  %290 = vmatprep.subr.bf16.mxu0 0
  %291 = vmatpush1.bf16.msra.mxu0 0
  %292 = vmatprep.subr.bf16.mxu0 0
  %293 = vmatpush1.bf16.msra.mxu0 0
  %294 = vmatprep.subr.bf16.mxu0 0
  %295 = vmatpush1.bf16.msra.mxu0 0
  %296 = vmatprep.subr.bf16.mxu0 0
  %297 = vmatpush1.bf16.msra.mxu0 %v209
  %298 = vmatprep.subr.bf16.mxu0 0
  %299 = vmatpush1.bf16.msra.mxu0 %v208
  %300 = vmatprep.subr.bf16.mxu0 0
  %301 = vmatpush2.bf16.msra.mxu0 0
  %302 = vmatprep.subr.bf16.mxu0 0
  %303 = vmatpush2.bf16.msra.mxu0 0
  %304 = vmatprep.subr.bf16.mxu0 0
  %305 = vmatpush2.bf16.msra.mxu0 0
  %306 = vmatprep.subr.bf16.mxu0 0
  %307 = vmatpush2.bf16.msra.mxu0 0
  %308 = vmatprep.subr.bf16.mxu0 0
  %309 = vmatpush2.bf16.msra.mxu0 0
  %310 = vmatprep.subr.bf16.mxu0 0
  %311 = vmatpush2.bf16.msra.mxu0 0
  %312 = vmatprep.subr.bf16.mxu0 0
  %313 = vmatpush2.bf16.msra.mxu0 0
  %314 = vmatprep.subr.bf16.mxu0 0
  %315 = vmatpush2.bf16.msra.mxu0 0
  %316 = vmatprep.mubr.bf16.mxu0 0
  %317 = vmatmul.mubr.bf16.gmra.mxu0 %v230
  %v318 = vpop.f32.mrf.mxu0
  %v319 = vadd.f32 %v270, %v318
  %v320 = vpop.f32.mrf.mxu0
  %v321 = vpop.f32.mrf.mxu0
  %v322 = vadd.f32 %v273, %v321
  %v323 = vpop.f32.mrf.mxu0
  %324 = vmatprep.mubr.bf16.mxu0 0
  %325 = vmatmul.mubr.bf16.gmra.mxu0 %v233
  %v326 = vpop.f32.mrf.mxu0
  %v327 = vadd.f32 %v278, %v326
  %v328 = vpop.f32.mrf.mxu0
  %v329 = vpop.f32.mrf.mxu0
  %v330 = vadd.f32 %v281, %v329
  %v331 = vpop.f32.mrf.mxu0
  %332 = vdwg.mxu0
  %v333 = vpack.c.bf16 %v322, %v319
  %v334 = vpack.c.bf16 %v330, %v327
  %v337 = vunpack.c.l.b16 %v333
  %v338 = vunpack.c.h.b16 %v333
  %v339 = vunpack.c.l.b16 %v334
  %v340 = vunpack.c.h.b16 %v334
  %v341 = vpack.c.b16 %v337, %v337
  %v342 = vpack.c.b16 %v338, %v338
  %v343 = vpack.c.b16 %v339, %v339
  %v344 = vpack.c.b16 %v340, %v340
  %349 = vst [vmem:[%s3] sm:$0xf] %v341
  %350 = vst [vmem:[%s3 + $0x4] sm:$0xf] %v342
  %351 = vst [vmem:[%s3 + $0x8] sm:$0xf] %v343
  %352 = vst [vmem:[%s3 + $0xc] sm:$0xf] %v344
  // Predicated region
  $region14: #{_lambda_.11} parent=0 // pred_check
    _
  $region15: #{_lambda_.11} parent=0 // pred_check_branch
    %354 = sbr.rel (0) target = $region17
  $region16: #{_lambda_.11} parent=0 // pred_region
    _
  $region17: #{_lambda_.11} parent=0 // pred_fallthru
    _
  // Predicated region
  $region18: #{_lambda_.11} parent=0 // pred_check
    _
  $region19: #{_lambda_.11} parent=0 // pred_check_branch
    %356 = sbr.rel (0) target = $region21
  $region20: #{_lambda_.11} parent=0 // pred_region
    _
  $region21: #{_lambda_.11} parent=0 // pred_fallthru
    _

// kernel: _lambda_.13
$region0: #{_lambda_.13}
  #allocation0 [shape = 'u32[]', space=smem, size = 0x4, offset = 0x4, fixed_abs, tag = 'smem constant byte address 0x4 - core index']
  #allocation1 [shape = 'u32[144,128]{1,0:T(1,128)}', space=vmem, size = 0x12000, scoped, tag = 'internal scratch']
  %s0 = inlined_call_operand.vmem [shape: bf16[1,8,64], index: 0, kind: input, shape index: {}]
  %s1 = inlined_call_operand.vmem [shape: bf16[1,64,128], index: 1, kind: input, shape index: {}]
  %s2 = inlined_call_operand.vmem [shape: f32[1,128], index: 2, kind: input, shape index: {}]
  %s3 = inlined_call_operand.vmem [shape: bf16[1,8,128], index: 3, kind: output, shape index: {}]
  %s4 = sld [smem:[#allocation0]]
  $region22: #{_lambda_.13} parent=0
    _
  %s6 = ssub.s32 1, %s4
  %s7 = scalar_select 0, %s6, %s4
  // Predicated region
  $region2: #{_lambda_.13} parent=0 // pred_check
    _
  $region3: #{_lambda_.13} parent=0 // pred_check_branch
    %9 = sbr.rel (0) target = $region5
  $region4: #{_lambda_.13} parent=0 // pred_region
    _
  $region5: #{_lambda_.13} parent=0 // pred_fallthru
    _
  // Predicated region
  $region6: #{_lambda_.13} parent=0 // pred_check
    _
  $region7: #{_lambda_.13} parent=0 // pred_check_branch
    %11 = sbr.rel (0) target = $region9
  $region8: #{_lambda_.13} parent=0 // pred_region
    _
  $region9: #{_lambda_.13} parent=0 // pred_fallthru
    _
  // Predicated region
  $region10: #{_lambda_.13} parent=0 // pred_check
    _
  $region11: #{_lambda_.13} parent=0 // pred_check_branch
    %13 = sbr.rel (0) target = $region13
  $region12: #{_lambda_.13} parent=0 // pred_region
    _
  $region13: #{_lambda_.13} parent=0 // pred_fallthru
    _
  %v15 = vld [vmem:[%s0] sm:$0xf]
  %v16 = vunpack.c.l.bf16 %v15
  %vm17 = vcmp.ge.f32.partialorder %v16, 0.0
  %v18 = vmul.f32 %v16, 0.2
  %v19 = vsel %vm17, %v16, %v18
  %v20 = vpack.c.bf16 %v19, %v19
  %v21 = vld [vmem:[%s1] sm:$0xf]
  %v22 = vld [vmem:[%s1 + $0x4] sm:$0xf]
  %v23 = vld [vmem:[%s1 + $0x8] sm:$0xf]
  %v24 = vld [vmem:[%s1 + $0xc] sm:$0xf]
  %v25 = vld [vmem:[%s1 + $0x10] sm:$0xf]
  %v26 = vld [vmem:[%s1 + $0x14] sm:$0xf]
  %v27 = vld [vmem:[%s1 + $0x18] sm:$0xf]
  %v28 = vld [vmem:[%s1 + $0x1c] sm:$0xf]
  %v29 = vld [vmem:[%s2] sm:$0x1]
  %v31 = vlaneseq
  %v32 = vshrl.u32 %v31, 7
  %v33 = vsub.s32 0, %v32
  %v34 = vrot.slane %v29, %v33
  %v44 = vunpack.c.l.b16 %v21
  %v45 = vunpack.c.l.b16 %v22
  %v46 = vunpack.c.l.b16 %v23
  %v47 = vunpack.c.l.b16 %v24
  %v48 = vunpack.c.l.b16 %v25
  %v49 = vunpack.c.l.b16 %v26
  %v50 = vunpack.c.l.b16 %v27
  %v51 = vunpack.c.l.b16 %v28
  %v52 = vpack.c.b16 %v45, %v44
  %v53 = vpack.c.b16 %v47, %v46
  %v54 = vpack.c.b16 %v49, %v48
  %v55 = vpack.c.b16 %v51, %v50
  %vm60 = vcmask 523264
  %v62 = vsel %vm60, %v20, 0
  %64 = vmatprep.subr.bf16.mxu0 0
  %65 = vmatpush1.bf16.msra.mxu0 0
  %66 = vmatprep.subr.bf16.mxu0 0
  %67 = vmatpush1.bf16.msra.mxu0 0
  %68 = vmatprep.subr.bf16.mxu0 0
  %69 = vmatpush1.bf16.msra.mxu0 0
  %70 = vmatprep.subr.bf16.mxu0 0
  %71 = vmatpush1.bf16.msra.mxu0 0
  %72 = vmatprep.subr.bf16.mxu0 0
  %73 = vmatpush1.bf16.msra.mxu0 %v55
  %74 = vmatprep.subr.bf16.mxu0 0
  %75 = vmatpush1.bf16.msra.mxu0 %v54
  %76 = vmatprep.subr.bf16.mxu0 0
  %77 = vmatpush1.bf16.msra.mxu0 %v53
  %78 = vmatprep.subr.bf16.mxu0 0
  %79 = vmatpush1.bf16.msra.mxu0 %v52
  %80 = vmatprep.subr.bf16.mxu0 0
  %81 = vmatpush2.bf16.msra.mxu0 0
  %82 = vmatprep.subr.bf16.mxu0 0
  %83 = vmatpush2.bf16.msra.mxu0 0
  %84 = vmatprep.subr.bf16.mxu0 0
  %85 = vmatpush2.bf16.msra.mxu0 0
  %86 = vmatprep.subr.bf16.mxu0 0
  %87 = vmatpush2.bf16.msra.mxu0 0
  %88 = vmatprep.subr.bf16.mxu0 0
  %89 = vmatpush2.bf16.msra.mxu0 0
  %90 = vmatprep.subr.bf16.mxu0 0
  %91 = vmatpush2.bf16.msra.mxu0 0
  %92 = vmatprep.subr.bf16.mxu0 0
  %93 = vmatpush2.bf16.msra.mxu0 0
  %94 = vmatprep.subr.bf16.mxu0 0
  %95 = vmatpush2.bf16.msra.mxu0 0
  %96 = vmatprep.mubr.bf16.mxu0 0
  %97 = vmatmul.mubr.bf16.gmra.mxu0 %v62
  %v98 = vpop.f32.mrf.mxu0
  %v99 = vadd.f32 %v34, %v98
  %v100 = vpop.f32.mrf.mxu0
  %v101 = vpop.f32.mrf.mxu0
  %v102 = vpop.f32.mrf.mxu0
  %103 = vdwg.mxu0
  %v104 = vmax.f32 %v99, 0.0
  %v105 = vpack.c.bf16 %v104, %v104
  %106 = vst [vmem:[%s3] sm:$0xf] %v105
  // Predicated region
  $region14: #{_lambda_.13} parent=0 // pred_check
    _
  $region15: #{_lambda_.13} parent=0 // pred_check_branch
    %108 = sbr.rel (0) target = $region17
  $region16: #{_lambda_.13} parent=0 // pred_region
    _
  $region17: #{_lambda_.13} parent=0 // pred_fallthru
    _
  // Predicated region
  $region18: #{_lambda_.13} parent=0 // pred_check
    _
  $region19: #{_lambda_.13} parent=0 // pred_check_branch
    %110 = sbr.rel (0) target = $region21
  $region20: #{_lambda_.13} parent=0 // pred_region
    _
  $region21: #{_lambda_.13} parent=0 // pred_fallthru
    _

// kernel: _lambda_.12
$region0: #{_lambda_.12}
  #allocation0 [shape = 'u32[]', space=smem, size = 0x4, offset = 0x4, fixed_abs, tag = 'smem constant byte address 0x4 - core index']
  #allocation1 [shape = 'u32[144,128]{1,0:T(1,128)}', space=vmem, size = 0x12000, scoped, tag = 'internal scratch']
  %s0 = inlined_call_operand.vmem [shape: bf16[1,8,576], index: 0, kind: input, shape index: {}]
  %s1 = inlined_call_operand.vmem [shape: bf16[1,576,128], index: 1, kind: input, shape index: {}]
  %s2 = inlined_call_operand.vmem [shape: f32[1,128], index: 2, kind: input, shape index: {}]
  %s3 = inlined_call_operand.vmem [shape: bf16[1,8,128], index: 3, kind: output, shape index: {}]
  %s4 = sld [smem:[#allocation0]]
  $region22: #{_lambda_.12} parent=0
    _
  %s6 = ssub.s32 1, %s4
  %s7 = scalar_select 0, %s6, %s4
  // Predicated region
  $region2: #{_lambda_.12} parent=0 // pred_check
    _
  $region3: #{_lambda_.12} parent=0 // pred_check_branch
    %9 = sbr.rel (0) target = $region5
  $region4: #{_lambda_.12} parent=0 // pred_region
    _
  $region5: #{_lambda_.12} parent=0 // pred_fallthru
    _
  // Predicated region
  $region6: #{_lambda_.12} parent=0 // pred_check
    _
  $region7: #{_lambda_.12} parent=0 // pred_check_branch
    %11 = sbr.rel (0) target = $region9
  $region8: #{_lambda_.12} parent=0 // pred_region
    _
  $region9: #{_lambda_.12} parent=0 // pred_fallthru
    _
  // Predicated region
  $region10: #{_lambda_.12} parent=0 // pred_check
    _
  $region11: #{_lambda_.12} parent=0 // pred_check_branch
    %13 = sbr.rel (0) target = $region13
  $region12: #{_lambda_.12} parent=0 // pred_region
    _
  $region13: #{_lambda_.12} parent=0 // pred_fallthru
    _
  %v15 = vld [vmem:[%s0] sm:$0xff]
  %v16 = vld [vmem:[%s0 + $0x8] sm:$0xff]
  %v17 = vld [vmem:[%s0 + $0x10] sm:$0xf]
  %v18 = vunpack.c.l.bf16 %v15
  %v19 = vunpack.c.h.bf16 %v15
  %v20 = vunpack.c.l.bf16 %v16
  %v21 = vunpack.c.h.bf16 %v16
  %v22 = vunpack.c.l.bf16 %v17
  %vm23 = vcmp.ge.f32.partialorder %v18, 0.0
  %vm24 = vcmp.ge.f32.partialorder %v19, 0.0
  %vm25 = vcmp.ge.f32.partialorder %v20, 0.0
  %vm26 = vcmp.ge.f32.partialorder %v21, 0.0
  %vm27 = vcmp.ge.f32.partialorder %v22, 0.0
  %v28 = vmul.f32 %v18, 0.2
  %v29 = vmul.f32 %v19, 0.2
  %v30 = vmul.f32 %v20, 0.2
  %v31 = vmul.f32 %v21, 0.2
  %v32 = vmul.f32 %v22, 0.2
  %v33 = vsel %vm23, %v18, %v28
  %v34 = vsel %vm24, %v19, %v29
  %v35 = vsel %vm25, %v20, %v30
  %v36 = vsel %vm26, %v21, %v31
  %v37 = vsel %vm27, %v22, %v32
  %v38 = vpack.c.bf16 %v33, %v33
  %v39 = vpack.c.bf16 %v34, %v34
  %v40 = vpack.c.bf16 %v35, %v35
  %v41 = vpack.c.bf16 %v36, %v36
  %v42 = vpack.c.bf16 %v37, %v37
  %v43 = vld [vmem:[%s1] sm:$0xf]
  %v44 = vld [vmem:[%s1 + $0x4] sm:$0xf]
  %v45 = vld [vmem:[%s1 + $0x8] sm:$0xf]
  %v46 = vld [vmem:[%s1 + $0xc] sm:$0xf]
  %v47 = vld [vmem:[%s1 + $0x10] sm:$0xf]
  %v48 = vld [vmem:[%s1 + $0x14] sm:$0xf]
  %v49 = vld [vmem:[%s1 + $0x18] sm:$0xf]
  %v50 = vld [vmem:[%s1 + $0x1c] sm:$0xf]
  %v51 = vld [vmem:[%s1 + $0x20] sm:$0xf]
  %v52 = vld [vmem:[%s1 + $0x24] sm:$0xf]
  %v53 = vld [vmem:[%s1 + $0x28] sm:$0xf]
  %v54 = vld [vmem:[%s1 + $0x2c] sm:$0xf]
  %v55 = vld [vmem:[%s1 + $0x30] sm:$0xf]
  %v56 = vld [vmem:[%s1 + $0x34] sm:$0xf]
  %v57 = vld [vmem:[%s1 + $0x38] sm:$0xf]
  %v58 = vld [vmem:[%s1 + $0x3c] sm:$0xf]
  %v59 = vld [vmem:[%s1 + $0x40] sm:$0xf]
  %v60 = vld [vmem:[%s1 + $0x44] sm:$0xf]
  %v61 = vld [vmem:[%s1 + $0x48] sm:$0xf]
  %v62 = vld [vmem:[%s1 + $0x4c] sm:$0xf]
  %v63 = vld [vmem:[%s1 + $0x50] sm:$0xf]
  %v64 = vld [vmem:[%s1 + $0x54] sm:$0xf]
  %v65 = vld [vmem:[%s1 + $0x58] sm:$0xf]
  %v66 = vld [vmem:[%s1 + $0x5c] sm:$0xf]
  %v67 = vld [vmem:[%s1 + $0x60] sm:$0xf]
  %v68 = vld [vmem:[%s1 + $0x64] sm:$0xf]
  %v69 = vld [vmem:[%s1 + $0x68] sm:$0xf]
  %v70 = vld [vmem:[%s1 + $0x6c] sm:$0xf]
  %v71 = vld [vmem:[%s1 + $0x70] sm:$0xf]
  %v72 = vld [vmem:[%s1 + $0x74] sm:$0xf]
  %v73 = vld [vmem:[%s1 + $0x78] sm:$0xf]
  %v74 = vld [vmem:[%s1 + $0x7c] sm:$0xf]
  %v75 = vld [vmem:[%s1 + $0x80] sm:$0xf]
  %v76 = vld [vmem:[%s1 + $0x84] sm:$0xf]
  %v77 = vld [vmem:[%s1 + $0x88] sm:$0xf]
  %v78 = vld [vmem:[%s1 + $0x8c] sm:$0xf]
  %v79 = vld [vmem:[%s1 + $0x90] sm:$0xf]
  %v80 = vld [vmem:[%s1 + $0x94] sm:$0xf]
  %v81 = vld [vmem:[%s1 + $0x98] sm:$0xf]
  %v82 = vld [vmem:[%s1 + $0x9c] sm:$0xf]
  %v83 = vld [vmem:[%s1 + $0xa0] sm:$0xf]
  %v84 = vld [vmem:[%s1 + $0xa4] sm:$0xf]
  %v85 = vld [vmem:[%s1 + $0xa8] sm:$0xf]
  %v86 = vld [vmem:[%s1 + $0xac] sm:$0xf]
  %v87 = vld [vmem:[%s1 + $0xb0] sm:$0xf]
  %v88 = vld [vmem:[%s1 + $0xb4] sm:$0xf]
  %v89 = vld [vmem:[%s1 + $0xb8] sm:$0xf]
  %v90 = vld [vmem:[%s1 + $0xbc] sm:$0xf]
  %v91 = vld [vmem:[%s1 + $0xc0] sm:$0xf]
  %v92 = vld [vmem:[%s1 + $0xc4] sm:$0xf]
  %v93 = vld [vmem:[%s1 + $0xc8] sm:$0xf]
  %v94 = vld [vmem:[%s1 + $0xcc] sm:$0xf]
  %v95 = vld [vmem:[%s1 + $0xd0] sm:$0xf]
  %v96 = vld [vmem:[%s1 + $0xd4] sm:$0xf]
  %v97 = vld [vmem:[%s1 + $0xd8] sm:$0xf]
  %v98 = vld [vmem:[%s1 + $0xdc] sm:$0xf]
  %v99 = vld [vmem:[%s1 + $0xe0] sm:$0xf]
  %v100 = vld [vmem:[%s1 + $0xe4] sm:$0xf]
  %v101 = vld [vmem:[%s1 + $0xe8] sm:$0xf]
  %v102 = vld [vmem:[%s1 + $0xec] sm:$0xf]
  %v103 = vld [vmem:[%s1 + $0xf0] sm:$0xf]
  %v104 = vld [vmem:[%s1 + $0xf4] sm:$0xf]
  %v105 = vld [vmem:[%s1 + $0xf8] sm:$0xf]
  %v106 = vld [vmem:[%s1 + $0xfc] sm:$0xf]
  %v107 = vld [vmem:[%s1 + $0x100] sm:$0xf]
  %v108 = vld [vmem:[%s1 + $0x104] sm:$0xf]
  %v109 = vld [vmem:[%s1 + $0x108] sm:$0xf]
  %v110 = vld [vmem:[%s1 + $0x10c] sm:$0xf]
  %v111 = vld [vmem:[%s1 + $0x110] sm:$0xf]
  %v112 = vld [vmem:[%s1 + $0x114] sm:$0xf]
  %v113 = vld [vmem:[%s1 + $0x118] sm:$0xf]
  %v114 = vld [vmem:[%s1 + $0x11c] sm:$0xf]
  %v115 = vld [vmem:[%s2] sm:$0x1]
  %v117 = vlaneseq
  %v118 = vshrl.u32 %v117, 7
  %v119 = vsub.s32 0, %v118
  %v120 = vrot.slane %v115, %v119
  %v194 = vunpack.c.l.b16 %v43
  %v195 = vunpack.c.l.b16 %v44
  %v196 = vunpack.c.l.b16 %v45
  %v197 = vunpack.c.l.b16 %v46
  %v198 = vunpack.c.l.b16 %v47
  %v199 = vunpack.c.l.b16 %v48
  %v200 = vunpack.c.l.b16 %v49
  %v201 = vunpack.c.l.b16 %v50
  %v202 = vunpack.c.l.b16 %v51
  %v203 = vunpack.c.l.b16 %v52
  %v204 = vunpack.c.l.b16 %v53
  %v205 = vunpack.c.l.b16 %v54
  %v206 = vunpack.c.l.b16 %v55
  %v207 = vunpack.c.l.b16 %v56
  %v208 = vunpack.c.l.b16 %v57
  %v209 = vunpack.c.l.b16 %v58
  %v210 = vunpack.c.l.b16 %v59
  %v211 = vunpack.c.l.b16 %v60
  %v212 = vunpack.c.l.b16 %v61
  %v213 = vunpack.c.l.b16 %v62
  %v214 = vunpack.c.l.b16 %v63
  %v215 = vunpack.c.l.b16 %v64
  %v216 = vunpack.c.l.b16 %v65
  %v217 = vunpack.c.l.b16 %v66
  %v218 = vunpack.c.l.b16 %v67
  %v219 = vunpack.c.l.b16 %v68
  %v220 = vunpack.c.l.b16 %v69
  %v221 = vunpack.c.l.b16 %v70
  %v222 = vunpack.c.l.b16 %v71
  %v223 = vunpack.c.l.b16 %v72
  %v224 = vunpack.c.l.b16 %v73
  %v225 = vunpack.c.l.b16 %v74
  %v226 = vunpack.c.l.b16 %v75
  %v227 = vunpack.c.l.b16 %v76
  %v228 = vunpack.c.l.b16 %v77
  %v229 = vunpack.c.l.b16 %v78
  %v230 = vunpack.c.l.b16 %v79
  %v231 = vunpack.c.l.b16 %v80
  %v232 = vunpack.c.l.b16 %v81
  %v233 = vunpack.c.l.b16 %v82
  %v234 = vunpack.c.l.b16 %v83
  %v235 = vunpack.c.l.b16 %v84
  %v236 = vunpack.c.l.b16 %v85
  %v237 = vunpack.c.l.b16 %v86
  %v238 = vunpack.c.l.b16 %v87
  %v239 = vunpack.c.l.b16 %v88
  %v240 = vunpack.c.l.b16 %v89
  %v241 = vunpack.c.l.b16 %v90
  %v242 = vunpack.c.l.b16 %v91
  %v243 = vunpack.c.l.b16 %v92
  %v244 = vunpack.c.l.b16 %v93
  %v245 = vunpack.c.l.b16 %v94
  %v246 = vunpack.c.l.b16 %v95
  %v247 = vunpack.c.l.b16 %v96
  %v248 = vunpack.c.l.b16 %v97
  %v249 = vunpack.c.l.b16 %v98
  %v250 = vunpack.c.l.b16 %v99
  %v251 = vunpack.c.l.b16 %v100
  %v252 = vunpack.c.l.b16 %v101
  %v253 = vunpack.c.l.b16 %v102
  %v254 = vunpack.c.l.b16 %v103
  %v255 = vunpack.c.l.b16 %v104
  %v256 = vunpack.c.l.b16 %v105
  %v257 = vunpack.c.l.b16 %v106
  %v258 = vunpack.c.l.b16 %v107
  %v259 = vunpack.c.l.b16 %v108
  %v260 = vunpack.c.l.b16 %v109
  %v261 = vunpack.c.l.b16 %v110
  %v262 = vunpack.c.l.b16 %v111
  %v263 = vunpack.c.l.b16 %v112
  %v264 = vunpack.c.l.b16 %v113
  %v265 = vunpack.c.l.b16 %v114
  %v266 = vpack.c.b16 %v195, %v194
  %v267 = vpack.c.b16 %v197, %v196
  %v268 = vpack.c.b16 %v199, %v198
  %v269 = vpack.c.b16 %v201, %v200
  %v270 = vpack.c.b16 %v203, %v202
  %v271 = vpack.c.b16 %v205, %v204
  %v272 = vpack.c.b16 %v207, %v206
  %v273 = vpack.c.b16 %v209, %v208
  %v274 = vpack.c.b16 %v211, %v210
  %v275 = vpack.c.b16 %v213, %v212
  %v276 = vpack.c.b16 %v215, %v214
  %v277 = vpack.c.b16 %v217, %v216
  %v278 = vpack.c.b16 %v219, %v218
  %v279 = vpack.c.b16 %v221, %v220
  %v280 = vpack.c.b16 %v223, %v222
  %v281 = vpack.c.b16 %v225, %v224
  %v282 = vpack.c.b16 %v227, %v226
  %v283 = vpack.c.b16 %v229, %v228
  %v284 = vpack.c.b16 %v231, %v230
  %v285 = vpack.c.b16 %v233, %v232
  %v286 = vpack.c.b16 %v235, %v234
  %v287 = vpack.c.b16 %v237, %v236
  %v288 = vpack.c.b16 %v239, %v238
  %v289 = vpack.c.b16 %v241, %v240
  %v290 = vpack.c.b16 %v243, %v242
  %v291 = vpack.c.b16 %v245, %v244
  %v292 = vpack.c.b16 %v247, %v246
  %v293 = vpack.c.b16 %v249, %v248
  %v294 = vpack.c.b16 %v251, %v250
  %v295 = vpack.c.b16 %v253, %v252
  %v296 = vpack.c.b16 %v255, %v254
  %v297 = vpack.c.b16 %v257, %v256
  %v298 = vpack.c.b16 %v259, %v258
  %v299 = vpack.c.b16 %v261, %v260
  %v300 = vpack.c.b16 %v263, %v262
  %v301 = vpack.c.b16 %v265, %v264
  %vm338 = vcmask 523264
  %v340 = vsel %vm338, %v42, 0
  %342 = vmatprep.subr.bf16.mxu0 0
  %343 = vmatpush1.bf16.msra.mxu0 %v273
  %344 = vmatprep.subr.bf16.mxu0 0
  %345 = vmatpush1.bf16.msra.mxu0 %v272
  %346 = vmatprep.subr.bf16.mxu0 0
  %347 = vmatpush1.bf16.msra.mxu0 %v271
  %348 = vmatprep.subr.bf16.mxu0 0
  %349 = vmatpush1.bf16.msra.mxu0 %v270
  %350 = vmatprep.subr.bf16.mxu0 0
  %351 = vmatpush1.bf16.msra.mxu0 %v269
  %352 = vmatprep.subr.bf16.mxu0 0
  %353 = vmatpush1.bf16.msra.mxu0 %v268
  %354 = vmatprep.subr.bf16.mxu0 0
  %355 = vmatpush1.bf16.msra.mxu0 %v267
  %356 = vmatprep.subr.bf16.mxu0 0
  %357 = vmatpush1.bf16.msra.mxu0 %v266
  %358 = vmatprep.subr.bf16.mxu0 0
  %359 = vmatpush2.bf16.msra.mxu0 %v281
  %360 = vmatprep.subr.bf16.mxu0 0
  %361 = vmatpush2.bf16.msra.mxu0 %v280
  %362 = vmatprep.subr.bf16.mxu0 0
  %363 = vmatpush2.bf16.msra.mxu0 %v279
  %364 = vmatprep.subr.bf16.mxu0 0
  %365 = vmatpush2.bf16.msra.mxu0 %v278
  %366 = vmatprep.subr.bf16.mxu0 0
  %367 = vmatpush2.bf16.msra.mxu0 %v277
  %368 = vmatprep.subr.bf16.mxu0 0
  %369 = vmatpush2.bf16.msra.mxu0 %v276
  %370 = vmatprep.subr.bf16.mxu0 0
  %371 = vmatpush2.bf16.msra.mxu0 %v275
  %372 = vmatprep.subr.bf16.mxu0 0
  %373 = vmatpush2.bf16.msra.mxu0 %v274
  %374 = vmatprep.mubr.bf16.mxu0 %v39
  %375 = vmatmul.mubr.bf16.gmra.mxu0 %v38
  %v376 = vpop.f32.mrf.mxu0
  %v377 = vadd.f32 %v120, %v376
  %v378 = vpop.f32.mrf.mxu0
  %v379 = vpop.f32.mrf.mxu0
  %v380 = vpop.f32.mrf.mxu0
  %381 = vdwg.mxu0
  %382 = vmatprep.subr.bf16.mxu0 0
  %383 = vmatpush1.bf16.msra.mxu0 %v289
  %384 = vmatprep.subr.bf16.mxu0 0
  %385 = vmatpush1.bf16.msra.mxu0 %v288
  %386 = vmatprep.subr.bf16.mxu0 0
  %387 = vmatpush1.bf16.msra.mxu0 %v287
  %388 = vmatprep.subr.bf16.mxu0 0
  %389 = vmatpush1.bf16.msra.mxu0 %v286
  %390 = vmatprep.subr.bf16.mxu0 0
  %391 = vmatpush1.bf16.msra.mxu0 %v285
  %392 = vmatprep.subr.bf16.mxu0 0
  %393 = vmatpush1.bf16.msra.mxu0 %v284
  %394 = vmatprep.subr.bf16.mxu0 0
  %395 = vmatpush1.bf16.msra.mxu0 %v283
  %396 = vmatprep.subr.bf16.mxu0 0
  %397 = vmatpush1.bf16.msra.mxu0 %v282
  %398 = vmatprep.subr.bf16.mxu0 0
  %399 = vmatpush2.bf16.msra.mxu0 %v297
  %400 = vmatprep.subr.bf16.mxu0 0
  %401 = vmatpush2.bf16.msra.mxu0 %v296
  %402 = vmatprep.subr.bf16.mxu0 0
  %403 = vmatpush2.bf16.msra.mxu0 %v295
  %404 = vmatprep.subr.bf16.mxu0 0
  %405 = vmatpush2.bf16.msra.mxu0 %v294
  %406 = vmatprep.subr.bf16.mxu0 0
  %407 = vmatpush2.bf16.msra.mxu0 %v293
  %408 = vmatprep.subr.bf16.mxu0 0
  %409 = vmatpush2.bf16.msra.mxu0 %v292
  %410 = vmatprep.subr.bf16.mxu0 0
  %411 = vmatpush2.bf16.msra.mxu0 %v291
  %412 = vmatprep.subr.bf16.mxu0 0
  %413 = vmatpush2.bf16.msra.mxu0 %v290
  %414 = vmatprep.mubr.bf16.mxu0 %v41
  %415 = vmatmul.mubr.bf16.gmra.mxu0 %v40
  %v416 = vpop.f32.mrf.mxu0
  %v417 = vadd.f32 %v377, %v416
  %v418 = vpop.f32.mrf.mxu0
  %v419 = vpop.f32.mrf.mxu0
  %v420 = vpop.f32.mrf.mxu0
  %421 = vdwg.mxu0
  %422 = vmatprep.subr.bf16.mxu0 0
  %423 = vmatpush1.bf16.msra.mxu0 0
  %424 = vmatprep.subr.bf16.mxu0 0
  %425 = vmatpush1.bf16.msra.mxu0 0
  %426 = vmatprep.subr.bf16.mxu0 0
  %427 = vmatpush1.bf16.msra.mxu0 0
  %428 = vmatprep.subr.bf16.mxu0 0
  %429 = vmatpush1.bf16.msra.mxu0 0
  %430 = vmatprep.subr.bf16.mxu0 0
  %431 = vmatpush1.bf16.msra.mxu0 %v301
  %432 = vmatprep.subr.bf16.mxu0 0
  %433 = vmatpush1.bf16.msra.mxu0 %v300
  %434 = vmatprep.subr.bf16.mxu0 0
  %435 = vmatpush1.bf16.msra.mxu0 %v299
  %436 = vmatprep.subr.bf16.mxu0 0
  %437 = vmatpush1.bf16.msra.mxu0 %v298
  %438 = vmatprep.subr.bf16.mxu0 0
  %439 = vmatpush2.bf16.msra.mxu0 0
  %440 = vmatprep.subr.bf16.mxu0 0
  %441 = vmatpush2.bf16.msra.mxu0 0
  %442 = vmatprep.subr.bf16.mxu0 0
  %443 = vmatpush2.bf16.msra.mxu0 0
  %444 = vmatprep.subr.bf16.mxu0 0
  %445 = vmatpush2.bf16.msra.mxu0 0
  %446 = vmatprep.subr.bf16.mxu0 0
  %447 = vmatpush2.bf16.msra.mxu0 0
  %448 = vmatprep.subr.bf16.mxu0 0
  %449 = vmatpush2.bf16.msra.mxu0 0
  %450 = vmatprep.subr.bf16.mxu0 0
  %451 = vmatpush2.bf16.msra.mxu0 0
  %452 = vmatprep.subr.bf16.mxu0 0
  %453 = vmatpush2.bf16.msra.mxu0 0
  %454 = vmatprep.mubr.bf16.mxu0 0
  %455 = vmatmul.mubr.bf16.gmra.mxu0 %v340
  %v456 = vpop.f32.mrf.mxu0
  %v457 = vadd.f32 %v417, %v456
  %v458 = vpop.f32.mrf.mxu0
  %v459 = vpop.f32.mrf.mxu0
  %v460 = vpop.f32.mrf.mxu0
  %461 = vdwg.mxu0
  %v462 = vpack.c.bf16 %v457, %v457
  %463 = vst [vmem:[%s3] sm:$0xf] %v462
  // Predicated region
  $region14: #{_lambda_.12} parent=0 // pred_check
    _
  $region15: #{_lambda_.12} parent=0 // pred_check_branch
    %465 = sbr.rel (0) target = $region17
  $region16: #{_lambda_.12} parent=0 // pred_region
    _
  $region17: #{_lambda_.12} parent=0 // pred_fallthru
    _
  // Predicated region
  $region18: #{_lambda_.12} parent=0 // pred_check
    _
  $region19: #{_lambda_.12} parent=0 // pred_check_branch
    %467 = sbr.rel (0) target = $region21
  $region20: #{_lambda_.12} parent=0 // pred_region
    _
  $region21: #{_lambda_.12} parent=0 // pred_fallthru
    _

// kernel: _lambda_.14
$region0: #{_lambda_.14}
  #allocation0 [shape = 'u32[]', space=smem, size = 0x4, offset = 0x4, fixed_abs, tag = 'smem constant byte address 0x4 - core index']
  #allocation1 [shape = 'u32[144,128]{1,0:T(1,128)}', space=vmem, size = 0x12000, scoped, tag = 'internal scratch']
  %s0 = inlined_call_operand.vmem [shape: bf16[4,8,512], index: 0, kind: input, shape index: {}]
  %s1 = inlined_call_operand.vmem [shape: bf16[4,512,128], index: 1, kind: input, shape index: {}]
  %s2 = inlined_call_operand.vmem [shape: f32[1,128], index: 2, kind: input, shape index: {}]
  %s3 = inlined_call_operand.vmem [shape: bf16[4,8,128], index: 3, kind: output, shape index: {}]
  %s4 = sld [smem:[#allocation0]]
  $region45: #{_lambda_.14} parent=0
    _
  %s6 = ssub.s32 1, %s4
  %s7 = scalar_select 0, %s6, %s4
  loop: start=0, step=1, limit=6
  $region2: #{_lambda_.14} parent=0 // loop_pre_header
    _
  $region3: #{_lambda_.14} parent=0 // loop_header
    %s9 = sphi 0, %s13
    %p10 = scmp.ge.s32.totalorder %s9, 6
    %s16 = sphi 0, %s28
    %s17 = sphi 0, %s24
    %s18 = sphi 0, %s16
    %s19 = sphi 0, %s17
    %s20 = sphi 0, %s18
    %s21 = sphi 0, %s19
    %s33 = sphi 0, %s35
    %s36 = sphi 0, %s33
    %s37 = sphi 0, %s36
    %s53 = sphi 0, %s37
    %s59 = sphi 0, %s61
    %s62 = sphi 0, %s59
    %s63 = sphi 0, %s62
    %s79 = sphi 0, %s63
    %s83 = sphi 0, %s83
    %s85 = sphi 0, %s83
    %s86 = sphi 0, %s85
    %s100 = sphi 0, %s86
    %s108 = sphi 0, %s110
    %s111 = sphi 0, %s108
    %s112 = sphi 0, %s111
    %s128 = sphi 0, %s112
  $region4: #{_lambda_.14} parent=0 // loop_header_branch
    %12 = sbr.rel (%p10) target = $region8
  $region5: #{_lambda_.14} parent=0 // loop_body
    %s14 = ssub.s32 %s9, 1
    %s15 = ssub.s32 %s9, 2
    %s22 = sadd.s32 1, %s17
    %p23 = scmp.ge.s32.totalorder %s22, 1
    %s24 = scalar_select %p23, 0, %s22
    %s25 = sadd.s32 1, %s16
    %s26 = scalar_select %p23, %s25, %s16
    %p27 = scmp.ge.s32.totalorder %s26, 4
    %s28 = scalar_select %p27, 0, %s26
    %s29 = ssub.s32 %s16, %s28
    %s30 = ssub.s32 %s17, %s24
    %s31 = sor.u32 %s29, %s30
    %p32 = scmp.eq.s32.totalorder %s31, 0
    %s34 = sadd.s32 %s33, 1
    %s35 = scalar_select %p32, %s33, %s34
    %p38 = pneg %p32
    %p39 = scmp.eq.s32.totalorder %s9, 3
    %p40 = por %p38, %p39
    %p41 = scmp.ne.s32.totalorder %s33, %s36
    %p42 = scmp.eq.s32.totalorder %s9, 0
    %p43 = por %p41, %p42
    %p44 = scmp.ne.s32.totalorder %s33, %s36
    %p45 = scmp.eq.s32.totalorder %s14, 3
    %p46 = por %p44, %p45
    %p47 = scmp.ne.s32.totalorder %s36, %s37
    %p48 = scmp.eq.s32.totalorder %s14, 0
    %p49 = por %p47, %p48
    %p50 = scmp.ne.s32.totalorder %s36, %s37
    %p51 = scmp.eq.s32.totalorder %s15, 3
    %p52 = por %p50, %p51
    %p54 = scmp.ne.s32.totalorder %s37, %s53
    %p55 = scmp.eq.s32.totalorder %s15, 0
    %p56 = por %p54, %p55
    %s57 = ssub.s32 %s16, %s28
    %p58 = scmp.eq.s32.totalorder %s57, 0
    %s60 = sadd.s32 %s59, 1
    %s61 = scalar_select %p58, %s59, %s60
    %p64 = pneg %p58
    %p65 = scmp.eq.s32.totalorder %s9, 3
    %p66 = por %p64, %p65
    %p67 = scmp.ne.s32.totalorder %s59, %s62
    %p68 = scmp.eq.s32.totalorder %s9, 0
    %p69 = por %p67, %p68
    %p70 = scmp.ne.s32.totalorder %s59, %s62
    %p71 = scmp.eq.s32.totalorder %s14, 3
    %p72 = por %p70, %p71
    %p73 = scmp.ne.s32.totalorder %s62, %s63
    %p74 = scmp.eq.s32.totalorder %s14, 0
    %p75 = por %p73, %p74
    %p76 = scmp.ne.s32.totalorder %s62, %s63
    %p77 = scmp.eq.s32.totalorder %s15, 3
    %p78 = por %p76, %p77
    %p80 = scmp.ne.s32.totalorder %s63, %s79
    %p81 = scmp.eq.s32.totalorder %s15, 0
    %p82 = por %p80, %p81
    %s84 = sadd.s32 %s83, 1
    %p87 = scmp.eq.s32.totalorder %s9, 3
    %p88 = scmp.ne.s32.totalorder %s83, %s85
    %p89 = scmp.eq.s32.totalorder %s9, 0
    %p90 = por %p88, %p89
    %p91 = scmp.ne.s32.totalorder %s83, %s85
    %p92 = scmp.eq.s32.totalorder %s14, 3
    %p93 = por %p91, %p92
    %p94 = scmp.ne.s32.totalorder %s85, %s86
    %p95 = scmp.eq.s32.totalorder %s14, 0
    %p96 = por %p94, %p95
    %p97 = scmp.ne.s32.totalorder %s85, %s86
    %p98 = scmp.eq.s32.totalorder %s15, 3
    %p99 = por %p97, %p98
    %p101 = scmp.ne.s32.totalorder %s86, %s100
    %p102 = scmp.eq.s32.totalorder %s15, 0
    %p103 = por %p101, %p102
    %s104 = ssub.s32 %s16, %s28
    %s105 = ssub.s32 %s17, %s24
    %s106 = sor.u32 %s104, %s105
    %p107 = scmp.eq.s32.totalorder %s106, 0
    %s109 = sadd.s32 %s108, 1
    %s110 = scalar_select %p107, %s108, %s109
    %p113 = pneg %p107
    %p114 = scmp.eq.s32.totalorder %s9, 3
    %p115 = por %p113, %p114
    %p116 = scmp.ne.s32.totalorder %s108, %s111
    %p117 = scmp.eq.s32.totalorder %s9, 0
    %p118 = por %p116, %p117
    %p119 = scmp.ne.s32.totalorder %s108, %s111
    %p120 = scmp.eq.s32.totalorder %s14, 3
    %p121 = por %p119, %p120
    %p122 = scmp.ne.s32.totalorder %s111, %s112
    %p123 = scmp.eq.s32.totalorder %s14, 0
    %p124 = por %p122, %p123
    %p125 = scmp.ne.s32.totalorder %s111, %s112
    %p126 = scmp.eq.s32.totalorder %s15, 3
    %p127 = por %p125, %p126
    %p129 = scmp.ne.s32.totalorder %s112, %s128
    %p130 = scmp.eq.s32.totalorder %s15, 0
    %p131 = por %p129, %p130
    %p132 = scmp.le.s32.totalorder 1, %s9
    %p133 = scmp.lt.s32.totalorder %s9, 5
    %p134 = pnand %p132, %p133
    %p135 = pneg %p134
    // Predicated region
    $region9: #{_lambda_.14} parent=5 // pred_check
      _
    $region10: #{_lambda_.14} parent=5 // pred_check_branch
      %137 = sbr.rel (%p134) target = $region12
    $region11: #{_lambda_.14} parent=5 // pred_region
      %s138 = ssub.s32 %s9, 1
      // Predicated region
      $region13: #{_lambda_.14} parent=11 // pred_check
        %p139 = pneg %p96
      $region14: #{_lambda_.14} parent=11 // pred_check_branch
        %141 = sbr.rel (%p139) target = $region16
      $region15: #{_lambda_.14} parent=11 // pred_region
        _
      $region16: #{_lambda_.14} parent=11 // pred_fallthru
        _
    $region12: #{_lambda_.14} parent=5 // pred_fallthru
      _
    %p142 = scmp.lt.s32.totalorder %s9, 4
    // Predicated region
    $region17: #{_lambda_.14} parent=5 // pred_check
      %p143 = pneg %p142
    $region18: #{_lambda_.14} parent=5 // pred_check_branch
      %145 = sbr.rel (%p143) target = $region20
    $region19: #{_lambda_.14} parent=5 // pred_region
      // Predicated region
      $region21: #{_lambda_.14} parent=19 // pred_check
        %p146 = pneg %p43
      $region22: #{_lambda_.14} parent=19 // pred_check_branch
        %148 = sbr.rel (%p146) target = $region24
      $region23: #{_lambda_.14} parent=19 // pred_region
        %p149 = scmp.lt.s32.totalorder %s16, 3
        %s150 = scalar_select %p149, %s16, 3
        %p151 = scmp.lt.s32.totalorder %s17, 0
        %s152 = scalar_select %p151, %s17, 0
        %s153 = smul.addr %s152, 4
        %s154 = smul.addr %s150, 4
        %s155 = sadd.s32 %s153, %s154
        %s156 = smul.addr %s155, 4
        %s157 = scalar_lea.vmem %s0, %s156
      $region24: #{_lambda_.14} parent=19 // pred_fallthru
        _
      // Predicated region
      $region25: #{_lambda_.14} parent=19 // pred_check
        %p158 = pneg %p69
      $region26: #{_lambda_.14} parent=19 // pred_check_branch
        %160 = sbr.rel (%p158) target = $region28
      $region27: #{_lambda_.14} parent=19 // pred_region
        %p161 = scmp.lt.s32.totalorder %s16, 3
        %s162 = scalar_select %p161, %s16, 3
        %s163 = smul.addr %s162, 64
        %s164 = smul.addr %s163, 4
        %s165 = scalar_lea.vmem %s1, %s164
      $region28: #{_lambda_.14} parent=19 // pred_fallthru
        _
    $region20: #{_lambda_.14} parent=5 // pred_fallthru
      _
    %p166 = scmp.le.s32.totalorder 1, %s9
    %p167 = scmp.lt.s32.totalorder %s9, 5
    %p168 = pnand %p166, %p167
    %p169 = pneg %p168
    // Predicated region
    $region29: #{_lambda_.14} parent=5 // pred_check
      _
    $region30: #{_lambda_.14} parent=5 // pred_check_branch
      %171 = sbr.rel (%p168) target = $region32
    $region31: #{_lambda_.14} parent=5 // pred_region
      %s172 = ssub.s32 %s9, 1
      %p173 = scmp.lt.s32.totalorder %s18, 3
      %s174 = scalar_select %p173, %s18, 3
      %p175 = scmp.lt.s32.totalorder %s19, 0
      %s176 = scalar_select %p175, %s19, 0
      %s177 = smul.addr %s176, 4
      %s178 = smul.addr %s174, 4
      %s179 = sadd.s32 %s177, %s178
      %s180 = smul.addr %s179, 4
      %s181 = scalar_lea.vmem %s0, %s180
      %p182 = pneg %p49
      %p183 = pneg %p46
      %p184 = scmp.lt.s32.totalorder %s18, 3
      %s185 = scalar_select %p184, %s18, 3
      %s186 = smul.addr %s185, 64
      %s187 = smul.addr %s186, 4
      %s188 = scalar_lea.vmem %s1, %s187
      %p189 = pneg %p75
      %p190 = pneg %p72
      %p191 = pneg %p96
      %p192 = pneg %p93
      %p193 = pneg %p124
      %p194 = pneg %p121
      %p195 = scmp.lt.s32.totalorder %s18, 3
      %s196 = scalar_select %p195, %s18, 3
      %p197 = scmp.lt.s32.totalorder %s19, 0
      %s198 = scalar_select %p197, %s19, 0
      %s199 = sadd.s32 %s198, %s196
      %s200 = smul.addr %s199, 4
      %s201 = scalar_lea.vmem %s3, %s200
      %p202 = scmp.lt.s32.totalorder %s18, 3
      %s203 = scalar_select %p202, %s18, 3
      %p204 = scmp.lt.s32.totalorder %s19, 0
      %s205 = scalar_select %p204, %s19, 0
      %s206 = smul.addr %s205, 4
      %s207 = smul.addr %s203, 4
      %s208 = sadd.s32 %s206, %s207
      %s209 = smul.addr %s208, 4
      %s210 = scalar_lea.vmem %s0, %s209
      %p211 = scmp.lt.s32.totalorder %s18, 3
      %s212 = scalar_select %p211, %s18, 3
      %s213 = smul.addr %s212, 64
      %s214 = smul.addr %s213, 4
      %s215 = scalar_lea.vmem %s1, %s214
      %p216 = scmp.lt.s32.totalorder %s18, 3
      %s217 = scalar_select %p216, %s18, 3
      %p218 = scmp.lt.s32.totalorder %s19, 0
      %s219 = scalar_select %p218, %s19, 0
      %s220 = sadd.s32 %s219, %s217
      %s221 = smul.addr %s220, 4
      %s222 = scalar_lea.vmem %s3, %s221
      %v224 = vld [vmem:[%s210] sm:$0xff]
      %v225 = vld [vmem:[%s210 + $0x8] sm:$0xff]
      %v226 = vunpack.c.l.bf16 %v224
      %v227 = vunpack.c.h.bf16 %v224
      %v228 = vunpack.c.l.bf16 %v225
      %v229 = vunpack.c.h.bf16 %v225
      %v230 = vmax.f32 %v226, 0.0
      %v231 = vmax.f32 %v227, 0.0
      %v232 = vmax.f32 %v228, 0.0
      %v233 = vmax.f32 %v229, 0.0
      %v234 = vpack.c.bf16 %v230, %v230
      %v235 = vpack.c.bf16 %v231, %v231
      %v236 = vpack.c.bf16 %v232, %v232
      %v237 = vpack.c.bf16 %v233, %v233
      %v238 = vld [vmem:[%s215] sm:$0xf]
      %v239 = vld [vmem:[%s215 + $0x4] sm:$0xf]
      %v240 = vld [vmem:[%s215 + $0x8] sm:$0xf]
      %v241 = vld [vmem:[%s215 + $0xc] sm:$0xf]
      %v242 = vld [vmem:[%s215 + $0x10] sm:$0xf]
      %v243 = vld [vmem:[%s215 + $0x14] sm:$0xf]
      %v244 = vld [vmem:[%s215 + $0x18] sm:$0xf]
      %v245 = vld [vmem:[%s215 + $0x1c] sm:$0xf]
      %v246 = vld [vmem:[%s215 + $0x20] sm:$0xf]
      %v247 = vld [vmem:[%s215 + $0x24] sm:$0xf]
      %v248 = vld [vmem:[%s215 + $0x28] sm:$0xf]
      %v249 = vld [vmem:[%s215 + $0x2c] sm:$0xf]
      %v250 = vld [vmem:[%s215 + $0x30] sm:$0xf]
      %v251 = vld [vmem:[%s215 + $0x34] sm:$0xf]
      %v252 = vld [vmem:[%s215 + $0x38] sm:$0xf]
      %v253 = vld [vmem:[%s215 + $0x3c] sm:$0xf]
      %v254 = vld [vmem:[%s215 + $0x40] sm:$0xf]
      %v255 = vld [vmem:[%s215 + $0x44] sm:$0xf]
      %v256 = vld [vmem:[%s215 + $0x48] sm:$0xf]
      %v257 = vld [vmem:[%s215 + $0x4c] sm:$0xf]
      %v258 = vld [vmem:[%s215 + $0x50] sm:$0xf]
      %v259 = vld [vmem:[%s215 + $0x54] sm:$0xf]
      %v260 = vld [vmem:[%s215 + $0x58] sm:$0xf]
      %v261 = vld [vmem:[%s215 + $0x5c] sm:$0xf]
      %v262 = vld [vmem:[%s215 + $0x60] sm:$0xf]
      %v263 = vld [vmem:[%s215 + $0x64] sm:$0xf]
      %v264 = vld [vmem:[%s215 + $0x68] sm:$0xf]
      %v265 = vld [vmem:[%s215 + $0x6c] sm:$0xf]
      %v266 = vld [vmem:[%s215 + $0x70] sm:$0xf]
      %v267 = vld [vmem:[%s215 + $0x74] sm:$0xf]
      %v268 = vld [vmem:[%s215 + $0x78] sm:$0xf]
      %v269 = vld [vmem:[%s215 + $0x7c] sm:$0xf]
      %v270 = vld [vmem:[%s215 + $0x80] sm:$0xf]
      %v271 = vld [vmem:[%s215 + $0x84] sm:$0xf]
      %v272 = vld [vmem:[%s215 + $0x88] sm:$0xf]
      %v273 = vld [vmem:[%s215 + $0x8c] sm:$0xf]
      %v274 = vld [vmem:[%s215 + $0x90] sm:$0xf]
      %v275 = vld [vmem:[%s215 + $0x94] sm:$0xf]
      %v276 = vld [vmem:[%s215 + $0x98] sm:$0xf]
      %v277 = vld [vmem:[%s215 + $0x9c] sm:$0xf]
      %v278 = vld [vmem:[%s215 + $0xa0] sm:$0xf]
      %v279 = vld [vmem:[%s215 + $0xa4] sm:$0xf]
      %v280 = vld [vmem:[%s215 + $0xa8] sm:$0xf]
      %v281 = vld [vmem:[%s215 + $0xac] sm:$0xf]
      %v282 = vld [vmem:[%s215 + $0xb0] sm:$0xf]
      %v283 = vld [vmem:[%s215 + $0xb4] sm:$0xf]
      %v284 = vld [vmem:[%s215 + $0xb8] sm:$0xf]
      %v285 = vld [vmem:[%s215 + $0xbc] sm:$0xf]
      %v286 = vld [vmem:[%s215 + $0xc0] sm:$0xf]
      %v287 = vld [vmem:[%s215 + $0xc4] sm:$0xf]
      %v288 = vld [vmem:[%s215 + $0xc8] sm:$0xf]
      %v289 = vld [vmem:[%s215 + $0xcc] sm:$0xf]
      %v290 = vld [vmem:[%s215 + $0xd0] sm:$0xf]
      %v291 = vld [vmem:[%s215 + $0xd4] sm:$0xf]
      %v292 = vld [vmem:[%s215 + $0xd8] sm:$0xf]
      %v293 = vld [vmem:[%s215 + $0xdc] sm:$0xf]
      %v294 = vld [vmem:[%s215 + $0xe0] sm:$0xf]
      %v295 = vld [vmem:[%s215 + $0xe4] sm:$0xf]
      %v296 = vld [vmem:[%s215 + $0xe8] sm:$0xf]
      %v297 = vld [vmem:[%s215 + $0xec] sm:$0xf]
      %v298 = vld [vmem:[%s215 + $0xf0] sm:$0xf]
      %v299 = vld [vmem:[%s215 + $0xf4] sm:$0xf]
      %v300 = vld [vmem:[%s215 + $0xf8] sm:$0xf]
      %v301 = vld [vmem:[%s215 + $0xfc] sm:$0xf]
      %v302 = vld [vmem:[%s2] sm:$0x1]
      %v304 = vlaneseq
      %v305 = vshrl.u32 %v304, 7
      %v306 = vsub.s32 0, %v305
      %v307 = vrot.slane %v302, %v306
      %v373 = vunpack.c.l.b16 %v238
      %v374 = vunpack.c.l.b16 %v239
      %v375 = vunpack.c.l.b16 %v240
      %v376 = vunpack.c.l.b16 %v241
      %v377 = vunpack.c.l.b16 %v242
      %v378 = vunpack.c.l.b16 %v243
      %v379 = vunpack.c.l.b16 %v244
      %v380 = vunpack.c.l.b16 %v245
      %v381 = vunpack.c.l.b16 %v246
      %v382 = vunpack.c.l.b16 %v247
      %v383 = vunpack.c.l.b16 %v248
      %v384 = vunpack.c.l.b16 %v249
      %v385 = vunpack.c.l.b16 %v250
      %v386 = vunpack.c.l.b16 %v251
      %v387 = vunpack.c.l.b16 %v252
      %v388 = vunpack.c.l.b16 %v253
      %v389 = vunpack.c.l.b16 %v254
      %v390 = vunpack.c.l.b16 %v255
      %v391 = vunpack.c.l.b16 %v256
      %v392 = vunpack.c.l.b16 %v257
      %v393 = vunpack.c.l.b16 %v258
      %v394 = vunpack.c.l.b16 %v259
      %v395 = vunpack.c.l.b16 %v260
      %v396 = vunpack.c.l.b16 %v261
      %v397 = vunpack.c.l.b16 %v262
      %v398 = vunpack.c.l.b16 %v263
      %v399 = vunpack.c.l.b16 %v264
      %v400 = vunpack.c.l.b16 %v265
      %v401 = vunpack.c.l.b16 %v266
      %v402 = vunpack.c.l.b16 %v267
      %v403 = vunpack.c.l.b16 %v268
      %v404 = vunpack.c.l.b16 %v269
      %v405 = vunpack.c.l.b16 %v270
      %v406 = vunpack.c.l.b16 %v271
      %v407 = vunpack.c.l.b16 %v272
      %v408 = vunpack.c.l.b16 %v273
      %v409 = vunpack.c.l.b16 %v274
      %v410 = vunpack.c.l.b16 %v275
      %v411 = vunpack.c.l.b16 %v276
      %v412 = vunpack.c.l.b16 %v277
      %v413 = vunpack.c.l.b16 %v278
      %v414 = vunpack.c.l.b16 %v279
      %v415 = vunpack.c.l.b16 %v280
      %v416 = vunpack.c.l.b16 %v281
      %v417 = vunpack.c.l.b16 %v282
      %v418 = vunpack.c.l.b16 %v283
      %v419 = vunpack.c.l.b16 %v284
      %v420 = vunpack.c.l.b16 %v285
      %v421 = vunpack.c.l.b16 %v286
      %v422 = vunpack.c.l.b16 %v287
      %v423 = vunpack.c.l.b16 %v288
      %v424 = vunpack.c.l.b16 %v289
      %v425 = vunpack.c.l.b16 %v290
      %v426 = vunpack.c.l.b16 %v291
      %v427 = vunpack.c.l.b16 %v292
      %v428 = vunpack.c.l.b16 %v293
      %v429 = vunpack.c.l.b16 %v294
      %v430 = vunpack.c.l.b16 %v295
      %v431 = vunpack.c.l.b16 %v296
      %v432 = vunpack.c.l.b16 %v297
      %v433 = vunpack.c.l.b16 %v298
      %v434 = vunpack.c.l.b16 %v299
      %v435 = vunpack.c.l.b16 %v300
      %v436 = vunpack.c.l.b16 %v301
      %v437 = vpack.c.b16 %v374, %v373
      %v438 = vpack.c.b16 %v376, %v375
      %v439 = vpack.c.b16 %v378, %v377
      %v440 = vpack.c.b16 %v380, %v379
      %v441 = vpack.c.b16 %v382, %v381
      %v442 = vpack.c.b16 %v384, %v383
      %v443 = vpack.c.b16 %v386, %v385
      %v444 = vpack.c.b16 %v388, %v387
      %v445 = vpack.c.b16 %v390, %v389
      %v446 = vpack.c.b16 %v392, %v391
      %v447 = vpack.c.b16 %v394, %v393
      %v448 = vpack.c.b16 %v396, %v395
      %v449 = vpack.c.b16 %v398, %v397
      %v450 = vpack.c.b16 %v400, %v399
      %v451 = vpack.c.b16 %v402, %v401
      %v452 = vpack.c.b16 %v404, %v403
      %v453 = vpack.c.b16 %v406, %v405
      %v454 = vpack.c.b16 %v408, %v407
      %v455 = vpack.c.b16 %v410, %v409
      %v456 = vpack.c.b16 %v412, %v411
      %v457 = vpack.c.b16 %v414, %v413
      %v458 = vpack.c.b16 %v416, %v415
      %v459 = vpack.c.b16 %v418, %v417
      %v460 = vpack.c.b16 %v420, %v419
      %v461 = vpack.c.b16 %v422, %v421
      %v462 = vpack.c.b16 %v424, %v423
      %v463 = vpack.c.b16 %v426, %v425
      %v464 = vpack.c.b16 %v428, %v427
      %v465 = vpack.c.b16 %v430, %v429
      %v466 = vpack.c.b16 %v432, %v431
      %v467 = vpack.c.b16 %v434, %v433
      %v468 = vpack.c.b16 %v436, %v435
      %501 = vmatprep.subr.bf16.mxu0 0
      %502 = vmatpush1.bf16.msra.mxu0 %v444
      %503 = vmatprep.subr.bf16.mxu0 0
      %504 = vmatpush1.bf16.msra.mxu0 %v443
      %505 = vmatprep.subr.bf16.mxu0 0
      %506 = vmatpush1.bf16.msra.mxu0 %v442
      %507 = vmatprep.subr.bf16.mxu0 0
      %508 = vmatpush1.bf16.msra.mxu0 %v441
      %509 = vmatprep.subr.bf16.mxu0 0
      %510 = vmatpush1.bf16.msra.mxu0 %v440
      %511 = vmatprep.subr.bf16.mxu0 0
      %512 = vmatpush1.bf16.msra.mxu0 %v439
      %513 = vmatprep.subr.bf16.mxu0 0
      %514 = vmatpush1.bf16.msra.mxu0 %v438
      %515 = vmatprep.subr.bf16.mxu0 0
      %516 = vmatpush1.bf16.msra.mxu0 %v437
      %517 = vmatprep.subr.bf16.mxu0 0
      %518 = vmatpush2.bf16.msra.mxu0 %v452
      %519 = vmatprep.subr.bf16.mxu0 0
      %520 = vmatpush2.bf16.msra.mxu0 %v451
      %521 = vmatprep.subr.bf16.mxu0 0
      %522 = vmatpush2.bf16.msra.mxu0 %v450
      %523 = vmatprep.subr.bf16.mxu0 0
      %524 = vmatpush2.bf16.msra.mxu0 %v449
      %525 = vmatprep.subr.bf16.mxu0 0
      %526 = vmatpush2.bf16.msra.mxu0 %v448
      %527 = vmatprep.subr.bf16.mxu0 0
      %528 = vmatpush2.bf16.msra.mxu0 %v447
      %529 = vmatprep.subr.bf16.mxu0 0
      %530 = vmatpush2.bf16.msra.mxu0 %v446
      %531 = vmatprep.subr.bf16.mxu0 0
      %532 = vmatpush2.bf16.msra.mxu0 %v445
      %533 = vmatprep.mubr.bf16.mxu0 %v235
      %534 = vmatmul.mubr.bf16.gmra.mxu0 %v234
      %v535 = vpop.f32.mrf.mxu0
      %v536 = vadd.f32 %v307, %v535
      %v537 = vpop.f32.mrf.mxu0
      %v538 = vpop.f32.mrf.mxu0
      %v539 = vpop.f32.mrf.mxu0
      %540 = vdwg.mxu0
      %541 = vmatprep.subr.bf16.mxu0 0
      %542 = vmatpush1.bf16.msra.mxu0 %v460
      %543 = vmatprep.subr.bf16.mxu0 0
      %544 = vmatpush1.bf16.msra.mxu0 %v459
      %545 = vmatprep.subr.bf16.mxu0 0
      %546 = vmatpush1.bf16.msra.mxu0 %v458
      %547 = vmatprep.subr.bf16.mxu0 0
      %548 = vmatpush1.bf16.msra.mxu0 %v457
      %549 = vmatprep.subr.bf16.mxu0 0
      %550 = vmatpush1.bf16.msra.mxu0 %v456
      %551 = vmatprep.subr.bf16.mxu0 0
      %552 = vmatpush1.bf16.msra.mxu0 %v455
      %553 = vmatprep.subr.bf16.mxu0 0
      %554 = vmatpush1.bf16.msra.mxu0 %v454
      %555 = vmatprep.subr.bf16.mxu0 0
      %556 = vmatpush1.bf16.msra.mxu0 %v453
      %557 = vmatprep.subr.bf16.mxu0 0
      %558 = vmatpush2.bf16.msra.mxu0 %v468
      %559 = vmatprep.subr.bf16.mxu0 0
      %560 = vmatpush2.bf16.msra.mxu0 %v467
      %561 = vmatprep.subr.bf16.mxu0 0
      %562 = vmatpush2.bf16.msra.mxu0 %v466
      %563 = vmatprep.subr.bf16.mxu0 0
      %564 = vmatpush2.bf16.msra.mxu0 %v465
      %565 = vmatprep.subr.bf16.mxu0 0
      %566 = vmatpush2.bf16.msra.mxu0 %v464
      %567 = vmatprep.subr.bf16.mxu0 0
      %568 = vmatpush2.bf16.msra.mxu0 %v463
      %569 = vmatprep.subr.bf16.mxu0 0
      %570 = vmatpush2.bf16.msra.mxu0 %v462
      %571 = vmatprep.subr.bf16.mxu0 0
      %572 = vmatpush2.bf16.msra.mxu0 %v461
      %573 = vmatprep.mubr.bf16.mxu0 %v237
      %574 = vmatmul.mubr.bf16.gmra.mxu0 %v236
      %v575 = vpop.f32.mrf.mxu0
      %v576 = vadd.f32 %v536, %v575
      %v577 = vpop.f32.mrf.mxu0
      %v578 = vpop.f32.mrf.mxu0
      %v579 = vpop.f32.mrf.mxu0
      %580 = vdwg.mxu0
      %v581 = vpack.c.bf16 %v576, %v576
      %582 = vst [vmem:[%s222] sm:$0xf] %v581
      %p583 = scmp.lt.s32.totalorder %s18, 3
      %s584 = scalar_select %p583, %s18, 3
      %p585 = scmp.lt.s32.totalorder %s19, 0
      %s586 = scalar_select %p585, %s19, 0
      %s587 = sadd.s32 %s586, %s584
      %s588 = smul.addr %s587, 4
      %s589 = scalar_lea.vmem %s3, %s588
      // Predicated region
      $region33: #{_lambda_.14} parent=31 // pred_check
        %p590 = pneg %p121
      $region34: #{_lambda_.14} parent=31 // pred_check_branch
        %592 = sbr.rel (%p590) target = $region36
      $region35: #{_lambda_.14} parent=31 // pred_region
        _
      $region36: #{_lambda_.14} parent=31 // pred_fallthru
        _
    $region32: #{_lambda_.14} parent=5 // pred_fallthru
      _
    %p593 = scmp.le.s32.totalorder 2, %s9
    // Predicated region
    $region37: #{_lambda_.14} parent=5 // pred_check
      %p594 = pneg %p593
    $region38: #{_lambda_.14} parent=5 // pred_check_branch
      %596 = sbr.rel (%p594) target = $region40
    $region39: #{_lambda_.14} parent=5 // pred_region
      %s597 = ssub.s32 %s9, 2
      // Predicated region
      $region41: #{_lambda_.14} parent=39 // pred_check
        %p598 = pneg %p127
      $region42: #{_lambda_.14} parent=39 // pred_check_branch
        %600 = sbr.rel (%p598) target = $region44
      $region43: #{_lambda_.14} parent=39 // pred_region
        %p601 = scmp.lt.s32.totalorder %s20, 3
        %s602 = scalar_select %p601, %s20, 3
        %p603 = scmp.lt.s32.totalorder %s21, 0
        %s604 = scalar_select %p603, %s21, 0
        %s605 = sadd.s32 %s604, %s602
        %s606 = smul.addr %s605, 4
        %s607 = scalar_lea.vmem %s3, %s606
      $region44: #{_lambda_.14} parent=39 // pred_fallthru
        _
    $region40: #{_lambda_.14} parent=5 // pred_fallthru
      _
  $region6: #{_lambda_.14} parent=0 // loop_footer
    %s13 = sadd.s32 1, %s9
  $region7: #{_lambda_.14} parent=0 // loop_footer_branch
    %8 = sbr.rel target = $region3
  $region8: #{_lambda_.14} parent=0 // loop_exit
    _

// kernel: _lambda_.15
$region0: #{_lambda_.15}
  #allocation0 [shape = 'u32[]', space=smem, size = 0x4, offset = 0x4, fixed_abs, tag = 'smem constant byte address 0x4 - core index']
  #allocation1 [shape = 'u32[144,128]{1,0:T(1,128)}', space=vmem, size = 0x12000, scoped, tag = 'internal scratch']
  %s0 = inlined_call_operand.vmem [shape: bf16[4,32,512], index: 0, kind: input, shape index: {}]
  %s1 = inlined_call_operand.vmem [shape: bf16[4,512,128], index: 1, kind: input, shape index: {}]
  %s2 = inlined_call_operand.vmem [shape: f32[1,128], index: 2, kind: input, shape index: {}]
  %s3 = inlined_call_operand.vmem [shape: bf16[4,32,128], index: 3, kind: output, shape index: {}]
  %s4 = sld [smem:[#allocation0]]
  $region45: #{_lambda_.15} parent=0
    _
  %s6 = ssub.s32 1, %s4
  %s7 = scalar_select 0, %s6, %s4
  loop: start=0, step=1, limit=6
  $region2: #{_lambda_.15} parent=0 // loop_pre_header
    _
  $region3: #{_lambda_.15} parent=0 // loop_header
    %s9 = sphi 0, %s13
    %p10 = scmp.ge.s32.totalorder %s9, 6
    %s16 = sphi 0, %s28
    %s17 = sphi 0, %s24
    %s18 = sphi 0, %s16
    %s19 = sphi 0, %s17
    %s20 = sphi 0, %s18
    %s21 = sphi 0, %s19
    %s33 = sphi 0, %s35
    %s36 = sphi 0, %s33
    %s37 = sphi 0, %s36
    %s53 = sphi 0, %s37
    %s59 = sphi 0, %s61
    %s62 = sphi 0, %s59
    %s63 = sphi 0, %s62
    %s79 = sphi 0, %s63
    %s83 = sphi 0, %s83
    %s85 = sphi 0, %s83
    %s86 = sphi 0, %s85
    %s100 = sphi 0, %s86
    %s108 = sphi 0, %s110
    %s111 = sphi 0, %s108
    %s112 = sphi 0, %s111
    %s128 = sphi 0, %s112
  $region4: #{_lambda_.15} parent=0 // loop_header_branch
    %12 = sbr.rel (%p10) target = $region8
  $region5: #{_lambda_.15} parent=0 // loop_body
    %s14 = ssub.s32 %s9, 1
    %s15 = ssub.s32 %s9, 2
    %s22 = sadd.s32 1, %s17
    %p23 = scmp.ge.s32.totalorder %s22, 1
    %s24 = scalar_select %p23, 0, %s22
    %s25 = sadd.s32 1, %s16
    %s26 = scalar_select %p23, %s25, %s16
    %p27 = scmp.ge.s32.totalorder %s26, 4
    %s28 = scalar_select %p27, 0, %s26
    %s29 = ssub.s32 %s16, %s28
    %s30 = ssub.s32 %s17, %s24
    %s31 = sor.u32 %s29, %s30
    %p32 = scmp.eq.s32.totalorder %s31, 0
    %s34 = sadd.s32 %s33, 1
    %s35 = scalar_select %p32, %s33, %s34
    %p38 = pneg %p32
    %p39 = scmp.eq.s32.totalorder %s9, 3
    %p40 = por %p38, %p39
    %p41 = scmp.ne.s32.totalorder %s33, %s36
    %p42 = scmp.eq.s32.totalorder %s9, 0
    %p43 = por %p41, %p42
    %p44 = scmp.ne.s32.totalorder %s33, %s36
    %p45 = scmp.eq.s32.totalorder %s14, 3
    %p46 = por %p44, %p45
    %p47 = scmp.ne.s32.totalorder %s36, %s37
    %p48 = scmp.eq.s32.totalorder %s14, 0
    %p49 = por %p47, %p48
    %p50 = scmp.ne.s32.totalorder %s36, %s37
    %p51 = scmp.eq.s32.totalorder %s15, 3
    %p52 = por %p50, %p51
    %p54 = scmp.ne.s32.totalorder %s37, %s53
    %p55 = scmp.eq.s32.totalorder %s15, 0
    %p56 = por %p54, %p55
    %s57 = ssub.s32 %s16, %s28
    %p58 = scmp.eq.s32.totalorder %s57, 0
    %s60 = sadd.s32 %s59, 1
    %s61 = scalar_select %p58, %s59, %s60
    %p64 = pneg %p58
    %p65 = scmp.eq.s32.totalorder %s9, 3
    %p66 = por %p64, %p65
    %p67 = scmp.ne.s32.totalorder %s59, %s62
    %p68 = scmp.eq.s32.totalorder %s9, 0
    %p69 = por %p67, %p68
    %p70 = scmp.ne.s32.totalorder %s59, %s62
    %p71 = scmp.eq.s32.totalorder %s14, 3
    %p72 = por %p70, %p71
    %p73 = scmp.ne.s32.totalorder %s62, %s63
    %p74 = scmp.eq.s32.totalorder %s14, 0
    %p75 = por %p73, %p74
    %p76 = scmp.ne.s32.totalorder %s62, %s63
    %p77 = scmp.eq.s32.totalorder %s15, 3
    %p78 = por %p76, %p77
    %p80 = scmp.ne.s32.totalorder %s63, %s79
    %p81 = scmp.eq.s32.totalorder %s15, 0
    %p82 = por %p80, %p81
    %s84 = sadd.s32 %s83, 1
    %p87 = scmp.eq.s32.totalorder %s9, 3
    %p88 = scmp.ne.s32.totalorder %s83, %s85
    %p89 = scmp.eq.s32.totalorder %s9, 0
    %p90 = por %p88, %p89
    %p91 = scmp.ne.s32.totalorder %s83, %s85
    %p92 = scmp.eq.s32.totalorder %s14, 3
    %p93 = por %p91, %p92
    %p94 = scmp.ne.s32.totalorder %s85, %s86
    %p95 = scmp.eq.s32.totalorder %s14, 0
    %p96 = por %p94, %p95
    %p97 = scmp.ne.s32.totalorder %s85, %s86
    %p98 = scmp.eq.s32.totalorder %s15, 3
    %p99 = por %p97, %p98
    %p101 = scmp.ne.s32.totalorder %s86, %s100
    %p102 = scmp.eq.s32.totalorder %s15, 0
    %p103 = por %p101, %p102
    %s104 = ssub.s32 %s16, %s28
    %s105 = ssub.s32 %s17, %s24
    %s106 = sor.u32 %s104, %s105
    %p107 = scmp.eq.s32.totalorder %s106, 0
    %s109 = sadd.s32 %s108, 1
    %s110 = scalar_select %p107, %s108, %s109
    %p113 = pneg %p107
    %p114 = scmp.eq.s32.totalorder %s9, 3
    %p115 = por %p113, %p114
    %p116 = scmp.ne.s32.totalorder %s108, %s111
    %p117 = scmp.eq.s32.totalorder %s9, 0
    %p118 = por %p116, %p117
    %p119 = scmp.ne.s32.totalorder %s108, %s111
    %p120 = scmp.eq.s32.totalorder %s14, 3
    %p121 = por %p119, %p120
    %p122 = scmp.ne.s32.totalorder %s111, %s112
    %p123 = scmp.eq.s32.totalorder %s14, 0
    %p124 = por %p122, %p123
    %p125 = scmp.ne.s32.totalorder %s111, %s112
    %p126 = scmp.eq.s32.totalorder %s15, 3
    %p127 = por %p125, %p126
    %p129 = scmp.ne.s32.totalorder %s112, %s128
    %p130 = scmp.eq.s32.totalorder %s15, 0
    %p131 = por %p129, %p130
    %p132 = scmp.le.s32.totalorder 1, %s9
    %p133 = scmp.lt.s32.totalorder %s9, 5
    %p134 = pnand %p132, %p133
    %p135 = pneg %p134
    // Predicated region
    $region9: #{_lambda_.15} parent=5 // pred_check
      _
    $region10: #{_lambda_.15} parent=5 // pred_check_branch
      %137 = sbr.rel (%p134) target = $region12
    $region11: #{_lambda_.15} parent=5 // pred_region
      %s138 = ssub.s32 %s9, 1
      // Predicated region
      $region13: #{_lambda_.15} parent=11 // pred_check
        %p139 = pneg %p96
      $region14: #{_lambda_.15} parent=11 // pred_check_branch
        %141 = sbr.rel (%p139) target = $region16
      $region15: #{_lambda_.15} parent=11 // pred_region
        _
      $region16: #{_lambda_.15} parent=11 // pred_fallthru
        _
    $region12: #{_lambda_.15} parent=5 // pred_fallthru
      _
    %p142 = scmp.lt.s32.totalorder %s9, 4
    // Predicated region
    $region17: #{_lambda_.15} parent=5 // pred_check
      %p143 = pneg %p142
    $region18: #{_lambda_.15} parent=5 // pred_check_branch
      %145 = sbr.rel (%p143) target = $region20
    $region19: #{_lambda_.15} parent=5 // pred_region
      // Predicated region
      $region21: #{_lambda_.15} parent=19 // pred_check
        %p146 = pneg %p43
      $region22: #{_lambda_.15} parent=19 // pred_check_branch
        %148 = sbr.rel (%p146) target = $region24
      $region23: #{_lambda_.15} parent=19 // pred_region
        %s149 = smul.u32 4, %s17
        %p150 = scmp.lt.s32.totalorder %s16, 3
        %s151 = scalar_select %p150, %s16, 3
        %p152 = scmp.lt.s32.totalorder %s149, 3
        %s153 = scalar_select %p152, %s149, 3
        %s154 = smul.addr %s153, 4
        %s155 = smul.addr %s151, 16
        %s156 = sadd.s32 %s154, %s155
        %s157 = smul.addr %s156, 4
        %s158 = scalar_lea.vmem %s0, %s157
        %s159 = smul.u32 4, %s17
      $region24: #{_lambda_.15} parent=19 // pred_fallthru
        _
      // Predicated region
      $region25: #{_lambda_.15} parent=19 // pred_check
        %p160 = pneg %p69
      $region26: #{_lambda_.15} parent=19 // pred_check_branch
        %162 = sbr.rel (%p160) target = $region28
      $region27: #{_lambda_.15} parent=19 // pred_region
        %p163 = scmp.lt.s32.totalorder %s16, 3
        %s164 = scalar_select %p163, %s16, 3
        %s165 = smul.addr %s164, 64
        %s166 = smul.addr %s165, 4
        %s167 = scalar_lea.vmem %s1, %s166
      $region28: #{_lambda_.15} parent=19 // pred_fallthru
        _
    $region20: #{_lambda_.15} parent=5 // pred_fallthru
      _
    %p168 = scmp.le.s32.totalorder 1, %s9
    %p169 = scmp.lt.s32.totalorder %s9, 5
    %p170 = pnand %p168, %p169
    %p171 = pneg %p170
    // Predicated region
    $region29: #{_lambda_.15} parent=5 // pred_check
      _
    $region30: #{_lambda_.15} parent=5 // pred_check_branch
      %173 = sbr.rel (%p170) target = $region32
    $region31: #{_lambda_.15} parent=5 // pred_region
      %s174 = ssub.s32 %s9, 1
      %s175 = smul.u32 4, %s19
      %p176 = scmp.lt.s32.totalorder %s18, 3
      %s177 = scalar_select %p176, %s18, 3
      %p178 = scmp.lt.s32.totalorder %s175, 3
      %s179 = scalar_select %p178, %s175, 3
      %s180 = smul.addr %s179, 4
      %s181 = smul.addr %s177, 16
      %s182 = sadd.s32 %s180, %s181
      %s183 = smul.addr %s182, 4
      %s184 = scalar_lea.vmem %s0, %s183
      %p185 = pneg %p49
      %p186 = pneg %p46
      %p187 = scmp.lt.s32.totalorder %s18, 3
      %s188 = scalar_select %p187, %s18, 3
      %s189 = smul.addr %s188, 64
      %s190 = smul.addr %s189, 4
      %s191 = scalar_lea.vmem %s1, %s190
      %p192 = pneg %p75
      %p193 = pneg %p72
      %p194 = pneg %p96
      %p195 = pneg %p93
      %p196 = pneg %p124
      %p197 = pneg %p121
      %s198 = smul.u32 4, %s19
      %p199 = scmp.lt.s32.totalorder %s18, 3
      %s200 = scalar_select %p199, %s18, 3
      %p201 = scmp.lt.s32.totalorder %s198, 3
      %s202 = scalar_select %p201, %s198, 3
      %s203 = smul.addr %s200, 4
      %s204 = sadd.s32 %s202, %s203
      %s205 = smul.addr %s204, 4
      %s206 = scalar_lea.vmem %s3, %s205
      %s207 = smul.u32 4, %s19
      %p208 = scmp.lt.s32.totalorder %s18, 3
      %s209 = scalar_select %p208, %s18, 3
      %p210 = scmp.lt.s32.totalorder %s207, 3
      %s211 = scalar_select %p210, %s207, 3
      %s212 = smul.addr %s211, 4
      %s213 = smul.addr %s209, 16
      %s214 = sadd.s32 %s212, %s213
      %s215 = smul.addr %s214, 4
      %s216 = scalar_lea.vmem %s0, %s215
      %s217 = smul.u32 4, %s19
      %p218 = scmp.lt.s32.totalorder %s18, 3
      %s219 = scalar_select %p218, %s18, 3
      %s220 = smul.addr %s219, 64
      %s221 = smul.addr %s220, 4
      %s222 = scalar_lea.vmem %s1, %s221
      %s223 = smul.u32 4, %s19
      %p224 = scmp.lt.s32.totalorder %s18, 3
      %s225 = scalar_select %p224, %s18, 3
      %p226 = scmp.lt.s32.totalorder %s223, 3
      %s227 = scalar_select %p226, %s223, 3
      %s228 = smul.addr %s225, 4
      %s229 = sadd.s32 %s227, %s228
      %s230 = smul.addr %s229, 4
      %s231 = scalar_lea.vmem %s3, %s230
      %s232 = smul.u32 4, %s19
      %v234 = vld [vmem:[%s216] sm:$0xff]
      %v235 = vld [vmem:[%s216 + $0x8] sm:$0xff]
      %v236 = vld [vmem:[%s216 + $0x10] sm:$0xff]
      %v237 = vld [vmem:[%s216 + $0x18] sm:$0xff]
      %v238 = vld [vmem:[%s216 + $0x20] sm:$0xff]
      %v239 = vld [vmem:[%s216 + $0x28] sm:$0xff]
      %v240 = vld [vmem:[%s216 + $0x30] sm:$0xff]
      %v241 = vld [vmem:[%s216 + $0x38] sm:$0xff]
      %v242 = vunpack.c.l.bf16 %v234
      %v243 = vunpack.c.h.bf16 %v234
      %v244 = vunpack.c.l.bf16 %v235
      %v245 = vunpack.c.h.bf16 %v235
      %v246 = vunpack.c.l.bf16 %v236
      %v247 = vunpack.c.h.bf16 %v236
      %v248 = vunpack.c.l.bf16 %v237
      %v249 = vunpack.c.h.bf16 %v237
      %v250 = vunpack.c.l.bf16 %v238
      %v251 = vunpack.c.h.bf16 %v238
      %v252 = vunpack.c.l.bf16 %v239
      %v253 = vunpack.c.h.bf16 %v239
      %v254 = vunpack.c.l.bf16 %v240
      %v255 = vunpack.c.h.bf16 %v240
      %v256 = vunpack.c.l.bf16 %v241
      %v257 = vunpack.c.h.bf16 %v241
      %v258 = vmax.f32 %v242, 0.0
      %v259 = vmax.f32 %v243, 0.0
      %v260 = vmax.f32 %v244, 0.0
      %v261 = vmax.f32 %v245, 0.0
      %v262 = vmax.f32 %v246, 0.0
      %v263 = vmax.f32 %v247, 0.0
      %v264 = vmax.f32 %v248, 0.0
      %v265 = vmax.f32 %v249, 0.0
      %v266 = vmax.f32 %v250, 0.0
      %v267 = vmax.f32 %v251, 0.0
      %v268 = vmax.f32 %v252, 0.0
      %v269 = vmax.f32 %v253, 0.0
      %v270 = vmax.f32 %v254, 0.0
      %v271 = vmax.f32 %v255, 0.0
      %v272 = vmax.f32 %v256, 0.0
      %v273 = vmax.f32 %v257, 0.0
      %v274 = vpack.c.bf16 %v262, %v258
      %v275 = vpack.c.bf16 %v263, %v259
      %v276 = vpack.c.bf16 %v264, %v260
      %v277 = vpack.c.bf16 %v265, %v261
      %v278 = vpack.c.bf16 %v270, %v266
      %v279 = vpack.c.bf16 %v271, %v267
      %v280 = vpack.c.bf16 %v272, %v268
      %v281 = vpack.c.bf16 %v273, %v269
      %v282 = vld [vmem:[%s222] sm:$0xf]
      %v283 = vld [vmem:[%s222 + $0x4] sm:$0xf]
      %v284 = vld [vmem:[%s222 + $0x8] sm:$0xf]
      %v285 = vld [vmem:[%s222 + $0xc] sm:$0xf]
      %v286 = vld [vmem:[%s222 + $0x10] sm:$0xf]
      %v287 = vld [vmem:[%s222 + $0x14] sm:$0xf]
      %v288 = vld [vmem:[%s222 + $0x18] sm:$0xf]
      %v289 = vld [vmem:[%s222 + $0x1c] sm:$0xf]
      %v290 = vld [vmem:[%s222 + $0x20] sm:$0xf]
      %v291 = vld [vmem:[%s222 + $0x24] sm:$0xf]
      %v292 = vld [vmem:[%s222 + $0x28] sm:$0xf]
      %v293 = vld [vmem:[%s222 + $0x2c] sm:$0xf]
      %v294 = vld [vmem:[%s222 + $0x30] sm:$0xf]
      %v295 = vld [vmem:[%s222 + $0x34] sm:$0xf]
      %v296 = vld [vmem:[%s222 + $0x38] sm:$0xf]
      %v297 = vld [vmem:[%s222 + $0x3c] sm:$0xf]
      %v298 = vld [vmem:[%s222 + $0x40] sm:$0xf]
      %v299 = vld [vmem:[%s222 + $0x44] sm:$0xf]
      %v300 = vld [vmem:[%s222 + $0x48] sm:$0xf]
      %v301 = vld [vmem:[%s222 + $0x4c] sm:$0xf]
      %v302 = vld [vmem:[%s222 + $0x50] sm:$0xf]
      %v303 = vld [vmem:[%s222 + $0x54] sm:$0xf]
      %v304 = vld [vmem:[%s222 + $0x58] sm:$0xf]
      %v305 = vld [vmem:[%s222 + $0x5c] sm:$0xf]
      %v306 = vld [vmem:[%s222 + $0x60] sm:$0xf]
      %v307 = vld [vmem:[%s222 + $0x64] sm:$0xf]
      %v308 = vld [vmem:[%s222 + $0x68] sm:$0xf]
      %v309 = vld [vmem:[%s222 + $0x6c] sm:$0xf]
      %v310 = vld [vmem:[%s222 + $0x70] sm:$0xf]
      %v311 = vld [vmem:[%s222 + $0x74] sm:$0xf]
      %v312 = vld [vmem:[%s222 + $0x78] sm:$0xf]
      %v313 = vld [vmem:[%s222 + $0x7c] sm:$0xf]
      %v314 = vld [vmem:[%s222 + $0x80] sm:$0xf]
      %v315 = vld [vmem:[%s222 + $0x84] sm:$0xf]
      %v316 = vld [vmem:[%s222 + $0x88] sm:$0xf]
      %v317 = vld [vmem:[%s222 + $0x8c] sm:$0xf]
      %v318 = vld [vmem:[%s222 + $0x90] sm:$0xf]
      %v319 = vld [vmem:[%s222 + $0x94] sm:$0xf]
      %v320 = vld [vmem:[%s222 + $0x98] sm:$0xf]
      %v321 = vld [vmem:[%s222 + $0x9c] sm:$0xf]
      %v322 = vld [vmem:[%s222 + $0xa0] sm:$0xf]
      %v323 = vld [vmem:[%s222 + $0xa4] sm:$0xf]
      %v324 = vld [vmem:[%s222 + $0xa8] sm:$0xf]
      %v325 = vld [vmem:[%s222 + $0xac] sm:$0xf]
      %v326 = vld [vmem:[%s222 + $0xb0] sm:$0xf]
      %v327 = vld [vmem:[%s222 + $0xb4] sm:$0xf]
      %v328 = vld [vmem:[%s222 + $0xb8] sm:$0xf]
      %v329 = vld [vmem:[%s222 + $0xbc] sm:$0xf]
      %v330 = vld [vmem:[%s222 + $0xc0] sm:$0xf]
      %v331 = vld [vmem:[%s222 + $0xc4] sm:$0xf]
      %v332 = vld [vmem:[%s222 + $0xc8] sm:$0xf]
      %v333 = vld [vmem:[%s222 + $0xcc] sm:$0xf]
      %v334 = vld [vmem:[%s222 + $0xd0] sm:$0xf]
      %v335 = vld [vmem:[%s222 + $0xd4] sm:$0xf]
      %v336 = vld [vmem:[%s222 + $0xd8] sm:$0xf]
      %v337 = vld [vmem:[%s222 + $0xdc] sm:$0xf]
      %v338 = vld [vmem:[%s222 + $0xe0] sm:$0xf]
      %v339 = vld [vmem:[%s222 + $0xe4] sm:$0xf]
      %v340 = vld [vmem:[%s222 + $0xe8] sm:$0xf]
      %v341 = vld [vmem:[%s222 + $0xec] sm:$0xf]
      %v342 = vld [vmem:[%s222 + $0xf0] sm:$0xf]
      %v343 = vld [vmem:[%s222 + $0xf4] sm:$0xf]
      %v344 = vld [vmem:[%s222 + $0xf8] sm:$0xf]
      %v345 = vld [vmem:[%s222 + $0xfc] sm:$0xf]
      %v346 = vld [vmem:[%s2] sm:$0x1]
      %v348 = vlaneseq
      %v349 = vshrl.u32 %v348, 7
      %v350 = vsub.s32 0, %v349
      %v351 = vrot.slane %v346, %v350
      %v417 = vunpack.c.l.b16 %v282
      %v418 = vunpack.c.l.b16 %v283
      %v419 = vunpack.c.l.b16 %v284
      %v420 = vunpack.c.l.b16 %v285
      %v421 = vunpack.c.l.b16 %v286
      %v422 = vunpack.c.l.b16 %v287
      %v423 = vunpack.c.l.b16 %v288
      %v424 = vunpack.c.l.b16 %v289
      %v425 = vunpack.c.l.b16 %v290
      %v426 = vunpack.c.l.b16 %v291
      %v427 = vunpack.c.l.b16 %v292
      %v428 = vunpack.c.l.b16 %v293
      %v429 = vunpack.c.l.b16 %v294
      %v430 = vunpack.c.l.b16 %v295
      %v431 = vunpack.c.l.b16 %v296
      %v432 = vunpack.c.l.b16 %v297
      %v433 = vunpack.c.l.b16 %v298
      %v434 = vunpack.c.l.b16 %v299
      %v435 = vunpack.c.l.b16 %v300
      %v436 = vunpack.c.l.b16 %v301
      %v437 = vunpack.c.l.b16 %v302
      %v438 = vunpack.c.l.b16 %v303
      %v439 = vunpack.c.l.b16 %v304
      %v440 = vunpack.c.l.b16 %v305
      %v441 = vunpack.c.l.b16 %v306
      %v442 = vunpack.c.l.b16 %v307
      %v443 = vunpack.c.l.b16 %v308
      %v444 = vunpack.c.l.b16 %v309
      %v445 = vunpack.c.l.b16 %v310
      %v446 = vunpack.c.l.b16 %v311
      %v447 = vunpack.c.l.b16 %v312
      %v448 = vunpack.c.l.b16 %v313
      %v449 = vunpack.c.l.b16 %v314
      %v450 = vunpack.c.l.b16 %v315
      %v451 = vunpack.c.l.b16 %v316
      %v452 = vunpack.c.l.b16 %v317
      %v453 = vunpack.c.l.b16 %v318
      %v454 = vunpack.c.l.b16 %v319
      %v455 = vunpack.c.l.b16 %v320
      %v456 = vunpack.c.l.b16 %v321
      %v457 = vunpack.c.l.b16 %v322
      %v458 = vunpack.c.l.b16 %v323
      %v459 = vunpack.c.l.b16 %v324
      %v460 = vunpack.c.l.b16 %v325
      %v461 = vunpack.c.l.b16 %v326
      %v462 = vunpack.c.l.b16 %v327
      %v463 = vunpack.c.l.b16 %v328
      %v464 = vunpack.c.l.b16 %v329
      %v465 = vunpack.c.l.b16 %v330
      %v466 = vunpack.c.l.b16 %v331
      %v467 = vunpack.c.l.b16 %v332
      %v468 = vunpack.c.l.b16 %v333
      %v469 = vunpack.c.l.b16 %v334
      %v470 = vunpack.c.l.b16 %v335
      %v471 = vunpack.c.l.b16 %v336
      %v472 = vunpack.c.l.b16 %v337
      %v473 = vunpack.c.l.b16 %v338
      %v474 = vunpack.c.l.b16 %v339
      %v475 = vunpack.c.l.b16 %v340
      %v476 = vunpack.c.l.b16 %v341
      %v477 = vunpack.c.l.b16 %v342
      %v478 = vunpack.c.l.b16 %v343
      %v479 = vunpack.c.l.b16 %v344
      %v480 = vunpack.c.l.b16 %v345
      %v481 = vpack.c.b16 %v418, %v417
      %v482 = vpack.c.b16 %v420, %v419
      %v483 = vpack.c.b16 %v422, %v421
      %v484 = vpack.c.b16 %v424, %v423
      %v485 = vpack.c.b16 %v426, %v425
      %v486 = vpack.c.b16 %v428, %v427
      %v487 = vpack.c.b16 %v430, %v429
      %v488 = vpack.c.b16 %v432, %v431
      %v489 = vpack.c.b16 %v434, %v433
      %v490 = vpack.c.b16 %v436, %v435
      %v491 = vpack.c.b16 %v438, %v437
      %v492 = vpack.c.b16 %v440, %v439
      %v493 = vpack.c.b16 %v442, %v441
      %v494 = vpack.c.b16 %v444, %v443
      %v495 = vpack.c.b16 %v446, %v445
      %v496 = vpack.c.b16 %v448, %v447
      %v497 = vpack.c.b16 %v450, %v449
      %v498 = vpack.c.b16 %v452, %v451
      %v499 = vpack.c.b16 %v454, %v453
      %v500 = vpack.c.b16 %v456, %v455
      %v501 = vpack.c.b16 %v458, %v457
      %v502 = vpack.c.b16 %v460, %v459
      %v503 = vpack.c.b16 %v462, %v461
      %v504 = vpack.c.b16 %v464, %v463
      %v505 = vpack.c.b16 %v466, %v465
      %v506 = vpack.c.b16 %v468, %v467
      %v507 = vpack.c.b16 %v470, %v469
      %v508 = vpack.c.b16 %v472, %v471
      %v509 = vpack.c.b16 %v474, %v473
      %v510 = vpack.c.b16 %v476, %v475
      %v511 = vpack.c.b16 %v478, %v477
      %v512 = vpack.c.b16 %v480, %v479
      %545 = vmatprep.subr.bf16.mxu0 0
      %546 = vmatpush1.bf16.msra.mxu0 %v488
      %547 = vmatprep.subr.bf16.mxu0 0
      %548 = vmatpush1.bf16.msra.mxu0 %v487
      %549 = vmatprep.subr.bf16.mxu0 0
      %550 = vmatpush1.bf16.msra.mxu0 %v486
      %551 = vmatprep.subr.bf16.mxu0 0
      %552 = vmatpush1.bf16.msra.mxu0 %v485
      %553 = vmatprep.subr.bf16.mxu0 0
      %554 = vmatpush1.bf16.msra.mxu0 %v484
      %555 = vmatprep.subr.bf16.mxu0 0
      %556 = vmatpush1.bf16.msra.mxu0 %v483
      %557 = vmatprep.subr.bf16.mxu0 0
      %558 = vmatpush1.bf16.msra.mxu0 %v482
      %559 = vmatprep.subr.bf16.mxu0 0
      %560 = vmatpush1.bf16.msra.mxu0 %v481
      %561 = vmatprep.subr.bf16.mxu0 0
      %562 = vmatpush2.bf16.msra.mxu0 %v496
      %563 = vmatprep.subr.bf16.mxu0 0
      %564 = vmatpush2.bf16.msra.mxu0 %v495
      %565 = vmatprep.subr.bf16.mxu0 0
      %566 = vmatpush2.bf16.msra.mxu0 %v494
      %567 = vmatprep.subr.bf16.mxu0 0
      %568 = vmatpush2.bf16.msra.mxu0 %v493
      %569 = vmatprep.subr.bf16.mxu0 0
      %570 = vmatpush2.bf16.msra.mxu0 %v492
      %571 = vmatprep.subr.bf16.mxu0 0
      %572 = vmatpush2.bf16.msra.mxu0 %v491
      %573 = vmatprep.subr.bf16.mxu0 0
      %574 = vmatpush2.bf16.msra.mxu0 %v490
      %575 = vmatprep.subr.bf16.mxu0 0
      %576 = vmatpush2.bf16.msra.mxu0 %v489
      %577 = vmatprep.mubr.bf16.mxu0 %v275
      %578 = vmatmul.mubr.bf16.gmra.mxu0 %v274
      %v579 = vpop.f32.mrf.mxu0
      %v580 = vadd.f32 %v351, %v579
      %v581 = vpop.f32.mrf.mxu0
      %v582 = vpop.f32.mrf.mxu0
      %v583 = vadd.f32 %v351, %v582
      %v584 = vpop.f32.mrf.mxu0
      %585 = vmatprep.mubr.bf16.mxu0 %v279
      %586 = vmatmul.mubr.bf16.gmra.mxu0 %v278
      %v587 = vpop.f32.mrf.mxu0
      %v588 = vadd.f32 %v351, %v587
      %v589 = vpop.f32.mrf.mxu0
      %v590 = vpop.f32.mrf.mxu0
      %v591 = vadd.f32 %v351, %v590
      %v592 = vpop.f32.mrf.mxu0
      %593 = vdwg.mxu0
      %594 = vmatprep.subr.bf16.mxu0 0
      %595 = vmatpush1.bf16.msra.mxu0 %v504
      %596 = vmatprep.subr.bf16.mxu0 0
      %597 = vmatpush1.bf16.msra.mxu0 %v503
      %598 = vmatprep.subr.bf16.mxu0 0
      %599 = vmatpush1.bf16.msra.mxu0 %v502
      %600 = vmatprep.subr.bf16.mxu0 0
      %601 = vmatpush1.bf16.msra.mxu0 %v501
      %602 = vmatprep.subr.bf16.mxu0 0
      %603 = vmatpush1.bf16.msra.mxu0 %v500
      %604 = vmatprep.subr.bf16.mxu0 0
      %605 = vmatpush1.bf16.msra.mxu0 %v499
      %606 = vmatprep.subr.bf16.mxu0 0
      %607 = vmatpush1.bf16.msra.mxu0 %v498
      %608 = vmatprep.subr.bf16.mxu0 0
      %609 = vmatpush1.bf16.msra.mxu0 %v497
      %610 = vmatprep.subr.bf16.mxu0 0
      %611 = vmatpush2.bf16.msra.mxu0 %v512
      %612 = vmatprep.subr.bf16.mxu0 0
      %613 = vmatpush2.bf16.msra.mxu0 %v511
      %614 = vmatprep.subr.bf16.mxu0 0
      %615 = vmatpush2.bf16.msra.mxu0 %v510
      %616 = vmatprep.subr.bf16.mxu0 0
      %617 = vmatpush2.bf16.msra.mxu0 %v509
      %618 = vmatprep.subr.bf16.mxu0 0
      %619 = vmatpush2.bf16.msra.mxu0 %v508
      %620 = vmatprep.subr.bf16.mxu0 0
      %621 = vmatpush2.bf16.msra.mxu0 %v507
      %622 = vmatprep.subr.bf16.mxu0 0
      %623 = vmatpush2.bf16.msra.mxu0 %v506
      %624 = vmatprep.subr.bf16.mxu0 0
      %625 = vmatpush2.bf16.msra.mxu0 %v505
      %626 = vmatprep.mubr.bf16.mxu0 %v277
      %627 = vmatmul.mubr.bf16.gmra.mxu0 %v276
      %v628 = vpop.f32.mrf.mxu0
      %v629 = vadd.f32 %v580, %v628
      %v630 = vpop.f32.mrf.mxu0
      %v631 = vpop.f32.mrf.mxu0
      %v632 = vadd.f32 %v583, %v631
      %v633 = vpop.f32.mrf.mxu0
      %634 = vmatprep.mubr.bf16.mxu0 %v281
      %635 = vmatmul.mubr.bf16.gmra.mxu0 %v280
      %v636 = vpop.f32.mrf.mxu0
      %v637 = vadd.f32 %v588, %v636
      %v638 = vpop.f32.mrf.mxu0
      %v639 = vpop.f32.mrf.mxu0
      %v640 = vadd.f32 %v591, %v639
      %v641 = vpop.f32.mrf.mxu0
      %642 = vdwg.mxu0
      %v643 = vpack.c.bf16 %v632, %v629
      %v644 = vpack.c.bf16 %v640, %v637
      %v647 = vunpack.c.l.b16 %v643
      %v648 = vunpack.c.h.b16 %v643
      %v649 = vunpack.c.l.b16 %v644
      %v650 = vunpack.c.h.b16 %v644
      %v651 = vpack.c.b16 %v647, %v647
      %v652 = vpack.c.b16 %v648, %v648
      %v653 = vpack.c.b16 %v649, %v649
      %v654 = vpack.c.b16 %v650, %v650
      %659 = vst [vmem:[%s231] sm:$0xf] %v651
      %660 = vst [vmem:[%s231 + $0x4] sm:$0xf] %v652
      %661 = vst [vmem:[%s231 + $0x8] sm:$0xf] %v653
      %662 = vst [vmem:[%s231 + $0xc] sm:$0xf] %v654
      %s663 = smul.u32 4, %s19
      %p664 = scmp.lt.s32.totalorder %s18, 3
      %s665 = scalar_select %p664, %s18, 3
      %p666 = scmp.lt.s32.totalorder %s663, 3
      %s667 = scalar_select %p666, %s663, 3
      %s668 = smul.addr %s665, 4
      %s669 = sadd.s32 %s667, %s668
      %s670 = smul.addr %s669, 4
      %s671 = scalar_lea.vmem %s3, %s670
      // Predicated region
      $region33: #{_lambda_.15} parent=31 // pred_check
        %p672 = pneg %p121
      $region34: #{_lambda_.15} parent=31 // pred_check_branch
        %674 = sbr.rel (%p672) target = $region36
      $region35: #{_lambda_.15} parent=31 // pred_region
        %s675 = smul.u32 4, %s19
      $region36: #{_lambda_.15} parent=31 // pred_fallthru
        _
    $region32: #{_lambda_.15} parent=5 // pred_fallthru
      _
    %p676 = scmp.le.s32.totalorder 2, %s9
    // Predicated region
    $region37: #{_lambda_.15} parent=5 // pred_check
      %p677 = pneg %p676
    $region38: #{_lambda_.15} parent=5 // pred_check_branch
      %679 = sbr.rel (%p677) target = $region40
    $region39: #{_lambda_.15} parent=5 // pred_region
      %s680 = ssub.s32 %s9, 2
      // Predicated region
      $region41: #{_lambda_.15} parent=39 // pred_check
        %p681 = pneg %p127
      $region42: #{_lambda_.15} parent=39 // pred_check_branch
        %683 = sbr.rel (%p681) target = $region44
      $region43: #{_lambda_.15} parent=39 // pred_region
        %s684 = smul.u32 4, %s21
        %p685 = scmp.lt.s32.totalorder %s20, 3
        %s686 = scalar_select %p685, %s20, 3
        %p687 = scmp.lt.s32.totalorder %s684, 3
        %s688 = scalar_select %p687, %s684, 3
        %s689 = smul.addr %s686, 4
        %s690 = sadd.s32 %s688, %s689
        %s691 = smul.addr %s690, 4
        %s692 = scalar_lea.vmem %s3, %s691
      $region44: #{_lambda_.15} parent=39 // pred_fallthru
        _
    $region40: #{_lambda_.15} parent=5 // pred_fallthru
      _
  $region6: #{_lambda_.15} parent=0 // loop_footer
    %s13 = sadd.s32 1, %s9
  $region7: #{_lambda_.15} parent=0 // loop_footer_branch
    %8 = sbr.rel target = $region3
  $region8: #{_lambda_.15} parent=0 // loop_exit
    _

// kernel: _lambda_.16
$region0: #{_lambda_.16}
  #allocation0 [shape = 'u32[]', space=smem, size = 0x4, offset = 0x4, fixed_abs, tag = 'smem constant byte address 0x4 - core index']
  #allocation1 [shape = 'u32[144,128]{1,0:T(1,128)}', space=vmem, size = 0x12000, scoped, tag = 'internal scratch']
  %s0 = inlined_call_operand.vmem [shape: bf16[4,128,256], index: 0, kind: input, shape index: {}]
  %s1 = inlined_call_operand.vmem [shape: bf16[4,256,128], index: 1, kind: input, shape index: {}]
  %s2 = inlined_call_operand.vmem [shape: f32[1,128], index: 2, kind: input, shape index: {}]
  %s3 = inlined_call_operand.vmem [shape: bf16[4,128,128], index: 3, kind: output, shape index: {}]
  %s4 = sld [smem:[#allocation0]]
  $region45: #{_lambda_.16} parent=0
    _
  %s6 = ssub.s32 1, %s4
  %s7 = scalar_select 0, %s6, %s4
  loop: start=0, step=1, limit=6
  $region2: #{_lambda_.16} parent=0 // loop_pre_header
    _
  $region3: #{_lambda_.16} parent=0 // loop_header
    %s9 = sphi 0, %s13
    %p10 = scmp.ge.s32.totalorder %s9, 6
    %s16 = sphi 0, %s28
    %s17 = sphi 0, %s24
    %s18 = sphi 0, %s16
    %s19 = sphi 0, %s17
    %s20 = sphi 0, %s18
    %s21 = sphi 0, %s19
    %s33 = sphi 0, %s35
    %s36 = sphi 0, %s33
    %s37 = sphi 0, %s36
    %s53 = sphi 0, %s37
    %s59 = sphi 0, %s61
    %s62 = sphi 0, %s59
    %s63 = sphi 0, %s62
    %s79 = sphi 0, %s63
    %s83 = sphi 0, %s83
    %s85 = sphi 0, %s83
    %s86 = sphi 0, %s85
    %s100 = sphi 0, %s86
    %s108 = sphi 0, %s110
    %s111 = sphi 0, %s108
    %s112 = sphi 0, %s111
    %s128 = sphi 0, %s112
  $region4: #{_lambda_.16} parent=0 // loop_header_branch
    %12 = sbr.rel (%p10) target = $region8
  $region5: #{_lambda_.16} parent=0 // loop_body
    %s14 = ssub.s32 %s9, 1
    %s15 = ssub.s32 %s9, 2
    %s22 = sadd.s32 1, %s17
    %p23 = scmp.ge.s32.totalorder %s22, 1
    %s24 = scalar_select %p23, 0, %s22
    %s25 = sadd.s32 1, %s16
    %s26 = scalar_select %p23, %s25, %s16
    %p27 = scmp.ge.s32.totalorder %s26, 4
    %s28 = scalar_select %p27, 0, %s26
    %s29 = ssub.s32 %s16, %s28
    %s30 = ssub.s32 %s17, %s24
    %s31 = sor.u32 %s29, %s30
    %p32 = scmp.eq.s32.totalorder %s31, 0
    %s34 = sadd.s32 %s33, 1
    %s35 = scalar_select %p32, %s33, %s34
    %p38 = pneg %p32
    %p39 = scmp.eq.s32.totalorder %s9, 3
    %p40 = por %p38, %p39
    %p41 = scmp.ne.s32.totalorder %s33, %s36
    %p42 = scmp.eq.s32.totalorder %s9, 0
    %p43 = por %p41, %p42
    %p44 = scmp.ne.s32.totalorder %s33, %s36
    %p45 = scmp.eq.s32.totalorder %s14, 3
    %p46 = por %p44, %p45
    %p47 = scmp.ne.s32.totalorder %s36, %s37
    %p48 = scmp.eq.s32.totalorder %s14, 0
    %p49 = por %p47, %p48
    %p50 = scmp.ne.s32.totalorder %s36, %s37
    %p51 = scmp.eq.s32.totalorder %s15, 3
    %p52 = por %p50, %p51
    %p54 = scmp.ne.s32.totalorder %s37, %s53
    %p55 = scmp.eq.s32.totalorder %s15, 0
    %p56 = por %p54, %p55
    %s57 = ssub.s32 %s16, %s28
    %p58 = scmp.eq.s32.totalorder %s57, 0
    %s60 = sadd.s32 %s59, 1
    %s61 = scalar_select %p58, %s59, %s60
    %p64 = pneg %p58
    %p65 = scmp.eq.s32.totalorder %s9, 3
    %p66 = por %p64, %p65
    %p67 = scmp.ne.s32.totalorder %s59, %s62
    %p68 = scmp.eq.s32.totalorder %s9, 0
    %p69 = por %p67, %p68
    %p70 = scmp.ne.s32.totalorder %s59, %s62
    %p71 = scmp.eq.s32.totalorder %s14, 3
    %p72 = por %p70, %p71
    %p73 = scmp.ne.s32.totalorder %s62, %s63
    %p74 = scmp.eq.s32.totalorder %s14, 0
    %p75 = por %p73, %p74
    %p76 = scmp.ne.s32.totalorder %s62, %s63
    %p77 = scmp.eq.s32.totalorder %s15, 3
    %p78 = por %p76, %p77
    %p80 = scmp.ne.s32.totalorder %s63, %s79
    %p81 = scmp.eq.s32.totalorder %s15, 0
    %p82 = por %p80, %p81
    %s84 = sadd.s32 %s83, 1
    %p87 = scmp.eq.s32.totalorder %s9, 3
    %p88 = scmp.ne.s32.totalorder %s83, %s85
    %p89 = scmp.eq.s32.totalorder %s9, 0
    %p90 = por %p88, %p89
    %p91 = scmp.ne.s32.totalorder %s83, %s85
    %p92 = scmp.eq.s32.totalorder %s14, 3
    %p93 = por %p91, %p92
    %p94 = scmp.ne.s32.totalorder %s85, %s86
    %p95 = scmp.eq.s32.totalorder %s14, 0
    %p96 = por %p94, %p95
    %p97 = scmp.ne.s32.totalorder %s85, %s86
    %p98 = scmp.eq.s32.totalorder %s15, 3
    %p99 = por %p97, %p98
    %p101 = scmp.ne.s32.totalorder %s86, %s100
    %p102 = scmp.eq.s32.totalorder %s15, 0
    %p103 = por %p101, %p102
    %s104 = ssub.s32 %s16, %s28
    %s105 = ssub.s32 %s17, %s24
    %s106 = sor.u32 %s104, %s105
    %p107 = scmp.eq.s32.totalorder %s106, 0
    %s109 = sadd.s32 %s108, 1
    %s110 = scalar_select %p107, %s108, %s109
    %p113 = pneg %p107
    %p114 = scmp.eq.s32.totalorder %s9, 3
    %p115 = por %p113, %p114
    %p116 = scmp.ne.s32.totalorder %s108, %s111
    %p117 = scmp.eq.s32.totalorder %s9, 0
    %p118 = por %p116, %p117
    %p119 = scmp.ne.s32.totalorder %s108, %s111
    %p120 = scmp.eq.s32.totalorder %s14, 3
    %p121 = por %p119, %p120
    %p122 = scmp.ne.s32.totalorder %s111, %s112
    %p123 = scmp.eq.s32.totalorder %s14, 0
    %p124 = por %p122, %p123
    %p125 = scmp.ne.s32.totalorder %s111, %s112
    %p126 = scmp.eq.s32.totalorder %s15, 3
    %p127 = por %p125, %p126
    %p129 = scmp.ne.s32.totalorder %s112, %s128
    %p130 = scmp.eq.s32.totalorder %s15, 0
    %p131 = por %p129, %p130
    %p132 = scmp.le.s32.totalorder 1, %s9
    %p133 = scmp.lt.s32.totalorder %s9, 5
    %p134 = pnand %p132, %p133
    %p135 = pneg %p134
    // Predicated region
    $region9: #{_lambda_.16} parent=5 // pred_check
      _
    $region10: #{_lambda_.16} parent=5 // pred_check_branch
      %137 = sbr.rel (%p134) target = $region12
    $region11: #{_lambda_.16} parent=5 // pred_region
      %s138 = ssub.s32 %s9, 1
      // Predicated region
      $region13: #{_lambda_.16} parent=11 // pred_check
        %p139 = pneg %p96
      $region14: #{_lambda_.16} parent=11 // pred_check_branch
        %141 = sbr.rel (%p139) target = $region16
      $region15: #{_lambda_.16} parent=11 // pred_region
        _
      $region16: #{_lambda_.16} parent=11 // pred_fallthru
        _
    $region12: #{_lambda_.16} parent=5 // pred_fallthru
      _
    %p142 = scmp.lt.s32.totalorder %s9, 4
    // Predicated region
    $region17: #{_lambda_.16} parent=5 // pred_check
      %p143 = pneg %p142
    $region18: #{_lambda_.16} parent=5 // pred_check_branch
      %145 = sbr.rel (%p143) target = $region20
    $region19: #{_lambda_.16} parent=5 // pred_region
      // Predicated region
      $region21: #{_lambda_.16} parent=19 // pred_check
        %p146 = pneg %p43
      $region22: #{_lambda_.16} parent=19 // pred_check_branch
        %148 = sbr.rel (%p146) target = $region24
      $region23: #{_lambda_.16} parent=19 // pred_region
        %s149 = smul.u32 16, %s17
        %p150 = scmp.lt.s32.totalorder %s16, 3
        %s151 = scalar_select %p150, %s16, 3
        %p152 = scmp.lt.s32.totalorder %s149, 15
        %s153 = scalar_select %p152, %s149, 15
        %s154 = smul.addr %s153, 2
        %s155 = smul.addr %s151, 32
        %s156 = sadd.s32 %s154, %s155
        %s157 = smul.addr %s156, 4
        %s158 = scalar_lea.vmem %s0, %s157
        %s159 = smul.u32 16, %s17
      $region24: #{_lambda_.16} parent=19 // pred_fallthru
        _
      // Predicated region
      $region25: #{_lambda_.16} parent=19 // pred_check
        %p160 = pneg %p69
      $region26: #{_lambda_.16} parent=19 // pred_check_branch
        %162 = sbr.rel (%p160) target = $region28
      $region27: #{_lambda_.16} parent=19 // pred_region
        %p163 = scmp.lt.s32.totalorder %s16, 3
        %s164 = scalar_select %p163, %s16, 3
        %s165 = smul.addr %s164, 32
        %s166 = smul.addr %s165, 4
        %s167 = scalar_lea.vmem %s1, %s166
      $region28: #{_lambda_.16} parent=19 // pred_fallthru
        _
    $region20: #{_lambda_.16} parent=5 // pred_fallthru
      _
    %p168 = scmp.le.s32.totalorder 1, %s9
    %p169 = scmp.lt.s32.totalorder %s9, 5
    %p170 = pnand %p168, %p169
    %p171 = pneg %p170
    // Predicated region
    $region29: #{_lambda_.16} parent=5 // pred_check
      _
    $region30: #{_lambda_.16} parent=5 // pred_check_branch
      %173 = sbr.rel (%p170) target = $region32
    $region31: #{_lambda_.16} parent=5 // pred_region
      %s174 = ssub.s32 %s9, 1
      %s175 = smul.u32 16, %s19
      %p176 = scmp.lt.s32.totalorder %s18, 3
      %s177 = scalar_select %p176, %s18, 3
      %p178 = scmp.lt.s32.totalorder %s175, 15
      %s179 = scalar_select %p178, %s175, 15
      %s180 = smul.addr %s179, 2
      %s181 = smul.addr %s177, 32
      %s182 = sadd.s32 %s180, %s181
      %s183 = smul.addr %s182, 4
      %s184 = scalar_lea.vmem %s0, %s183
      %p185 = pneg %p49
      %p186 = pneg %p46
      %p187 = scmp.lt.s32.totalorder %s18, 3
      %s188 = scalar_select %p187, %s18, 3
      %s189 = smul.addr %s188, 32
      %s190 = smul.addr %s189, 4
      %s191 = scalar_lea.vmem %s1, %s190
      %p192 = pneg %p75
      %p193 = pneg %p72
      %p194 = pneg %p96
      %p195 = pneg %p93
      %p196 = pneg %p124
      %p197 = pneg %p121
      %s198 = smul.u32 16, %s19
      %p199 = scmp.lt.s32.totalorder %s18, 3
      %s200 = scalar_select %p199, %s18, 3
      %p201 = scmp.lt.s32.totalorder %s198, 15
      %s202 = scalar_select %p201, %s198, 15
      %s203 = smul.addr %s200, 16
      %s204 = sadd.s32 %s202, %s203
      %s205 = smul.addr %s204, 4
      %s206 = scalar_lea.vmem %s3, %s205
      %s207 = smul.u32 16, %s19
      %p208 = scmp.lt.s32.totalorder %s18, 3
      %s209 = scalar_select %p208, %s18, 3
      %p210 = scmp.lt.s32.totalorder %s207, 15
      %s211 = scalar_select %p210, %s207, 15
      %s212 = smul.addr %s211, 2
      %s213 = smul.addr %s209, 32
      %s214 = sadd.s32 %s212, %s213
      %s215 = smul.addr %s214, 4
      %s216 = scalar_lea.vmem %s0, %s215
      %s217 = smul.u32 16, %s19
      %p218 = scmp.lt.s32.totalorder %s18, 3
      %s219 = scalar_select %p218, %s18, 3
      %s220 = smul.addr %s219, 32
      %s221 = smul.addr %s220, 4
      %s222 = scalar_lea.vmem %s1, %s221
      %s223 = smul.u32 16, %s19
      %p224 = scmp.lt.s32.totalorder %s18, 3
      %s225 = scalar_select %p224, %s18, 3
      %p226 = scmp.lt.s32.totalorder %s223, 15
      %s227 = scalar_select %p226, %s223, 15
      %s228 = smul.addr %s225, 16
      %s229 = sadd.s32 %s227, %s228
      %s230 = smul.addr %s229, 4
      %s231 = scalar_lea.vmem %s3, %s230
      %s232 = smul.u32 16, %s19
      %v234 = vld [vmem:[%s216] sm:$0xff]
      %v235 = vld [vmem:[%s216 + $0x8] sm:$0xff]
      %v236 = vld [vmem:[%s216 + $0x10] sm:$0xff]
      %v237 = vld [vmem:[%s216 + $0x18] sm:$0xff]
      %v238 = vld [vmem:[%s216 + $0x20] sm:$0xff]
      %v239 = vld [vmem:[%s216 + $0x28] sm:$0xff]
      %v240 = vld [vmem:[%s216 + $0x30] sm:$0xff]
      %v241 = vld [vmem:[%s216 + $0x38] sm:$0xff]
      %v242 = vld [vmem:[%s216 + $0x40] sm:$0xff]
      %v243 = vld [vmem:[%s216 + $0x48] sm:$0xff]
      %v244 = vld [vmem:[%s216 + $0x50] sm:$0xff]
      %v245 = vld [vmem:[%s216 + $0x58] sm:$0xff]
      %v246 = vld [vmem:[%s216 + $0x60] sm:$0xff]
      %v247 = vld [vmem:[%s216 + $0x68] sm:$0xff]
      %v248 = vld [vmem:[%s216 + $0x70] sm:$0xff]
      %v249 = vld [vmem:[%s216 + $0x78] sm:$0xff]
      %v250 = vunpack.c.l.bf16 %v234
      %v251 = vunpack.c.h.bf16 %v234
      %v252 = vunpack.c.l.bf16 %v235
      %v253 = vunpack.c.h.bf16 %v235
      %v254 = vunpack.c.l.bf16 %v236
      %v255 = vunpack.c.h.bf16 %v236
      %v256 = vunpack.c.l.bf16 %v237
      %v257 = vunpack.c.h.bf16 %v237
      %v258 = vunpack.c.l.bf16 %v238
      %v259 = vunpack.c.h.bf16 %v238
      %v260 = vunpack.c.l.bf16 %v239
      %v261 = vunpack.c.h.bf16 %v239
      %v262 = vunpack.c.l.bf16 %v240
      %v263 = vunpack.c.h.bf16 %v240
      %v264 = vunpack.c.l.bf16 %v241
      %v265 = vunpack.c.h.bf16 %v241
      %v266 = vunpack.c.l.bf16 %v242
      %v267 = vunpack.c.h.bf16 %v242
      %v268 = vunpack.c.l.bf16 %v243
      %v269 = vunpack.c.h.bf16 %v243
      %v270 = vunpack.c.l.bf16 %v244
      %v271 = vunpack.c.h.bf16 %v244
      %v272 = vunpack.c.l.bf16 %v245
      %v273 = vunpack.c.h.bf16 %v245
      %v274 = vunpack.c.l.bf16 %v246
      %v275 = vunpack.c.h.bf16 %v246
      %v276 = vunpack.c.l.bf16 %v247
      %v277 = vunpack.c.h.bf16 %v247
      %v278 = vunpack.c.l.bf16 %v248
      %v279 = vunpack.c.h.bf16 %v248
      %v280 = vunpack.c.l.bf16 %v249
      %v281 = vunpack.c.h.bf16 %v249
      %v282 = vmax.f32 %v250, 0.0
      %v283 = vmax.f32 %v251, 0.0
      %v284 = vmax.f32 %v252, 0.0
      %v285 = vmax.f32 %v253, 0.0
      %v286 = vmax.f32 %v254, 0.0
      %v287 = vmax.f32 %v255, 0.0
      %v288 = vmax.f32 %v256, 0.0
      %v289 = vmax.f32 %v257, 0.0
      %v290 = vmax.f32 %v258, 0.0
      %v291 = vmax.f32 %v259, 0.0
      %v292 = vmax.f32 %v260, 0.0
      %v293 = vmax.f32 %v261, 0.0
      %v294 = vmax.f32 %v262, 0.0
      %v295 = vmax.f32 %v263, 0.0
      %v296 = vmax.f32 %v264, 0.0
      %v297 = vmax.f32 %v265, 0.0
      %v298 = vmax.f32 %v266, 0.0
      %v299 = vmax.f32 %v267, 0.0
      %v300 = vmax.f32 %v268, 0.0
      %v301 = vmax.f32 %v269, 0.0
      %v302 = vmax.f32 %v270, 0.0
      %v303 = vmax.f32 %v271, 0.0
      %v304 = vmax.f32 %v272, 0.0
      %v305 = vmax.f32 %v273, 0.0
      %v306 = vmax.f32 %v274, 0.0
      %v307 = vmax.f32 %v275, 0.0
      %v308 = vmax.f32 %v276, 0.0
      %v309 = vmax.f32 %v277, 0.0
      %v310 = vmax.f32 %v278, 0.0
      %v311 = vmax.f32 %v279, 0.0
      %v312 = vmax.f32 %v280, 0.0
      %v313 = vmax.f32 %v281, 0.0
      %v314 = vpack.c.bf16 %v284, %v282
      %v315 = vpack.c.bf16 %v285, %v283
      %v316 = vpack.c.bf16 %v288, %v286
      %v317 = vpack.c.bf16 %v289, %v287
      %v318 = vpack.c.bf16 %v292, %v290
      %v319 = vpack.c.bf16 %v293, %v291
      %v320 = vpack.c.bf16 %v296, %v294
      %v321 = vpack.c.bf16 %v297, %v295
      %v322 = vpack.c.bf16 %v300, %v298
      %v323 = vpack.c.bf16 %v301, %v299
      %v324 = vpack.c.bf16 %v304, %v302
      %v325 = vpack.c.bf16 %v305, %v303
      %v326 = vpack.c.bf16 %v308, %v306
      %v327 = vpack.c.bf16 %v309, %v307
      %v328 = vpack.c.bf16 %v312, %v310
      %v329 = vpack.c.bf16 %v313, %v311
      %v330 = vld [vmem:[%s222] sm:$0xf]
      %v331 = vld [vmem:[%s222 + $0x4] sm:$0xf]
      %v332 = vld [vmem:[%s222 + $0x8] sm:$0xf]
      %v333 = vld [vmem:[%s222 + $0xc] sm:$0xf]
      %v334 = vld [vmem:[%s222 + $0x10] sm:$0xf]
      %v335 = vld [vmem:[%s222 + $0x14] sm:$0xf]
      %v336 = vld [vmem:[%s222 + $0x18] sm:$0xf]
      %v337 = vld [vmem:[%s222 + $0x1c] sm:$0xf]
      %v338 = vld [vmem:[%s222 + $0x20] sm:$0xf]
      %v339 = vld [vmem:[%s222 + $0x24] sm:$0xf]
      %v340 = vld [vmem:[%s222 + $0x28] sm:$0xf]
      %v341 = vld [vmem:[%s222 + $0x2c] sm:$0xf]
      %v342 = vld [vmem:[%s222 + $0x30] sm:$0xf]
      %v343 = vld [vmem:[%s222 + $0x34] sm:$0xf]
      %v344 = vld [vmem:[%s222 + $0x38] sm:$0xf]
      %v345 = vld [vmem:[%s222 + $0x3c] sm:$0xf]
      %v346 = vld [vmem:[%s222 + $0x40] sm:$0xf]
      %v347 = vld [vmem:[%s222 + $0x44] sm:$0xf]
      %v348 = vld [vmem:[%s222 + $0x48] sm:$0xf]
      %v349 = vld [vmem:[%s222 + $0x4c] sm:$0xf]
      %v350 = vld [vmem:[%s222 + $0x50] sm:$0xf]
      %v351 = vld [vmem:[%s222 + $0x54] sm:$0xf]
      %v352 = vld [vmem:[%s222 + $0x58] sm:$0xf]
      %v353 = vld [vmem:[%s222 + $0x5c] sm:$0xf]
      %v354 = vld [vmem:[%s222 + $0x60] sm:$0xf]
      %v355 = vld [vmem:[%s222 + $0x64] sm:$0xf]
      %v356 = vld [vmem:[%s222 + $0x68] sm:$0xf]
      %v357 = vld [vmem:[%s222 + $0x6c] sm:$0xf]
      %v358 = vld [vmem:[%s222 + $0x70] sm:$0xf]
      %v359 = vld [vmem:[%s222 + $0x74] sm:$0xf]
      %v360 = vld [vmem:[%s222 + $0x78] sm:$0xf]
      %v361 = vld [vmem:[%s222 + $0x7c] sm:$0xf]
      %v362 = vld [vmem:[%s2] sm:$0x1]
      %v364 = vlaneseq
      %v365 = vshrl.u32 %v364, 7
      %v366 = vsub.s32 0, %v365
      %v367 = vrot.slane %v362, %v366
      %v401 = vunpack.c.l.b16 %v330
      %v402 = vunpack.c.l.b16 %v331
      %v403 = vunpack.c.l.b16 %v332
      %v404 = vunpack.c.l.b16 %v333
      %v405 = vunpack.c.l.b16 %v334
      %v406 = vunpack.c.l.b16 %v335
      %v407 = vunpack.c.l.b16 %v336
      %v408 = vunpack.c.l.b16 %v337
      %v409 = vunpack.c.l.b16 %v338
      %v410 = vunpack.c.l.b16 %v339
      %v411 = vunpack.c.l.b16 %v340
      %v412 = vunpack.c.l.b16 %v341
      %v413 = vunpack.c.l.b16 %v342
      %v414 = vunpack.c.l.b16 %v343
      %v415 = vunpack.c.l.b16 %v344
      %v416 = vunpack.c.l.b16 %v345
      %v417 = vunpack.c.l.b16 %v346
      %v418 = vunpack.c.l.b16 %v347
      %v419 = vunpack.c.l.b16 %v348
      %v420 = vunpack.c.l.b16 %v349
      %v421 = vunpack.c.l.b16 %v350
      %v422 = vunpack.c.l.b16 %v351
      %v423 = vunpack.c.l.b16 %v352
      %v424 = vunpack.c.l.b16 %v353
      %v425 = vunpack.c.l.b16 %v354
      %v426 = vunpack.c.l.b16 %v355
      %v427 = vunpack.c.l.b16 %v356
      %v428 = vunpack.c.l.b16 %v357
      %v429 = vunpack.c.l.b16 %v358
      %v430 = vunpack.c.l.b16 %v359
      %v431 = vunpack.c.l.b16 %v360
      %v432 = vunpack.c.l.b16 %v361
      %v433 = vpack.c.b16 %v402, %v401
      %v434 = vpack.c.b16 %v404, %v403
      %v435 = vpack.c.b16 %v406, %v405
      %v436 = vpack.c.b16 %v408, %v407
      %v437 = vpack.c.b16 %v410, %v409
      %v438 = vpack.c.b16 %v412, %v411
      %v439 = vpack.c.b16 %v414, %v413
      %v440 = vpack.c.b16 %v416, %v415
      %v441 = vpack.c.b16 %v418, %v417
      %v442 = vpack.c.b16 %v420, %v419
      %v443 = vpack.c.b16 %v422, %v421
      %v444 = vpack.c.b16 %v424, %v423
      %v445 = vpack.c.b16 %v426, %v425
      %v446 = vpack.c.b16 %v428, %v427
      %v447 = vpack.c.b16 %v430, %v429
      %v448 = vpack.c.b16 %v432, %v431
      %465 = vmatprep.subr.bf16.mxu0 0
      %466 = vmatpush1.bf16.msra.mxu0 %v440
      %467 = vmatprep.subr.bf16.mxu0 0
      %468 = vmatpush1.bf16.msra.mxu0 %v439
      %469 = vmatprep.subr.bf16.mxu0 0
      %470 = vmatpush1.bf16.msra.mxu0 %v438
      %471 = vmatprep.subr.bf16.mxu0 0
      %472 = vmatpush1.bf16.msra.mxu0 %v437
      %473 = vmatprep.subr.bf16.mxu0 0
      %474 = vmatpush1.bf16.msra.mxu0 %v436
      %475 = vmatprep.subr.bf16.mxu0 0
      %476 = vmatpush1.bf16.msra.mxu0 %v435
      %477 = vmatprep.subr.bf16.mxu0 0
      %478 = vmatpush1.bf16.msra.mxu0 %v434
      %479 = vmatprep.subr.bf16.mxu0 0
      %480 = vmatpush1.bf16.msra.mxu0 %v433
      %481 = vmatprep.subr.bf16.mxu0 0
      %482 = vmatpush2.bf16.msra.mxu0 %v448
      %483 = vmatprep.subr.bf16.mxu0 0
      %484 = vmatpush2.bf16.msra.mxu0 %v447
      %485 = vmatprep.subr.bf16.mxu0 0
      %486 = vmatpush2.bf16.msra.mxu0 %v446
      %487 = vmatprep.subr.bf16.mxu0 0
      %488 = vmatpush2.bf16.msra.mxu0 %v445
      %489 = vmatprep.subr.bf16.mxu0 0
      %490 = vmatpush2.bf16.msra.mxu0 %v444
      %491 = vmatprep.subr.bf16.mxu0 0
      %492 = vmatpush2.bf16.msra.mxu0 %v443
      %493 = vmatprep.subr.bf16.mxu0 0
      %494 = vmatpush2.bf16.msra.mxu0 %v442
      %495 = vmatprep.subr.bf16.mxu0 0
      %496 = vmatpush2.bf16.msra.mxu0 %v441
      %497 = vmatprep.mubr.bf16.mxu0 %v315
      %498 = vmatmul.mubr.bf16.gmra.mxu0 %v314
      %v499 = vpop.f32.mrf.mxu0
      %v500 = vadd.f32 %v367, %v499
      %v501 = vpop.f32.mrf.mxu0
      %v502 = vpop.f32.mrf.mxu0
      %v503 = vadd.f32 %v367, %v502
      %v504 = vpop.f32.mrf.mxu0
      %505 = vmatprep.mubr.bf16.mxu0 %v317
      %506 = vmatmul.mubr.bf16.gmra.mxu0 %v316
      %v507 = vpop.f32.mrf.mxu0
      %v508 = vadd.f32 %v367, %v507
      %v509 = vpop.f32.mrf.mxu0
      %v510 = vpop.f32.mrf.mxu0
      %v511 = vadd.f32 %v367, %v510
      %v512 = vpop.f32.mrf.mxu0
      %513 = vmatprep.mubr.bf16.mxu0 %v319
      %514 = vmatmul.mubr.bf16.gmra.mxu0 %v318
      %v515 = vpop.f32.mrf.mxu0
      %v516 = vadd.f32 %v367, %v515
      %v517 = vpop.f32.mrf.mxu0
      %v518 = vpop.f32.mrf.mxu0
      %v519 = vadd.f32 %v367, %v518
      %v520 = vpop.f32.mrf.mxu0
      %521 = vmatprep.mubr.bf16.mxu0 %v321
      %522 = vmatmul.mubr.bf16.gmra.mxu0 %v320
      %v523 = vpop.f32.mrf.mxu0
      %v524 = vadd.f32 %v367, %v523
      %v525 = vpop.f32.mrf.mxu0
      %v526 = vpop.f32.mrf.mxu0
      %v527 = vadd.f32 %v367, %v526
      %v528 = vpop.f32.mrf.mxu0
      %529 = vmatprep.mubr.bf16.mxu0 %v323
      %530 = vmatmul.mubr.bf16.gmra.mxu0 %v322
      %v531 = vpop.f32.mrf.mxu0
      %v532 = vadd.f32 %v367, %v531
      %v533 = vpop.f32.mrf.mxu0
      %v534 = vpop.f32.mrf.mxu0
      %v535 = vadd.f32 %v367, %v534
      %v536 = vpop.f32.mrf.mxu0
      %537 = vmatprep.mubr.bf16.mxu0 %v325
      %538 = vmatmul.mubr.bf16.gmra.mxu0 %v324
      %v539 = vpop.f32.mrf.mxu0
      %v540 = vadd.f32 %v367, %v539
      %v541 = vpop.f32.mrf.mxu0
      %v542 = vpop.f32.mrf.mxu0
      %v543 = vadd.f32 %v367, %v542
      %v544 = vpop.f32.mrf.mxu0
      %545 = vmatprep.mubr.bf16.mxu0 %v327
      %546 = vmatmul.mubr.bf16.gmra.mxu0 %v326
      %v547 = vpop.f32.mrf.mxu0
      %v548 = vadd.f32 %v367, %v547
      %v549 = vpop.f32.mrf.mxu0
      %v550 = vpop.f32.mrf.mxu0
      %v551 = vadd.f32 %v367, %v550
      %v552 = vpop.f32.mrf.mxu0
      %553 = vmatprep.mubr.bf16.mxu0 %v329
      %554 = vmatmul.mubr.bf16.gmra.mxu0 %v328
      %v555 = vpop.f32.mrf.mxu0
      %v556 = vadd.f32 %v367, %v555
      %v557 = vpop.f32.mrf.mxu0
      %v558 = vpop.f32.mrf.mxu0
      %v559 = vadd.f32 %v367, %v558
      %v560 = vpop.f32.mrf.mxu0
      %561 = vdwg.mxu0
      %v562 = vpack.c.bf16 %v503, %v500
      %v563 = vpack.c.bf16 %v511, %v508
      %v564 = vpack.c.bf16 %v519, %v516
      %v565 = vpack.c.bf16 %v527, %v524
      %v566 = vpack.c.bf16 %v535, %v532
      %v567 = vpack.c.bf16 %v543, %v540
      %v568 = vpack.c.bf16 %v551, %v548
      %v569 = vpack.c.bf16 %v559, %v556
      %v578 = vunpack.c.l.b16 %v562
      %v579 = vunpack.c.h.b16 %v562
      %v580 = vunpack.c.l.b16 %v563
      %v581 = vunpack.c.h.b16 %v563
      %v582 = vunpack.c.l.b16 %v564
      %v583 = vunpack.c.h.b16 %v564
      %v584 = vunpack.c.l.b16 %v565
      %v585 = vunpack.c.h.b16 %v565
      %v586 = vunpack.c.l.b16 %v566
      %v587 = vunpack.c.h.b16 %v566
      %v588 = vunpack.c.l.b16 %v567
      %v589 = vunpack.c.h.b16 %v567
      %v590 = vunpack.c.l.b16 %v568
      %v591 = vunpack.c.h.b16 %v568
      %v592 = vunpack.c.l.b16 %v569
      %v593 = vunpack.c.h.b16 %v569
      %v594 = vpack.c.b16 %v578, %v578
      %v595 = vpack.c.b16 %v579, %v579
      %v596 = vpack.c.b16 %v580, %v580
      %v597 = vpack.c.b16 %v581, %v581
      %v598 = vpack.c.b16 %v582, %v582
      %v599 = vpack.c.b16 %v583, %v583
      %v600 = vpack.c.b16 %v584, %v584
      %v601 = vpack.c.b16 %v585, %v585
      %v602 = vpack.c.b16 %v586, %v586
      %v603 = vpack.c.b16 %v587, %v587
      %v604 = vpack.c.b16 %v588, %v588
      %v605 = vpack.c.b16 %v589, %v589
      %v606 = vpack.c.b16 %v590, %v590
      %v607 = vpack.c.b16 %v591, %v591
      %v608 = vpack.c.b16 %v592, %v592
      %v609 = vpack.c.b16 %v593, %v593
      %626 = vst [vmem:[%s231] sm:$0xf] %v594
      %627 = vst [vmem:[%s231 + $0x4] sm:$0xf] %v595
      %628 = vst [vmem:[%s231 + $0x8] sm:$0xf] %v596
      %629 = vst [vmem:[%s231 + $0xc] sm:$0xf] %v597
      %630 = vst [vmem:[%s231 + $0x10] sm:$0xf] %v598
      %631 = vst [vmem:[%s231 + $0x14] sm:$0xf] %v599
      %632 = vst [vmem:[%s231 + $0x18] sm:$0xf] %v600
      %633 = vst [vmem:[%s231 + $0x1c] sm:$0xf] %v601
      %634 = vst [vmem:[%s231 + $0x20] sm:$0xf] %v602
      %635 = vst [vmem:[%s231 + $0x24] sm:$0xf] %v603
      %636 = vst [vmem:[%s231 + $0x28] sm:$0xf] %v604
      %637 = vst [vmem:[%s231 + $0x2c] sm:$0xf] %v605
      %638 = vst [vmem:[%s231 + $0x30] sm:$0xf] %v606
      %639 = vst [vmem:[%s231 + $0x34] sm:$0xf] %v607
      %640 = vst [vmem:[%s231 + $0x38] sm:$0xf] %v608
      %641 = vst [vmem:[%s231 + $0x3c] sm:$0xf] %v609
      %s642 = smul.u32 16, %s19
      %p643 = scmp.lt.s32.totalorder %s18, 3
      %s644 = scalar_select %p643, %s18, 3
      %p645 = scmp.lt.s32.totalorder %s642, 15
      %s646 = scalar_select %p645, %s642, 15
      %s647 = smul.addr %s644, 16
      %s648 = sadd.s32 %s646, %s647
      %s649 = smul.addr %s648, 4
      %s650 = scalar_lea.vmem %s3, %s649
      // Predicated region
      $region33: #{_lambda_.16} parent=31 // pred_check
        %p651 = pneg %p121
      $region34: #{_lambda_.16} parent=31 // pred_check_branch
        %653 = sbr.rel (%p651) target = $region36
      $region35: #{_lambda_.16} parent=31 // pred_region
        %s654 = smul.u32 16, %s19
      $region36: #{_lambda_.16} parent=31 // pred_fallthru
        _
    $region32: #{_lambda_.16} parent=5 // pred_fallthru
      _
    %p655 = scmp.le.s32.totalorder 2, %s9
    // Predicated region
    $region37: #{_lambda_.16} parent=5 // pred_check
      %p656 = pneg %p655
    $region38: #{_lambda_.16} parent=5 // pred_check_branch
      %658 = sbr.rel (%p656) target = $region40
    $region39: #{_lambda_.16} parent=5 // pred_region
      %s659 = ssub.s32 %s9, 2
      // Predicated region
      $region41: #{_lambda_.16} parent=39 // pred_check
        %p660 = pneg %p127
      $region42: #{_lambda_.16} parent=39 // pred_check_branch
        %662 = sbr.rel (%p660) target = $region44
      $region43: #{_lambda_.16} parent=39 // pred_region
        %s663 = smul.u32 16, %s21
        %p664 = scmp.lt.s32.totalorder %s20, 3
        %s665 = scalar_select %p664, %s20, 3
        %p666 = scmp.lt.s32.totalorder %s663, 15
        %s667 = scalar_select %p666, %s663, 15
        %s668 = smul.addr %s665, 16
        %s669 = sadd.s32 %s667, %s668
        %s670 = smul.addr %s669, 4
        %s671 = scalar_lea.vmem %s3, %s670
      $region44: #{_lambda_.16} parent=39 // pred_fallthru
        _
    $region40: #{_lambda_.16} parent=5 // pred_fallthru
      _
  $region6: #{_lambda_.16} parent=0 // loop_footer
    %s13 = sadd.s32 1, %s9
  $region7: #{_lambda_.16} parent=0 // loop_footer_branch
    %8 = sbr.rel target = $region3
  $region8: #{_lambda_.16} parent=0 // loop_exit
    _

// kernel: _lambda_.17
$region0: #{_lambda_.17}
  #allocation0 [shape = 'u32[]', space=smem, size = 0x4, offset = 0x4, fixed_abs, tag = 'smem constant byte address 0x4 - core index']
  #allocation1 [shape = 'u32[144,128]{1,0:T(1,128)}', space=vmem, size = 0x12000, scoped, tag = 'internal scratch']
  %s0 = inlined_call_operand.vmem [shape: bf16[4,512,128], index: 0, kind: input, shape index: {}]
  %s1 = inlined_call_operand.vmem [shape: bf16[4,128,128], index: 1, kind: input, shape index: {}]
  %s2 = inlined_call_operand.vmem [shape: f32[1,128], index: 2, kind: input, shape index: {}]
  %s3 = inlined_call_operand.vmem [shape: f32[4,512,128], index: 3, kind: output, shape index: {}]
  %s4 = sld [smem:[#allocation0]]
  $region45: #{_lambda_.17} parent=0
    _
  %s6 = ssub.s32 1, %s4
  %s7 = scalar_select 0, %s6, %s4
  loop: start=0, step=1, limit=10
  $region2: #{_lambda_.17} parent=0 // loop_pre_header
    _
  $region3: #{_lambda_.17} parent=0 // loop_header
    %s9 = sphi 0, %s13
    %p10 = scmp.ge.s32.totalorder %s9, 10
    %s16 = sphi 0, %s28
    %s17 = sphi 0, %s24
    %s18 = sphi 0, %s16
    %s19 = sphi 0, %s17
    %s20 = sphi 0, %s18
    %s21 = sphi 0, %s19
    %s33 = sphi 0, %s35
    %s36 = sphi 0, %s33
    %s37 = sphi 0, %s36
    %s53 = sphi 0, %s37
    %s59 = sphi 0, %s61
    %s62 = sphi 0, %s59
    %s63 = sphi 0, %s62
    %s79 = sphi 0, %s63
    %s83 = sphi 0, %s83
    %s85 = sphi 0, %s83
    %s86 = sphi 0, %s85
    %s100 = sphi 0, %s86
    %s108 = sphi 0, %s110
    %s111 = sphi 0, %s108
    %s112 = sphi 0, %s111
    %s128 = sphi 0, %s112
  $region4: #{_lambda_.17} parent=0 // loop_header_branch
    %12 = sbr.rel (%p10) target = $region8
  $region5: #{_lambda_.17} parent=0 // loop_body
    %s14 = ssub.s32 %s9, 1
    %s15 = ssub.s32 %s9, 2
    %s22 = sadd.s32 1, %s17
    %p23 = scmp.ge.s32.totalorder %s22, 2
    %s24 = scalar_select %p23, 0, %s22
    %s25 = sadd.s32 1, %s16
    %s26 = scalar_select %p23, %s25, %s16
    %p27 = scmp.ge.s32.totalorder %s26, 4
    %s28 = scalar_select %p27, 0, %s26
    %s29 = ssub.s32 %s16, %s28
    %s30 = ssub.s32 %s17, %s24
    %s31 = sor.u32 %s29, %s30
    %p32 = scmp.eq.s32.totalorder %s31, 0
    %s34 = sadd.s32 %s33, 1
    %s35 = scalar_select %p32, %s33, %s34
    %p38 = pneg %p32
    %p39 = scmp.eq.s32.totalorder %s9, 7
    %p40 = por %p38, %p39
    %p41 = scmp.ne.s32.totalorder %s33, %s36
    %p42 = scmp.eq.s32.totalorder %s9, 0
    %p43 = por %p41, %p42
    %p44 = scmp.ne.s32.totalorder %s33, %s36
    %p45 = scmp.eq.s32.totalorder %s14, 7
    %p46 = por %p44, %p45
    %p47 = scmp.ne.s32.totalorder %s36, %s37
    %p48 = scmp.eq.s32.totalorder %s14, 0
    %p49 = por %p47, %p48
    %p50 = scmp.ne.s32.totalorder %s36, %s37
    %p51 = scmp.eq.s32.totalorder %s15, 7
    %p52 = por %p50, %p51
    %p54 = scmp.ne.s32.totalorder %s37, %s53
    %p55 = scmp.eq.s32.totalorder %s15, 0
    %p56 = por %p54, %p55
    %s57 = ssub.s32 %s16, %s28
    %p58 = scmp.eq.s32.totalorder %s57, 0
    %s60 = sadd.s32 %s59, 1
    %s61 = scalar_select %p58, %s59, %s60
    %p64 = pneg %p58
    %p65 = scmp.eq.s32.totalorder %s9, 7
    %p66 = por %p64, %p65
    %p67 = scmp.ne.s32.totalorder %s59, %s62
    %p68 = scmp.eq.s32.totalorder %s9, 0
    %p69 = por %p67, %p68
    %p70 = scmp.ne.s32.totalorder %s59, %s62
    %p71 = scmp.eq.s32.totalorder %s14, 7
    %p72 = por %p70, %p71
    %p73 = scmp.ne.s32.totalorder %s62, %s63
    %p74 = scmp.eq.s32.totalorder %s14, 0
    %p75 = por %p73, %p74
    %p76 = scmp.ne.s32.totalorder %s62, %s63
    %p77 = scmp.eq.s32.totalorder %s15, 7
    %p78 = por %p76, %p77
    %p80 = scmp.ne.s32.totalorder %s63, %s79
    %p81 = scmp.eq.s32.totalorder %s15, 0
    %p82 = por %p80, %p81
    %s84 = sadd.s32 %s83, 1
    %p87 = scmp.eq.s32.totalorder %s9, 7
    %p88 = scmp.ne.s32.totalorder %s83, %s85
    %p89 = scmp.eq.s32.totalorder %s9, 0
    %p90 = por %p88, %p89
    %p91 = scmp.ne.s32.totalorder %s83, %s85
    %p92 = scmp.eq.s32.totalorder %s14, 7
    %p93 = por %p91, %p92
    %p94 = scmp.ne.s32.totalorder %s85, %s86
    %p95 = scmp.eq.s32.totalorder %s14, 0
    %p96 = por %p94, %p95
    %p97 = scmp.ne.s32.totalorder %s85, %s86
    %p98 = scmp.eq.s32.totalorder %s15, 7
    %p99 = por %p97, %p98
    %p101 = scmp.ne.s32.totalorder %s86, %s100
    %p102 = scmp.eq.s32.totalorder %s15, 0
    %p103 = por %p101, %p102
    %s104 = ssub.s32 %s16, %s28
    %s105 = ssub.s32 %s17, %s24
    %s106 = sor.u32 %s104, %s105
    %p107 = scmp.eq.s32.totalorder %s106, 0
    %s109 = sadd.s32 %s108, 1
    %s110 = scalar_select %p107, %s108, %s109
    %p113 = pneg %p107
    %p114 = scmp.eq.s32.totalorder %s9, 7
    %p115 = por %p113, %p114
    %p116 = scmp.ne.s32.totalorder %s108, %s111
    %p117 = scmp.eq.s32.totalorder %s9, 0
    %p118 = por %p116, %p117
    %p119 = scmp.ne.s32.totalorder %s108, %s111
    %p120 = scmp.eq.s32.totalorder %s14, 7
    %p121 = por %p119, %p120
    %p122 = scmp.ne.s32.totalorder %s111, %s112
    %p123 = scmp.eq.s32.totalorder %s14, 0
    %p124 = por %p122, %p123
    %p125 = scmp.ne.s32.totalorder %s111, %s112
    %p126 = scmp.eq.s32.totalorder %s15, 7
    %p127 = por %p125, %p126
    %p129 = scmp.ne.s32.totalorder %s112, %s128
    %p130 = scmp.eq.s32.totalorder %s15, 0
    %p131 = por %p129, %p130
    %p132 = scmp.le.s32.totalorder 1, %s9
    %p133 = scmp.lt.s32.totalorder %s9, 9
    %p134 = pnand %p132, %p133
    %p135 = pneg %p134
    // Predicated region
    $region9: #{_lambda_.17} parent=5 // pred_check
      _
    $region10: #{_lambda_.17} parent=5 // pred_check_branch
      %137 = sbr.rel (%p134) target = $region12
    $region11: #{_lambda_.17} parent=5 // pred_region
      %s138 = ssub.s32 %s9, 1
      // Predicated region
      $region13: #{_lambda_.17} parent=11 // pred_check
        %p139 = pneg %p96
      $region14: #{_lambda_.17} parent=11 // pred_check_branch
        %141 = sbr.rel (%p139) target = $region16
      $region15: #{_lambda_.17} parent=11 // pred_region
        _
      $region16: #{_lambda_.17} parent=11 // pred_fallthru
        _
    $region12: #{_lambda_.17} parent=5 // pred_fallthru
      _
    %p142 = scmp.lt.s32.totalorder %s9, 8
    // Predicated region
    $region17: #{_lambda_.17} parent=5 // pred_check
      %p143 = pneg %p142
    $region18: #{_lambda_.17} parent=5 // pred_check_branch
      %145 = sbr.rel (%p143) target = $region20
    $region19: #{_lambda_.17} parent=5 // pred_region
      // Predicated region
      $region21: #{_lambda_.17} parent=19 // pred_check
        %p146 = pneg %p43
      $region22: #{_lambda_.17} parent=19 // pred_check_branch
        %148 = sbr.rel (%p146) target = $region24
      $region23: #{_lambda_.17} parent=19 // pred_region
        %s149 = smul.u32 32, %s17
        %p150 = scmp.lt.s32.totalorder %s16, 3
        %s151 = scalar_select %p150, %s16, 3
        %p152 = scmp.lt.s32.totalorder %s149, 63
        %s153 = scalar_select %p152, %s149, 63
        %s154 = smul.addr %s151, 64
        %s155 = sadd.s32 %s153, %s154
        %s156 = smul.addr %s155, 4
        %s157 = scalar_lea.vmem %s0, %s156
        %s158 = smul.u32 32, %s17
      $region24: #{_lambda_.17} parent=19 // pred_fallthru
        _
      // Predicated region
      $region25: #{_lambda_.17} parent=19 // pred_check
        %p159 = pneg %p69
      $region26: #{_lambda_.17} parent=19 // pred_check_branch
        %161 = sbr.rel (%p159) target = $region28
      $region27: #{_lambda_.17} parent=19 // pred_region
        %p162 = scmp.lt.s32.totalorder %s16, 3
        %s163 = scalar_select %p162, %s16, 3
        %s164 = smul.addr %s163, 16
        %s165 = smul.addr %s164, 4
        %s166 = scalar_lea.vmem %s1, %s165
      $region28: #{_lambda_.17} parent=19 // pred_fallthru
        _
    $region20: #{_lambda_.17} parent=5 // pred_fallthru
      _
    %p167 = scmp.le.s32.totalorder 1, %s9
    %p168 = scmp.lt.s32.totalorder %s9, 9
    %p169 = pnand %p167, %p168
    %p170 = pneg %p169
    // Predicated region
    $region29: #{_lambda_.17} parent=5 // pred_check
      _
    $region30: #{_lambda_.17} parent=5 // pred_check_branch
      %172 = sbr.rel (%p169) target = $region32
    $region31: #{_lambda_.17} parent=5 // pred_region
      %s173 = ssub.s32 %s9, 1
      %s174 = smul.u32 32, %s19
      %p175 = scmp.lt.s32.totalorder %s18, 3
      %s176 = scalar_select %p175, %s18, 3
      %p177 = scmp.lt.s32.totalorder %s174, 63
      %s178 = scalar_select %p177, %s174, 63
      %s179 = smul.addr %s176, 64
      %s180 = sadd.s32 %s178, %s179
      %s181 = smul.addr %s180, 4
      %s182 = scalar_lea.vmem %s0, %s181
      %p183 = pneg %p49
      %p184 = pneg %p46
      %p185 = scmp.lt.s32.totalorder %s18, 3
      %s186 = scalar_select %p185, %s18, 3
      %s187 = smul.addr %s186, 16
      %s188 = smul.addr %s187, 4
      %s189 = scalar_lea.vmem %s1, %s188
      %p190 = pneg %p75
      %p191 = pneg %p72
      %p192 = pneg %p96
      %p193 = pneg %p93
      %p194 = pneg %p124
      %p195 = pneg %p121
      %s196 = smul.u32 32, %s19
      %p197 = scmp.lt.s32.totalorder %s18, 3
      %s198 = scalar_select %p197, %s18, 3
      %p199 = scmp.lt.s32.totalorder %s196, 63
      %s200 = scalar_select %p199, %s196, 63
      %s201 = smul.addr %s198, 64
      %s202 = sadd.s32 %s200, %s201
      %s203 = smul.addr %s202, 8
      %s204 = scalar_lea.vmem %s3, %s203
      %s205 = smul.u32 32, %s19
      %p206 = scmp.lt.s32.totalorder %s18, 3
      %s207 = scalar_select %p206, %s18, 3
      %p208 = scmp.lt.s32.totalorder %s205, 63
      %s209 = scalar_select %p208, %s205, 63
      %s210 = smul.addr %s207, 64
      %s211 = sadd.s32 %s209, %s210
      %s212 = smul.addr %s211, 4
      %s213 = scalar_lea.vmem %s0, %s212
      %s214 = smul.u32 32, %s19
      %p215 = scmp.lt.s32.totalorder %s18, 3
      %s216 = scalar_select %p215, %s18, 3
      %s217 = smul.addr %s216, 16
      %s218 = smul.addr %s217, 4
      %s219 = scalar_lea.vmem %s1, %s218
      %s220 = smul.u32 32, %s19
      %p221 = scmp.lt.s32.totalorder %s18, 3
      %s222 = scalar_select %p221, %s18, 3
      %p223 = scmp.lt.s32.totalorder %s220, 63
      %s224 = scalar_select %p223, %s220, 63
      %s225 = smul.addr %s222, 64
      %s226 = sadd.s32 %s224, %s225
      %s227 = smul.addr %s226, 8
      %s228 = scalar_lea.vmem %s3, %s227
      %s229 = smul.u32 32, %s19
      %v231 = vld [vmem:[%s213] sm:$0xf]
      %v232 = vld [vmem:[%s213 + $0x4] sm:$0xf]
      %v233 = vld [vmem:[%s213 + $0x8] sm:$0xf]
      %v234 = vld [vmem:[%s213 + $0xc] sm:$0xf]
      %v235 = vld [vmem:[%s213 + $0x10] sm:$0xf]
      %v236 = vld [vmem:[%s213 + $0x14] sm:$0xf]
      %v237 = vld [vmem:[%s213 + $0x18] sm:$0xf]
      %v238 = vld [vmem:[%s213 + $0x1c] sm:$0xf]
      %v239 = vld [vmem:[%s213 + $0x20] sm:$0xf]
      %v240 = vld [vmem:[%s213 + $0x24] sm:$0xf]
      %v241 = vld [vmem:[%s213 + $0x28] sm:$0xf]
      %v242 = vld [vmem:[%s213 + $0x2c] sm:$0xf]
      %v243 = vld [vmem:[%s213 + $0x30] sm:$0xf]
      %v244 = vld [vmem:[%s213 + $0x34] sm:$0xf]
      %v245 = vld [vmem:[%s213 + $0x38] sm:$0xf]
      %v246 = vld [vmem:[%s213 + $0x3c] sm:$0xf]
      %v247 = vld [vmem:[%s213 + $0x40] sm:$0xf]
      %v248 = vld [vmem:[%s213 + $0x44] sm:$0xf]
      %v249 = vld [vmem:[%s213 + $0x48] sm:$0xf]
      %v250 = vld [vmem:[%s213 + $0x4c] sm:$0xf]
      %v251 = vld [vmem:[%s213 + $0x50] sm:$0xf]
      %v252 = vld [vmem:[%s213 + $0x54] sm:$0xf]
      %v253 = vld [vmem:[%s213 + $0x58] sm:$0xf]
      %v254 = vld [vmem:[%s213 + $0x5c] sm:$0xf]
      %v255 = vld [vmem:[%s213 + $0x60] sm:$0xf]
      %v256 = vld [vmem:[%s213 + $0x64] sm:$0xf]
      %v257 = vld [vmem:[%s213 + $0x68] sm:$0xf]
      %v258 = vld [vmem:[%s213 + $0x6c] sm:$0xf]
      %v259 = vld [vmem:[%s213 + $0x70] sm:$0xf]
      %v260 = vld [vmem:[%s213 + $0x74] sm:$0xf]
      %v261 = vld [vmem:[%s213 + $0x78] sm:$0xf]
      %v262 = vld [vmem:[%s213 + $0x7c] sm:$0xf]
      %v263 = vunpack.c.l.bf16 %v231
      %v264 = vunpack.c.l.bf16 %v232
      %v265 = vunpack.c.l.bf16 %v233
      %v266 = vunpack.c.l.bf16 %v234
      %v267 = vunpack.c.l.bf16 %v235
      %v268 = vunpack.c.l.bf16 %v236
      %v269 = vunpack.c.l.bf16 %v237
      %v270 = vunpack.c.l.bf16 %v238
      %v271 = vunpack.c.l.bf16 %v239
      %v272 = vunpack.c.l.bf16 %v240
      %v273 = vunpack.c.l.bf16 %v241
      %v274 = vunpack.c.l.bf16 %v242
      %v275 = vunpack.c.l.bf16 %v243
      %v276 = vunpack.c.l.bf16 %v244
      %v277 = vunpack.c.l.bf16 %v245
      %v278 = vunpack.c.l.bf16 %v246
      %v279 = vunpack.c.l.bf16 %v247
      %v280 = vunpack.c.l.bf16 %v248
      %v281 = vunpack.c.l.bf16 %v249
      %v282 = vunpack.c.l.bf16 %v250
      %v283 = vunpack.c.l.bf16 %v251
      %v284 = vunpack.c.l.bf16 %v252
      %v285 = vunpack.c.l.bf16 %v253
      %v286 = vunpack.c.l.bf16 %v254
      %v287 = vunpack.c.l.bf16 %v255
      %v288 = vunpack.c.l.bf16 %v256
      %v289 = vunpack.c.l.bf16 %v257
      %v290 = vunpack.c.l.bf16 %v258
      %v291 = vunpack.c.l.bf16 %v259
      %v292 = vunpack.c.l.bf16 %v260
      %v293 = vunpack.c.l.bf16 %v261
      %v294 = vunpack.c.l.bf16 %v262
      %v295 = vmax.f32 %v263, 0.0
      %v296 = vmax.f32 %v264, 0.0
      %v297 = vmax.f32 %v265, 0.0
      %v298 = vmax.f32 %v266, 0.0
      %v299 = vmax.f32 %v267, 0.0
      %v300 = vmax.f32 %v268, 0.0
      %v301 = vmax.f32 %v269, 0.0
      %v302 = vmax.f32 %v270, 0.0
      %v303 = vmax.f32 %v271, 0.0
      %v304 = vmax.f32 %v272, 0.0
      %v305 = vmax.f32 %v273, 0.0
      %v306 = vmax.f32 %v274, 0.0
      %v307 = vmax.f32 %v275, 0.0
      %v308 = vmax.f32 %v276, 0.0
      %v309 = vmax.f32 %v277, 0.0
      %v310 = vmax.f32 %v278, 0.0
      %v311 = vmax.f32 %v279, 0.0
      %v312 = vmax.f32 %v280, 0.0
      %v313 = vmax.f32 %v281, 0.0
      %v314 = vmax.f32 %v282, 0.0
      %v315 = vmax.f32 %v283, 0.0
      %v316 = vmax.f32 %v284, 0.0
      %v317 = vmax.f32 %v285, 0.0
      %v318 = vmax.f32 %v286, 0.0
      %v319 = vmax.f32 %v287, 0.0
      %v320 = vmax.f32 %v288, 0.0
      %v321 = vmax.f32 %v289, 0.0
      %v322 = vmax.f32 %v290, 0.0
      %v323 = vmax.f32 %v291, 0.0
      %v324 = vmax.f32 %v292, 0.0
      %v325 = vmax.f32 %v293, 0.0
      %v326 = vmax.f32 %v294, 0.0
      %v327 = vpack.c.bf16 %v296, %v295
      %v328 = vpack.c.bf16 %v298, %v297
      %v329 = vpack.c.bf16 %v300, %v299
      %v330 = vpack.c.bf16 %v302, %v301
      %v331 = vpack.c.bf16 %v304, %v303
      %v332 = vpack.c.bf16 %v306, %v305
      %v333 = vpack.c.bf16 %v308, %v307
      %v334 = vpack.c.bf16 %v310, %v309
      %v335 = vpack.c.bf16 %v312, %v311
      %v336 = vpack.c.bf16 %v314, %v313
      %v337 = vpack.c.bf16 %v316, %v315
      %v338 = vpack.c.bf16 %v318, %v317
      %v339 = vpack.c.bf16 %v320, %v319
      %v340 = vpack.c.bf16 %v322, %v321
      %v341 = vpack.c.bf16 %v324, %v323
      %v342 = vpack.c.bf16 %v326, %v325
      %v343 = vld [vmem:[%s219] sm:$0xf]
      %v344 = vld [vmem:[%s219 + $0x4] sm:$0xf]
      %v345 = vld [vmem:[%s219 + $0x8] sm:$0xf]
      %v346 = vld [vmem:[%s219 + $0xc] sm:$0xf]
      %v347 = vld [vmem:[%s219 + $0x10] sm:$0xf]
      %v348 = vld [vmem:[%s219 + $0x14] sm:$0xf]
      %v349 = vld [vmem:[%s219 + $0x18] sm:$0xf]
      %v350 = vld [vmem:[%s219 + $0x1c] sm:$0xf]
      %v351 = vld [vmem:[%s219 + $0x20] sm:$0xf]
      %v352 = vld [vmem:[%s219 + $0x24] sm:$0xf]
      %v353 = vld [vmem:[%s219 + $0x28] sm:$0xf]
      %v354 = vld [vmem:[%s219 + $0x2c] sm:$0xf]
      %v355 = vld [vmem:[%s219 + $0x30] sm:$0xf]
      %v356 = vld [vmem:[%s219 + $0x34] sm:$0xf]
      %v357 = vld [vmem:[%s219 + $0x38] sm:$0xf]
      %v358 = vld [vmem:[%s219 + $0x3c] sm:$0xf]
      %v359 = vld [vmem:[%s2] sm:$0x1]
      %v361 = vlaneseq
      %v362 = vshrl.u32 %v361, 7
      %v363 = vsub.s32 0, %v362
      %v364 = vrot.slane %v359, %v363
      %v382 = vunpack.c.l.b16 %v343
      %v383 = vunpack.c.l.b16 %v344
      %v384 = vunpack.c.l.b16 %v345
      %v385 = vunpack.c.l.b16 %v346
      %v386 = vunpack.c.l.b16 %v347
      %v387 = vunpack.c.l.b16 %v348
      %v388 = vunpack.c.l.b16 %v349
      %v389 = vunpack.c.l.b16 %v350
      %v390 = vunpack.c.l.b16 %v351
      %v391 = vunpack.c.l.b16 %v352
      %v392 = vunpack.c.l.b16 %v353
      %v393 = vunpack.c.l.b16 %v354
      %v394 = vunpack.c.l.b16 %v355
      %v395 = vunpack.c.l.b16 %v356
      %v396 = vunpack.c.l.b16 %v357
      %v397 = vunpack.c.l.b16 %v358
      %v398 = vpack.c.b16 %v383, %v382
      %v399 = vpack.c.b16 %v385, %v384
      %v400 = vpack.c.b16 %v387, %v386
      %v401 = vpack.c.b16 %v389, %v388
      %v402 = vpack.c.b16 %v391, %v390
      %v403 = vpack.c.b16 %v393, %v392
      %v404 = vpack.c.b16 %v395, %v394
      %v405 = vpack.c.b16 %v397, %v396
      %414 = vmatprep.subr.bf16.mxu0 0
      %415 = vmatpush1.bf16.msra.mxu0 %v405
      %416 = vmatprep.subr.bf16.mxu0 0
      %417 = vmatpush1.bf16.msra.mxu0 %v404
      %418 = vmatprep.subr.bf16.mxu0 0
      %419 = vmatpush1.bf16.msra.mxu0 %v403
      %420 = vmatprep.subr.bf16.mxu0 0
      %421 = vmatpush1.bf16.msra.mxu0 %v402
      %422 = vmatprep.subr.bf16.mxu0 0
      %423 = vmatpush1.bf16.msra.mxu0 %v401
      %424 = vmatprep.subr.bf16.mxu0 0
      %425 = vmatpush1.bf16.msra.mxu0 %v400
      %426 = vmatprep.subr.bf16.mxu0 0
      %427 = vmatpush1.bf16.msra.mxu0 %v399
      %428 = vmatprep.subr.bf16.mxu0 0
      %429 = vmatpush1.bf16.msra.mxu0 %v398
      %430 = vmatprep.subr.bf16.mxu0 0
      %431 = vmatpush2.bf16.msra.mxu0 0
      %432 = vmatprep.subr.bf16.mxu0 0
      %433 = vmatpush2.bf16.msra.mxu0 0
      %434 = vmatprep.subr.bf16.mxu0 0
      %435 = vmatpush2.bf16.msra.mxu0 0
      %436 = vmatprep.subr.bf16.mxu0 0
      %437 = vmatpush2.bf16.msra.mxu0 0
      %438 = vmatprep.subr.bf16.mxu0 0
      %439 = vmatpush2.bf16.msra.mxu0 0
      %440 = vmatprep.subr.bf16.mxu0 0
      %441 = vmatpush2.bf16.msra.mxu0 0
      %442 = vmatprep.subr.bf16.mxu0 0
      %443 = vmatpush2.bf16.msra.mxu0 0
      %444 = vmatprep.subr.bf16.mxu0 0
      %445 = vmatpush2.bf16.msra.mxu0 0
      %446 = vmatprep.mubr.bf16.mxu0 0
      %447 = vmatmul.mubr.bf16.gmra.mxu0 %v327
      %v448 = vpop.f32.mrf.mxu0
      %v449 = vadd.f32 %v364, %v448
      %v450 = vpop.f32.mrf.mxu0
      %v451 = vpop.f32.mrf.mxu0
      %v452 = vadd.f32 %v364, %v451
      %v453 = vpop.f32.mrf.mxu0
      %454 = vmatprep.mubr.bf16.mxu0 0
      %455 = vmatmul.mubr.bf16.gmra.mxu0 %v328
      %v456 = vpop.f32.mrf.mxu0
      %v457 = vadd.f32 %v364, %v456
      %v458 = vpop.f32.mrf.mxu0
      %v459 = vpop.f32.mrf.mxu0
      %v460 = vadd.f32 %v364, %v459
      %v461 = vpop.f32.mrf.mxu0
      %462 = vmatprep.mubr.bf16.mxu0 0
      %463 = vmatmul.mubr.bf16.gmra.mxu0 %v329
      %v464 = vpop.f32.mrf.mxu0
      %v465 = vadd.f32 %v364, %v464
      %v466 = vpop.f32.mrf.mxu0
      %v467 = vpop.f32.mrf.mxu0
      %v468 = vadd.f32 %v364, %v467
      %v469 = vpop.f32.mrf.mxu0
      %470 = vmatprep.mubr.bf16.mxu0 0
      %471 = vmatmul.mubr.bf16.gmra.mxu0 %v330
      %v472 = vpop.f32.mrf.mxu0
      %v473 = vadd.f32 %v364, %v472
      %v474 = vpop.f32.mrf.mxu0
      %v475 = vpop.f32.mrf.mxu0
      %v476 = vadd.f32 %v364, %v475
      %v477 = vpop.f32.mrf.mxu0
      %478 = vmatprep.mubr.bf16.mxu0 0
      %479 = vmatmul.mubr.bf16.gmra.mxu0 %v331
      %v480 = vpop.f32.mrf.mxu0
      %v481 = vadd.f32 %v364, %v480
      %v482 = vpop.f32.mrf.mxu0
      %v483 = vpop.f32.mrf.mxu0
      %v484 = vadd.f32 %v364, %v483
      %v485 = vpop.f32.mrf.mxu0
      %486 = vmatprep.mubr.bf16.mxu0 0
      %487 = vmatmul.mubr.bf16.gmra.mxu0 %v332
      %v488 = vpop.f32.mrf.mxu0
      %v489 = vadd.f32 %v364, %v488
      %v490 = vpop.f32.mrf.mxu0
      %v491 = vpop.f32.mrf.mxu0
      %v492 = vadd.f32 %v364, %v491
      %v493 = vpop.f32.mrf.mxu0
      %494 = vmatprep.mubr.bf16.mxu0 0
      %495 = vmatmul.mubr.bf16.gmra.mxu0 %v333
      %v496 = vpop.f32.mrf.mxu0
      %v497 = vadd.f32 %v364, %v496
      %v498 = vpop.f32.mrf.mxu0
      %v499 = vpop.f32.mrf.mxu0
      %v500 = vadd.f32 %v364, %v499
      %v501 = vpop.f32.mrf.mxu0
      %502 = vmatprep.mubr.bf16.mxu0 0
      %503 = vmatmul.mubr.bf16.gmra.mxu0 %v334
      %v504 = vpop.f32.mrf.mxu0
      %v505 = vadd.f32 %v364, %v504
      %v506 = vpop.f32.mrf.mxu0
      %v507 = vpop.f32.mrf.mxu0
      %v508 = vadd.f32 %v364, %v507
      %v509 = vpop.f32.mrf.mxu0
      %510 = vmatprep.mubr.bf16.mxu0 0
      %511 = vmatmul.mubr.bf16.gmra.mxu0 %v335
      %v512 = vpop.f32.mrf.mxu0
      %v513 = vadd.f32 %v364, %v512
      %v514 = vpop.f32.mrf.mxu0
      %v515 = vpop.f32.mrf.mxu0
      %v516 = vadd.f32 %v364, %v515
      %v517 = vpop.f32.mrf.mxu0
      %518 = vmatprep.mubr.bf16.mxu0 0
      %519 = vmatmul.mubr.bf16.gmra.mxu0 %v336
      %v520 = vpop.f32.mrf.mxu0
      %v521 = vadd.f32 %v364, %v520
      %v522 = vpop.f32.mrf.mxu0
      %v523 = vpop.f32.mrf.mxu0
      %v524 = vadd.f32 %v364, %v523
      %v525 = vpop.f32.mrf.mxu0
      %526 = vmatprep.mubr.bf16.mxu0 0
      %527 = vmatmul.mubr.bf16.gmra.mxu0 %v337
      %v528 = vpop.f32.mrf.mxu0
      %v529 = vadd.f32 %v364, %v528
      %v530 = vpop.f32.mrf.mxu0
      %v531 = vpop.f32.mrf.mxu0
      %v532 = vadd.f32 %v364, %v531
      %v533 = vpop.f32.mrf.mxu0
      %534 = vmatprep.mubr.bf16.mxu0 0
      %535 = vmatmul.mubr.bf16.gmra.mxu0 %v338
      %v536 = vpop.f32.mrf.mxu0
      %v537 = vadd.f32 %v364, %v536
      %v538 = vpop.f32.mrf.mxu0
      %v539 = vpop.f32.mrf.mxu0
      %v540 = vadd.f32 %v364, %v539
      %v541 = vpop.f32.mrf.mxu0
      %542 = vmatprep.mubr.bf16.mxu0 0
      %543 = vmatmul.mubr.bf16.gmra.mxu0 %v339
      %v544 = vpop.f32.mrf.mxu0
      %v545 = vadd.f32 %v364, %v544
      %v546 = vpop.f32.mrf.mxu0
      %v547 = vpop.f32.mrf.mxu0
      %v548 = vadd.f32 %v364, %v547
      %v549 = vpop.f32.mrf.mxu0
      %550 = vmatprep.mubr.bf16.mxu0 0
      %551 = vmatmul.mubr.bf16.gmra.mxu0 %v340
      %v552 = vpop.f32.mrf.mxu0
      %v553 = vadd.f32 %v364, %v552
      %v554 = vpop.f32.mrf.mxu0
      %v555 = vpop.f32.mrf.mxu0
      %v556 = vadd.f32 %v364, %v555
      %v557 = vpop.f32.mrf.mxu0
      %558 = vmatprep.mubr.bf16.mxu0 0
      %559 = vmatmul.mubr.bf16.gmra.mxu0 %v341
      %v560 = vpop.f32.mrf.mxu0
      %v561 = vadd.f32 %v364, %v560
      %v562 = vpop.f32.mrf.mxu0
      %v563 = vpop.f32.mrf.mxu0
      %v564 = vadd.f32 %v364, %v563
      %v565 = vpop.f32.mrf.mxu0
      %566 = vmatprep.mubr.bf16.mxu0 0
      %567 = vmatmul.mubr.bf16.gmra.mxu0 %v342
      %v568 = vpop.f32.mrf.mxu0
      %v569 = vadd.f32 %v364, %v568
      %v570 = vpop.f32.mrf.mxu0
      %v571 = vpop.f32.mrf.mxu0
      %v572 = vadd.f32 %v364, %v571
      %v573 = vpop.f32.mrf.mxu0
      %574 = vdwg.mxu0
      %v575 = vsub.f32 0.0, %v449
      %v576 = vsub.f32 0.0, %v452
      %v577 = vsub.f32 0.0, %v457
      %v578 = vsub.f32 0.0, %v460
      %v579 = vsub.f32 0.0, %v465
      %v580 = vsub.f32 0.0, %v468
      %v581 = vsub.f32 0.0, %v473
      %v582 = vsub.f32 0.0, %v476
      %v583 = vsub.f32 0.0, %v481
      %v584 = vsub.f32 0.0, %v484
      %v585 = vsub.f32 0.0, %v489
      %v586 = vsub.f32 0.0, %v492
      %v587 = vsub.f32 0.0, %v497
      %v588 = vsub.f32 0.0, %v500
      %v589 = vsub.f32 0.0, %v505
      %v590 = vsub.f32 0.0, %v508
      %v591 = vsub.f32 0.0, %v513
      %v592 = vsub.f32 0.0, %v516
      %v593 = vsub.f32 0.0, %v521
      %v594 = vsub.f32 0.0, %v524
      %v595 = vsub.f32 0.0, %v529
      %v596 = vsub.f32 0.0, %v532
      %v597 = vsub.f32 0.0, %v537
      %v598 = vsub.f32 0.0, %v540
      %v599 = vsub.f32 0.0, %v545
      %v600 = vsub.f32 0.0, %v548
      %v601 = vsub.f32 0.0, %v553
      %v602 = vsub.f32 0.0, %v556
      %v603 = vsub.f32 0.0, %v561
      %v604 = vsub.f32 0.0, %v564
      %v605 = vsub.f32 0.0, %v569
      %v606 = vsub.f32 0.0, %v572
      %v607 = vmul.f32 %v575, 1.442695
      %v608 = vpow.pop %v607
      %v609 = vmul.f32 %v576, 1.442695
      %v610 = vpow.pop %v609
      %v611 = vmul.f32 %v577, 1.442695
      %v612 = vpow.pop %v611
      %v613 = vmul.f32 %v578, 1.442695
      %v614 = vpow.pop %v613
      %v615 = vmul.f32 %v579, 1.442695
      %v616 = vpow.pop %v615
      %v617 = vmul.f32 %v580, 1.442695
      %v618 = vpow.pop %v617
      %v619 = vmul.f32 %v581, 1.442695
      %v620 = vpow.pop %v619
      %v621 = vmul.f32 %v582, 1.442695
      %v622 = vpow.pop %v621
      %v623 = vmul.f32 %v583, 1.442695
      %v624 = vpow.pop %v623
      %v625 = vmul.f32 %v584, 1.442695
      %v626 = vpow.pop %v625
      %v627 = vmul.f32 %v585, 1.442695
      %v628 = vpow.pop %v627
      %v629 = vmul.f32 %v586, 1.442695
      %v630 = vpow.pop %v629
      %v631 = vmul.f32 %v587, 1.442695
      %v632 = vpow.pop %v631
      %v633 = vmul.f32 %v588, 1.442695
      %v634 = vpow.pop %v633
      %v635 = vmul.f32 %v589, 1.442695
      %v636 = vpow.pop %v635
      %v637 = vmul.f32 %v590, 1.442695
      %v638 = vpow.pop %v637
      %v639 = vmul.f32 %v591, 1.442695
      %v640 = vpow.pop %v639
      %v641 = vmul.f32 %v592, 1.442695
      %v642 = vpow.pop %v641
      %v643 = vmul.f32 %v593, 1.442695
      %v644 = vpow.pop %v643
      %v645 = vmul.f32 %v594, 1.442695
      %v646 = vpow.pop %v645
      %v647 = vmul.f32 %v595, 1.442695
      %v648 = vpow.pop %v647
      %v649 = vmul.f32 %v596, 1.442695
      %v650 = vpow.pop %v649
      %v651 = vmul.f32 %v597, 1.442695
      %v652 = vpow.pop %v651
      %v653 = vmul.f32 %v598, 1.442695
      %v654 = vpow.pop %v653
      %v655 = vmul.f32 %v599, 1.442695
      %v656 = vpow.pop %v655
      %v657 = vmul.f32 %v600, 1.442695
      %v658 = vpow.pop %v657
      %v659 = vmul.f32 %v601, 1.442695
      %v660 = vpow.pop %v659
      %v661 = vmul.f32 %v602, 1.442695
      %v662 = vpow.pop %v661
      %v663 = vmul.f32 %v603, 1.442695
      %v664 = vpow.pop %v663
      %v665 = vmul.f32 %v604, 1.442695
      %v666 = vpow.pop %v665
      %v667 = vmul.f32 %v605, 1.442695
      %v668 = vpow.pop %v667
      %v669 = vmul.f32 %v606, 1.442695
      %v670 = vpow.pop %v669
      %v671 = vadd.f32 %v608, 1.0
      %v672 = vadd.f32 %v610, 1.0
      %v673 = vadd.f32 %v612, 1.0
      %v674 = vadd.f32 %v614, 1.0
      %v675 = vadd.f32 %v616, 1.0
      %v676 = vadd.f32 %v618, 1.0
      %v677 = vadd.f32 %v620, 1.0
      %v678 = vadd.f32 %v622, 1.0
      %v679 = vadd.f32 %v624, 1.0
      %v680 = vadd.f32 %v626, 1.0
      %v681 = vadd.f32 %v628, 1.0
      %v682 = vadd.f32 %v630, 1.0
      %v683 = vadd.f32 %v632, 1.0
      %v684 = vadd.f32 %v634, 1.0
      %v685 = vadd.f32 %v636, 1.0
      %v686 = vadd.f32 %v638, 1.0
      %v687 = vadd.f32 %v640, 1.0
      %v688 = vadd.f32 %v642, 1.0
      %v689 = vadd.f32 %v644, 1.0
      %v690 = vadd.f32 %v646, 1.0
      %v691 = vadd.f32 %v648, 1.0
      %v692 = vadd.f32 %v650, 1.0
      %v693 = vadd.f32 %v652, 1.0
      %v694 = vadd.f32 %v654, 1.0
      %v695 = vadd.f32 %v656, 1.0
      %v696 = vadd.f32 %v658, 1.0
      %v697 = vadd.f32 %v660, 1.0
      %v698 = vadd.f32 %v662, 1.0
      %v699 = vadd.f32 %v664, 1.0
      %v700 = vadd.f32 %v666, 1.0
      %v701 = vadd.f32 %v668, 1.0
      %v702 = vadd.f32 %v670, 1.0
      %v703 = vrcp.pop %v671
      %v704 = vrcp.pop %v672
      %v705 = vrcp.pop %v673
      %v706 = vrcp.pop %v674
      %v707 = vrcp.pop %v675
      %v708 = vrcp.pop %v676
      %v709 = vrcp.pop %v677
      %v710 = vrcp.pop %v678
      %v711 = vrcp.pop %v679
      %v712 = vrcp.pop %v680
      %v713 = vrcp.pop %v681
      %v714 = vrcp.pop %v682
      %v715 = vrcp.pop %v683
      %v716 = vrcp.pop %v684
      %v717 = vrcp.pop %v685
      %v718 = vrcp.pop %v686
      %v719 = vrcp.pop %v687
      %v720 = vrcp.pop %v688
      %v721 = vrcp.pop %v689
      %v722 = vrcp.pop %v690
      %v723 = vrcp.pop %v691
      %v724 = vrcp.pop %v692
      %v725 = vrcp.pop %v693
      %v726 = vrcp.pop %v694
      %v727 = vrcp.pop %v695
      %v728 = vrcp.pop %v696
      %v729 = vrcp.pop %v697
      %v730 = vrcp.pop %v698
      %v731 = vrcp.pop %v699
      %v732 = vrcp.pop %v700
      %v733 = vrcp.pop %v701
      %v734 = vrcp.pop %v702
      %735 = vst [vmem:[%s228] sm:$0xff] %v703
      %736 = vst [vmem:[%s228 + $0x8] sm:$0xff] %v704
      %737 = vst [vmem:[%s228 + $0x10] sm:$0xff] %v705
      %738 = vst [vmem:[%s228 + $0x18] sm:$0xff] %v706
      %739 = vst [vmem:[%s228 + $0x20] sm:$0xff] %v707
      %740 = vst [vmem:[%s228 + $0x28] sm:$0xff] %v708
      %741 = vst [vmem:[%s228 + $0x30] sm:$0xff] %v709
      %742 = vst [vmem:[%s228 + $0x38] sm:$0xff] %v710
      %743 = vst [vmem:[%s228 + $0x40] sm:$0xff] %v711
      %744 = vst [vmem:[%s228 + $0x48] sm:$0xff] %v712
      %745 = vst [vmem:[%s228 + $0x50] sm:$0xff] %v713
      %746 = vst [vmem:[%s228 + $0x58] sm:$0xff] %v714
      %747 = vst [vmem:[%s228 + $0x60] sm:$0xff] %v715
      %748 = vst [vmem:[%s228 + $0x68] sm:$0xff] %v716
      %749 = vst [vmem:[%s228 + $0x70] sm:$0xff] %v717
      %750 = vst [vmem:[%s228 + $0x78] sm:$0xff] %v718
      %751 = vst [vmem:[%s228 + $0x80] sm:$0xff] %v719
      %752 = vst [vmem:[%s228 + $0x88] sm:$0xff] %v720
      %753 = vst [vmem:[%s228 + $0x90] sm:$0xff] %v721
      %754 = vst [vmem:[%s228 + $0x98] sm:$0xff] %v722
      %755 = vst [vmem:[%s228 + $0xa0] sm:$0xff] %v723
      %756 = vst [vmem:[%s228 + $0xa8] sm:$0xff] %v724
      %757 = vst [vmem:[%s228 + $0xb0] sm:$0xff] %v725
      %758 = vst [vmem:[%s228 + $0xb8] sm:$0xff] %v726
      %759 = vst [vmem:[%s228 + $0xc0] sm:$0xff] %v727
      %760 = vst [vmem:[%s228 + $0xc8] sm:$0xff] %v728
      %761 = vst [vmem:[%s228 + $0xd0] sm:$0xff] %v729
      %762 = vst [vmem:[%s228 + $0xd8] sm:$0xff] %v730
      %763 = vst [vmem:[%s228 + $0xe0] sm:$0xff] %v731
      %764 = vst [vmem:[%s228 + $0xe8] sm:$0xff] %v732
      %765 = vst [vmem:[%s228 + $0xf0] sm:$0xff] %v733
      %766 = vst [vmem:[%s228 + $0xf8] sm:$0xff] %v734
      %s767 = smul.u32 32, %s19
      %p768 = scmp.lt.s32.totalorder %s18, 3
      %s769 = scalar_select %p768, %s18, 3
      %p770 = scmp.lt.s32.totalorder %s767, 63
      %s771 = scalar_select %p770, %s767, 63
      %s772 = smul.addr %s769, 64
      %s773 = sadd.s32 %s771, %s772
      %s774 = smul.addr %s773, 8
      %s775 = scalar_lea.vmem %s3, %s774
      // Predicated region
      $region33: #{_lambda_.17} parent=31 // pred_check
        %p776 = pneg %p121
      $region34: #{_lambda_.17} parent=31 // pred_check_branch
        %778 = sbr.rel (%p776) target = $region36
      $region35: #{_lambda_.17} parent=31 // pred_region
        %s779 = smul.u32 32, %s19
      $region36: #{_lambda_.17} parent=31 // pred_fallthru
        _
    $region32: #{_lambda_.17} parent=5 // pred_fallthru
      _
    %p780 = scmp.le.s32.totalorder 2, %s9
    // Predicated region
    $region37: #{_lambda_.17} parent=5 // pred_check
      %p781 = pneg %p780
    $region38: #{_lambda_.17} parent=5 // pred_check_branch
      %783 = sbr.rel (%p781) target = $region40
    $region39: #{_lambda_.17} parent=5 // pred_region
      %s784 = ssub.s32 %s9, 2
      // Predicated region
      $region41: #{_lambda_.17} parent=39 // pred_check
        %p785 = pneg %p127
      $region42: #{_lambda_.17} parent=39 // pred_check_branch
        %787 = sbr.rel (%p785) target = $region44
      $region43: #{_lambda_.17} parent=39 // pred_region
        %s788 = smul.u32 32, %s21
        %p789 = scmp.lt.s32.totalorder %s20, 3
        %s790 = scalar_select %p789, %s20, 3
        %p791 = scmp.lt.s32.totalorder %s788, 63
        %s792 = scalar_select %p791, %s788, 63
        %s793 = smul.addr %s790, 64
        %s794 = sadd.s32 %s792, %s793
        %s795 = smul.addr %s794, 8
        %s796 = scalar_lea.vmem %s3, %s795
      $region44: #{_lambda_.17} parent=39 // pred_fallthru
        _
    $region40: #{_lambda_.17} parent=5 // pred_fallthru
      _
  $region6: #{_lambda_.17} parent=0 // loop_footer
    %s13 = sadd.s32 1, %s9
  $region7: #{_lambda_.17} parent=0 // loop_footer_branch
    %8 = sbr.rel target = $region3
  $region8: #{_lambda_.17} parent=0 // loop_exit
    _

</llo_original>
